<compile_context>
chip_gen: v7x
topology: tpu7x:2x2x1
jax: 0.10.0
libtpu: 0.0.40
codegen_flags: <defaults>
</compile_context>

<pallas_src>
import math
import functools

import jax
import jax.numpy as jnp
from jax import lax
from jax.experimental import pallas as pl
from jax.experimental.pallas import tpu as pltpu

LN_EPS = 1e-5             # nn.LayerNorm default eps
COS_EPS = 1e-13           # allennlp tiny_value_of_dtype(float32)
INV_LN2 = 1.0 / math.log(2.0)   # reference uses torch.log2
INV_SQRT2 = 1.0 / math.sqrt(2.0)
MATMUL_BF16 = True        # bf16 MXU operands with fp32 accumulation
VMEM_LIMIT = 32 * 1024 * 1024


# ----------------------------------------------------------------------------
# helpers (host side / trace time)
# ----------------------------------------------------------------------------
def kernel_mus(n_kernels):
    l_mu = [1.0]
    if n_kernels == 1:
        return l_mu
    bin_size = 2.0 / (n_kernels - 1)
    l_mu.append(1 - bin_size / 2)
    for i in range(1, n_kernels - 1):
        l_mu.append(l_mu[i] - bin_size)
    return l_mu


def kernel_sigmas(n_kernels):
    bin_size = 2.0 / (n_kernels - 1)
    l_sigma = [0.0001]
    if n_kernels == 1:
        return l_sigma
    l_sigma += [0.5 * bin_size] * (n_kernels - 1)
    return l_sigma


def _dft_cos_sin(n):
    """Real/imag DFT basis: C[p,k]=cos(2*pi*p*k/n), S[p,k]=sin(2*pi*p*k/n)."""
    k = jnp.arange(n, dtype=jnp.float32)
    ang = (2.0 * math.pi / n) * (k[:, None] * k[None, :])
    return jnp.cos(ang), jnp.sin(ang)


def add_positional_features(x, min_timescale=1.0, max_timescale=1.0e4):
    """allennlp.nn.util.add_positional_features (sinusoidal)."""
    _, L, D = x.shape
    num_ts = D // 2
    ts_range = jnp.arange(num_ts, dtype=jnp.float32)
    log_inc = math.log(max_timescale / min_timescale) / max(num_ts - 1, 1)
    inv_ts = min_timescale * jnp.exp(ts_range * -log_inc)
    positions = jnp.arange(L, dtype=jnp.float32)
    scaled = positions[:, None] * inv_ts[None, :]
    sinus = jnp.concatenate([jnp.sin(scaled), jnp.cos(scaled)], axis=1)
    if D % 2 != 0:
        sinus = jnp.concatenate([sinus, jnp.zeros((L, 1), jnp.float32)], axis=1)
    return x + sinus[None, :, :]


def _erf(x):
    # Abramowitz-Stegun 7.1.26 polynomial erf (|err| < 1.5e-7); exact-GELU
    # semantics in fp32 without relying on a native erf lowering.
    a1, a2, a3, a4, a5 = 0.254829592, -0.284496736, 1.421413741, -1.453152027, 1.061405429
    p = 0.3275911
    s = jnp.where(x >= 0.0, 1.0, -1.0)
    ax = jnp.abs(x)
    t = 1.0 / (1.0 + p * ax)
    poly = ((((a5 * t + a4) * t + a3) * t + a2) * t + a1) * t
    return s * (1.0 - poly * jnp.exp(-ax * ax))


# ----------------------------------------------------------------------------
# Pallas kernel 1: full FNet stack, gridded over batch (one example / step)
#   Re(fft(fft(x,-1),-2)) = C_L @ (x @ C_D) - S_L @ (x @ S_D)
# ----------------------------------------------------------------------------
def _fnet_stack_kernel(x_ref, m_ref, cl_ref, sl_ref, cd_ref, sd_ref,
                       g1_ref, be1_ref, w1_ref, b1_ref,
                       w2_ref, b2_ref, g2_ref, be2_ref,
                       o_ref, *, n_layers, mm_dtype):
    x = x_ref[...]              # (L, D) fp32 activations for this example
    m = m_ref[...]              # (L, 1) token mask
    cl = cl_ref[...]            # (L, L) C_L   (mm_dtype)
    sl = sl_ref[...]            # (L, L) S_L
    cd = cd_ref[...]            # (D, D) C_D
    sd = sd_ref[...]            # (D, D) S_D

    # TODO(synk): switch to lax.fori_loop with dynamic first-axis weight
    # indexing (or a trailing layer grid axis) once n_layers grows beyond ~4.
    for layer in range(n_layers):
        xb = x.astype(mm_dtype)
        t1 = jnp.dot(cl, xb, preferred_element_type=jnp.float32)          # (L, D)
        t2 = jnp.dot(sl, xb, preferred_element_type=jnp.float32)          # (L, D)
        dft = (jnp.dot(t1.astype(mm_dtype), cd, preferred_element_type=jnp.float32)
               - jnp.dot(t2.astype(mm_dtype), sd, preferred_element_type=jnp.float32))
        dft = dft * m

        h = dft + x
        mu = jnp.mean(h, axis=-1, keepdims=True)
        var = jnp.mean((h - mu) ** 2, axis=-1, keepdims=True)
        n1 = (h - mu) * lax.rsqrt(var + LN_EPS) * g1_ref[layer] + be1_ref[layer]

        z = jnp.dot(n1.astype(mm_dtype), w1_ref[layer],
                    preferred_element_type=jnp.float32) + b1_ref[layer]
        z = 0.5 * z * (1.0 + _erf(z * INV_SQRT2))                         # exact GELU
        z = jnp.dot(z.astype(mm_dtype), w2_ref[layer],
                    preferred_element_type=jnp.float32) + b2_ref[layer]
        # dropout: identity (inference / eval mode)

        h2 = z + n1
        mu2 = jnp.mean(h2, axis=-1, keepdims=True)
        var2 = jnp.mean((h2 - mu2) ** 2, axis=-1, keepdims=True)
        x = (h2 - mu2) * lax.rsqrt(var2 + LN_EPS) * g2_ref[layer] + be2_ref[layer]

    o_ref[...] = x


def fnet_stack(x, mask, blocks):
    """Run all FNet layers for one (B, L, D) tensor: grid over batch."""
    B, L, D = x.shape
    n_layers = blocks["w1"].shape[0]
    mm_dtype = jnp.bfloat16 if MATMUL_BF16 else jnp.float32

    cl, sl = _dft_cos_sin(L)
    cd, sd = _dft_cos_sin(D)
    cl, sl, cd, sd = (a.astype(mm_dtype) for a in (cl, sl, cd, sd))
    w1 = blocks["w1"].astype(mm_dtype)
    w2 = blocks["w2"].astype(mm_dtype)

    def const(shape):
        nd = len(shape)
        return pl.BlockSpec(shape, lambda b, nd=nd: (0,) * nd)

    kernel = functools.partial(_fnet_stack_kernel, n_layers=n_layers,
                               mm_dtype=mm_dtype)
    # TODO(synk): for small L, fold the batch into the lane axis ((L, B*D)
    # view) so the L-DFT matmul fully occupies the MXU.
    out = pl.pallas_call(
        kernel,
        out_shape=jax.ShapeDtypeStruct((B, L, D), jnp.float32),
        grid=(B,),
        in_specs=[
            pl.BlockSpec((None, L, D), lambda b: (b, 0, 0)),     # x
            pl.BlockSpec((None, L, 1), lambda b: (b, 0, 0)),     # mask
            const((L, L)), const((L, L)),                        # C_L, S_L
            const((D, D)), const((D, D)),                        # C_D, S_D
            const((n_layers, 1, D)), const((n_layers, 1, D)),    # ln1 g/b
            const((n_layers, D, 2 * D)), const((n_layers, 1, 2 * D)),  # w1/b1
            const((n_layers, 2 * D, D)), const((n_layers, 1, D)),      # w2/b2
            const((n_layers, 1, D)), const((n_layers, 1, D)),    # ln2 g/b
        ],
        out_specs=pl.BlockSpec((None, L, D), lambda b: (b, 0, 0)),
        compiler_params=pltpu.CompilerParams(
            dimension_semantics=("parallel",),
            vmem_limit_bytes=VMEM_LIMIT),
    )(x, mask, cl, sl, cd, sd,
      blocks["ln1_g"], blocks["ln1_b"], w1, blocks["b1"],
      w2, blocks["b2"], blocks["ln2_g"], blocks["ln2_b"])
    return out


# ----------------------------------------------------------------------------
# Pallas kernel 2: cosine cross-match + Gaussian kernel pooling (batch-tiled)
#
# Gaussian recurrence (equal sigma, evenly spaced mus):
#   g_{k+1}(c) = g_k(c) * exp(-4c/bin) * exp(4*mu_k/bin - 2)
# A single chain underflows catastrophically when started far from c, so two
# chains are run (one from the highest mu, one from the lowest) and each
# element uses the chain on its own side of c = 0 (where the chain start is
# always representable), giving bit-stable results with only 4 big exp maps.
# ----------------------------------------------------------------------------
def _crossmatch_pool_kernel(q_ref, d_ref, qm_ref, dm_ref, log_ref, len_ref,
                            *, mus, sigmas, nn_scaler, use_chain):
    q = q_ref[...]                      # (Bt, Lq, D)
    d = d_ref[...]                      # (Bt, Ld, D)
    qm = qm_ref[...]                    # (Bt, Lq, 1)
    dm = dm_ref[...]                    # (Bt, 1, Ld)
    K = len(mus)

    qn = q / (jnp.sqrt(jnp.sum(q * q, axis=-1, keepdims=True)) + COS_EPS)
    dn = d / (jnp.sqrt(jnp.sum(d * d, axis=-1, keepdims=True)) + COS_EPS)
    # contract last dims -> no in-kernel transpose of the doc tile.
    cos = jnp.einsum('bqd,bkd->bqk', qn, dn,
                     preferred_element_type=jnp.float32)          # (Bt, Lq, Ld)

    qd = qm * dm                                                  # (Bt, Lq, Ld)
    c = jnp.tanh(cos * qd)

    doc_len = jnp.sum(dm, axis=2, keepdims=True)                  # (Bt, 1, 1)
    inv_dl = 1.0 / (doc_len + 0.0001)
    qscale = nn_scaler * qm                                       # (Bt, Lq, 1)

    def finish(s):                       # s: (Bt, Lq, 1) doc-axis kernel sum
        logc = jnp.sum(jnp.log(jnp.maximum(s, 1e-10)) * INV_LN2 * qscale, axis=1)
        lenc = jnp.sum(s * inv_dl * qscale, axis=1)
        return logc, lenc                # each (Bt, 1)

    log_cols = [None] * K
    len_cols = [None] * K

    # k = 0: exact-match kernel (sigma = 1e-4) -- always direct.
    inv0 = 1.0 / (2.0 * sigmas[0] * sigmas[0])
    s0 = jnp.sum(jnp.exp(-((c - mus[0]) ** 2) * inv0) * qd, axis=2, keepdims=True)
    log_cols[0], len_cols[0] = finish(s0)

    if use_chain and K > 1:
        bin_size = 2.0 / (K - 1)
        inv = 2.0 / (bin_size * bin_size)
        pos = (c >= 0.0).astype(jnp.float32)
        wA = qd * pos                    # chain A covers c >= 0
        wB = qd - wA                     # chain B covers c <  0

        # chain B: start at the lowest mu, walk k = K-1 .. 1, stash doc-sums.
        rup = jnp.exp((4.0 / bin_size) * c)
        gB = jnp.exp(-((c - mus[K - 1]) ** 2) * inv)
        sB = [None] * K
        for k in range(K - 1, 0, -1):
            sB[k] = jnp.sum(gB * wB, axis=2, keepdims=True)
            if k > 1:
                gB = gB * rup * math.exp(-4.0 * mus[k] / bin_size - 2.0)

        # chain A: start at the highest (non-exact) mu, walk k = 1 .. K-1.
        rdn = jnp.exp(-(4.0 / bin_size) * c)
        gA = jnp.exp(-((c - mus[1]) ** 2) * inv)
        for k in range(1, K):
            s = jnp.sum(gA * wA, axis=2, keepdims=True) + sB[k]
            log_cols[k], len_cols[k] = finish(s)
            if k + 1 < K:
                gA = gA * rdn * math.exp(4.0 * mus[k] / bin_size - 2.0)
    else:
        for k in range(1, K):
            invk = 1.0 / (2.0 * sigmas[k] * sigmas[k])
            kern = jnp.exp(-((c - mus[k]) ** 2) * invk) * qd
            log_cols[k], len_cols[k] = finish(jnp.sum(kern, axis=2, keepdims=True))

    log_ref[...] = jnp.concatenate(log_cols, axis=1)              # (Bt, K)
    len_ref[...] = jnp.concatenate(len_cols, axis=1)              # (Bt, K)


def crossmatch_kernel_pool(qc, dc, qmask, dmask, n_kernels, nn_scaler):
    B, Lq, D = qc.shape
    _, Ld, _ = dc.shape
    K = n_kernels
    mus = [float(v) for v in kernel_mus(K)]
    sigmas = [float(v) for v in kernel_sigmas(K)]

    # Recurrence only when it is exact & numerically safe (true for K=11).
    use_chain = False
    if K >= 3:
        bin_size = 2.0 / (K - 1)
        uniform = (all(abs(sigmas[k] - 0.5 * bin_size) < 1e-9 for k in range(1, K)) and
                   all(abs(mus[k] - (mus[1] - (k - 1) * bin_size)) < 1e-6
                       for k in range(1, K)))
        safe = (4.0 / bin_size) <= 80.0 and (2.0 / bin_size ** 2) * mus[1] ** 2 <= 80.0
        use_chain = uniform and safe

    # Batch tiling: Bt examples per grid step (pad batch if needed).
    Bt = B if B <= 8 else 8
    Bp = ((B + Bt - 1) // Bt) * Bt
    if Bp != B:
        pad = Bp - B
        qc = jnp.pad(qc, ((0, pad), (0, 0), (0, 0)))
        dc = jnp.pad(dc, ((0, pad), (0, 0), (0, 0)))
        qmask = jnp.pad(qmask, ((0, pad), (0, 0)))
        dmask = jnp.pad(dmask, ((0, pad), (0, 0)))
    qm = qmask[:, :, None]              # (Bp, Lq, 1)
    dm = dmask[:, None, :]              # (Bp, 1, Ld)

    kernel = functools.partial(_crossmatch_pool_kernel,
                               mus=tuple(mus), sigmas=tuple(sigmas),
                               nn_scaler=float(nn_scaler), use_chain=use_chain)
    s_log, s_len = pl.pallas_call(
        kernel,
        out_shape=(jax.ShapeDtypeStruct((Bp, K), jnp.float32),
                   jax.ShapeDtypeStruct((Bp, K), jnp.float32)),
        grid=(Bp // Bt,),
        in_specs=[
            pl.BlockSpec((Bt, Lq, D), lambda b: (b, 0, 0)),
            pl.BlockSpec((Bt, Ld, D), lambda b: (b, 0, 0)),
            pl.BlockSpec((Bt, Lq, 1), lambda b: (b, 0, 0)),
            pl.BlockSpec((Bt, 1, Ld), lambda b: (b, 0, 0)),
        ],
        out_specs=(pl.BlockSpec((Bt, K), lambda b: (b, 0)),
                   pl.BlockSpec((Bt, K), lambda b: (b, 0))),
        compiler_params=pltpu.CompilerParams(
            dimension_semantics=("parallel",),
            vmem_limit_bytes=VMEM_LIMIT),
    )(qc, dc, qm, dm)
    return s_log[:B], s_len[:B]


# ----------------------------------------------------------------------------
# parameters & full forward
# ----------------------------------------------------------------------------
def init_params(key, vocab_size, dim, n_kernels, n_layers):
    k_emb, k_rest = jax.random.split(key)
    params = {"embedding": 0.1 * jax.random.normal(k_emb, (vocab_size, dim), jnp.float32)}

    g1s, be1s, w1s, b1s, w2s, b2s, g2s, be2s = ([] for _ in range(8))
    for _ in range(n_layers):
        k_rest, k1, k2, k3, k4 = jax.random.split(k_rest, 5)
        lim1 = 1.0 / math.sqrt(dim)
        lim2 = 1.0 / math.sqrt(2 * dim)
        g1s.append(jnp.ones((1, dim), jnp.float32))
        be1s.append(jnp.zeros((1, dim), jnp.float32))
        w1s.append(jax.random.uniform(k1, (dim, 2 * dim), jnp.float32, -lim1, lim1))
        b1s.append(jax.random.uniform(k2, (1, 2 * dim), jnp.float32, -lim1, lim1))
        w2s.append(jax.random.uniform(k3, (2 * dim, dim), jnp.float32, -lim2, lim2))
        b2s.append(jax.random.uniform(k4, (1, dim), jnp.float32, -lim2, lim2))
        g2s.append(jnp.ones((1, dim), jnp.float32))
        be2s.append(jnp.zeros((1, dim), jnp.float32))
    params["blocks"] = {
        "ln1_g": jnp.stack(g1s), "ln1_b": jnp.stack(be1s),
        "w1": jnp.stack(w1s), "b1": jnp.stack(b1s),
        "w2": jnp.stack(w2s), "b2": jnp.stack(b2s),
        "ln2_g": jnp.stack(g2s), "ln2_b": jnp.stack(be2s),
    }

    params["mixer"] = 0.5          # nn.Parameter init value
    params["nn_scaler"] = 0.01     # nn.Parameter init value
    params["n_kernels"] = n_kernels
    k_rest, ka, kb, kc = jax.random.split(k_rest, 4)
    params["w_log"] = jax.random.uniform(ka, (n_kernels, 1), jnp.float32, -0.014, 0.014)
    params["w_len"] = jax.random.uniform(kb, (n_kernels, 1), jnp.float32, -0.014, 0.014)
    lim = 1.0 / math.sqrt(2.0)
    params["w_comb"] = jax.random.uniform(kc, (1, 2), jnp.float32, -lim, lim)
    return params


def fk_forward(params, q_tokens, d_tokens):
    qmask = (q_tokens > 0).astype(jnp.float32)       # (B, Lq)
    dmask = (d_tokens > 0).astype(jnp.float32)       # (B, Ld)

    emb = params["embedding"]
    q_emb = emb[q_tokens]                            # (B, Lq, D)
    d_emb = emb[d_tokens]                            # (B, Ld, D)

    # ContextualizationLayer (positional features + masked input, FNet stack)
    qc = add_positional_features(q_emb) * qmask[:, :, None]
    dc = add_positional_features(d_emb) * dmask[:, :, None]
    qc = fnet_stack(qc, qmask[:, :, None], params["blocks"])
    dc = fnet_stack(dc, dmask[:, :, None], params["blocks"])
    mix = params["mixer"]
    qc = mix * q_emb + (1.0 - mix) * qc
    dc = mix * d_emb + (1.0 - mix) * dc

    # FK masking before cross-match
    qc = qc * qmask[:, :, None]
    dc = dc * dmask[:, :, None]

    s_log, s_len = crossmatch_kernel_pool(qc, dc, qmask, dmask,
                                          params["n_kernels"], params["nn_scaler"])

    # LearningToRankLayer: trivial (B,K)@(K,1) + (B,2)@(2,1) -- plain JAX.
    feats = jnp.concatenate([s_log @ params["w_log"], s_len @ params["w_len"]], axis=1)
    return feats @ params["w_comb"].T                # (B, 1)


if __name__ == "__main__":
    B, Lq, Ld, D = 2, 8, 16, 32
    n_kernels, n_layers, vocab = 11, 2, 100

    key = jax.random.PRNGKey(0)
    kp, kq, kd = jax.random.split(key, 3)
    params = init_params(kp, vocab, D, n_kernels, n_layers)

    q_tokens = jax.random.randint(kq, (B, Lq), 1, vocab)
    d_tokens = jax.random.randint(kd, (B, Ld), 1, vocab)
    # introduce padding (token id 0 = pad/oov)
    q_tokens = q_tokens.at[:, -2:].set(0)
    d_tokens = d_tokens.at[:, -3:].set(0)

    fwd = jax.jit(functools.partial(fk_forward, params))
    out = fwd(q_tokens, d_tokens)
    jax.block_until_ready(out)
    assert out.shape == (B, 1) and out.dtype == jnp.float32
    print("KERNEL_OK")
</pallas_src>

<mosaic_0001>
module attributes {stable_mosaic.version = 11 : i64} {
  func.func @_fnet_stack_kernel(%arg0: i32, %arg1: memref<1x16x32xf32, #tpu.memory_space<vmem>>, %arg2: memref<1x16x1xf32, #tpu.memory_space<vmem>>, %arg3: memref<16x16xbf16, #tpu.memory_space<vmem>>, %arg4: memref<16x16xbf16, #tpu.memory_space<vmem>>, %arg5: memref<32x32xbf16, #tpu.memory_space<vmem>>, %arg6: memref<32x32xbf16, #tpu.memory_space<vmem>>, %arg7: memref<2x1x32xf32, #tpu.memory_space<vmem>>, %arg8: memref<2x1x32xf32, #tpu.memory_space<vmem>>, %arg9: memref<2x32x64xbf16, #tpu.memory_space<vmem>>, %arg10: memref<2x1x64xf32, #tpu.memory_space<vmem>>, %arg11: memref<2x64x32xbf16, #tpu.memory_space<vmem>>, %arg12: memref<2x1x32xf32, #tpu.memory_space<vmem>>, %arg13: memref<2x1x32xf32, #tpu.memory_space<vmem>>, %arg14: memref<2x1x32xf32, #tpu.memory_space<vmem>>, %arg15: memref<1x16x32xf32, #tpu.memory_space<vmem>>) attributes {dimension_semantics = [#tpu.dimension_semantics<parallel>], iteration_bounds = array<i64: 2>, scalar_prefetch = 0 : i64, scratch_operands = 0 : i64, tpu.core_type = #tpu.core_type<tc>, window_params = [{transform_indices = @transform_0, window_bounds = array<i64: 1, 16, 32>}, {transform_indices = @transform_1, window_bounds = array<i64: 1, 16, 1>}, {pipeline_mode = #tpu.pipeline_mode<synchronous>, transform_indices = @transform_2, window_bounds = array<i64: 16, 16>}, {pipeline_mode = #tpu.pipeline_mode<synchronous>, transform_indices = @transform_3, window_bounds = array<i64: 16, 16>}, {pipeline_mode = #tpu.pipeline_mode<synchronous>, transform_indices = @transform_4, window_bounds = array<i64: 32, 32>}, {pipeline_mode = #tpu.pipeline_mode<synchronous>, transform_indices = @transform_5, window_bounds = array<i64: 32, 32>}, {pipeline_mode = #tpu.pipeline_mode<synchronous>, transform_indices = @transform_6, window_bounds = array<i64: 2, 1, 32>}, {pipeline_mode = #tpu.pipeline_mode<synchronous>, transform_indices = @transform_7, window_bounds = array<i64: 2, 1, 32>}, {pipeline_mode = #tpu.pipeline_mode<synchronous>, transform_indices = @transform_8, window_bounds = array<i64: 2, 32, 64>}, {pipeline_mode = #tpu.pipeline_mode<synchronous>, transform_indices = @transform_9, window_bounds = array<i64: 2, 1, 64>}, {pipeline_mode = #tpu.pipeline_mode<synchronous>, transform_indices = @transform_10, window_bounds = array<i64: 2, 64, 32>}, {pipeline_mode = #tpu.pipeline_mode<synchronous>, transform_indices = @transform_11, window_bounds = array<i64: 2, 1, 32>}, {pipeline_mode = #tpu.pipeline_mode<synchronous>, transform_indices = @transform_12, window_bounds = array<i64: 2, 1, 32>}, {pipeline_mode = #tpu.pipeline_mode<synchronous>, transform_indices = @transform_13, window_bounds = array<i64: 2, 1, 32>}, {transform_indices = @transform_14, window_bounds = array<i64: 1, 16, 32>}]} {
    %c0 = arith.constant 0 : index
    %c0_0 = arith.constant 0 : index
    %c0_1 = arith.constant 0 : index
    %0 = vector.load %arg1[%c0, %c0_0, %c0_1] : memref<1x16x32xf32, #tpu.memory_space<vmem>>, vector<1x16x32xf32>
    %1 = vector.shape_cast %0 : vector<1x16x32xf32> to vector<16x32xf32>
    %c0_2 = arith.constant 0 : index
    %c0_3 = arith.constant 0 : index
    %c0_4 = arith.constant 0 : index
    %2 = vector.load %arg2[%c0_2, %c0_3, %c0_4] : memref<1x16x1xf32, #tpu.memory_space<vmem>>, vector<1x16x1xf32>
    %3 = vector.shape_cast %2 : vector<1x16x1xf32> to vector<16x1xf32>
    %c0_5 = arith.constant 0 : index
    %c0_6 = arith.constant 0 : index
    %4 = vector.load %arg3[%c0_5, %c0_6] : memref<16x16xbf16, #tpu.memory_space<vmem>>, vector<16x16xbf16>
    %c0_7 = arith.constant 0 : index
    %c0_8 = arith.constant 0 : index
    %5 = vector.load %arg4[%c0_7, %c0_8] : memref<16x16xbf16, #tpu.memory_space<vmem>>, vector<16x16xbf16>
    %c0_9 = arith.constant 0 : index
    %c0_10 = arith.constant 0 : index
    %6 = vector.load %arg5[%c0_9, %c0_10] : memref<32x32xbf16, #tpu.memory_space<vmem>>, vector<32x32xbf16>
    %c0_11 = arith.constant 0 : index
    %c0_12 = arith.constant 0 : index
    %7 = vector.load %arg6[%c0_11, %c0_12] : memref<32x32xbf16, #tpu.memory_space<vmem>>, vector<32x32xbf16>
    %8 = arith.truncf %1 : vector<16x32xf32> to vector<16x32xbf16>
    %cst = arith.constant dense<0.000000e+00> : vector<16x32xf32>
    %9 = tpu.matmul %4, %8, %cst {dimension_numbers = #tpu.dot_dimension_numbers<[1], [0], [0], [1], [0, 0, 1, 1], [], []>} : vector<16x16xbf16>, vector<16x32xbf16>, vector<16x32xf32> -> vector<16x32xf32>
    %cst_13 = arith.constant dense<0.000000e+00> : vector<16x32xf32>
    %10 = tpu.matmul %5, %8, %cst_13 {dimension_numbers = #tpu.dot_dimension_numbers<[1], [0], [0], [1], [0, 0, 1, 1], [], []>} : vector<16x16xbf16>, vector<16x32xbf16>, vector<16x32xf32> -> vector<16x32xf32>
    %11 = arith.truncf %9 : vector<16x32xf32> to vector<16x32xbf16>
    %cst_14 = arith.constant dense<0.000000e+00> : vector<16x32xf32>
    %12 = tpu.matmul %11, %6, %cst_14 {dimension_numbers = #tpu.dot_dimension_numbers<[1], [0], [0], [1], [0, 0, 1, 1], [], []>} : vector<16x32xbf16>, vector<32x32xbf16>, vector<16x32xf32> -> vector<16x32xf32>
    %13 = arith.truncf %10 : vector<16x32xf32> to vector<16x32xbf16>
    %cst_15 = arith.constant dense<0.000000e+00> : vector<16x32xf32>
    %14 = tpu.matmul %13, %7, %cst_15 {dimension_numbers = #tpu.dot_dimension_numbers<[1], [0], [0], [1], [0, 0, 1, 1], [], []>} : vector<16x32xbf16>, vector<32x32xbf16>, vector<16x32xf32> -> vector<16x32xf32>
    %15 = arith.subf %12, %14 : vector<16x32xf32>
    %16 = vector.broadcast %3 : vector<16x1xf32> to vector<16x32xf32>
    %17 = arith.mulf %15, %16 : vector<16x32xf32>
    %18 = arith.addf %17, %1 : vector<16x32xf32>
    %cst_16 = arith.constant dense<0.000000e+00> : vector<16xf32>
    %19 = vector.multi_reduction <add>, %18, %cst_16 [1] : vector<16x32xf32> to vector<16xf32>
    %20 = vector.shape_cast %19 : vector<16xf32> to vector<16x1xf32>
    %cst_17 = arith.constant 3.200000e+01 : f32
    %21 = vector.broadcast %cst_17 : f32 to vector<16x1xf32>
    %22 = arith.divf %20, %21 : vector<16x1xf32>
    %23 = vector.broadcast %22 : vector<16x1xf32> to vector<16x32xf32>
    %24 = arith.subf %18, %23 : vector<16x32xf32>
    %25 = arith.mulf %24, %24 : vector<16x32xf32>
    %cst_18 = arith.constant dense<0.000000e+00> : vector<16xf32>
    %26 = vector.multi_reduction <add>, %25, %cst_18 [1] : vector<16x32xf32> to vector<16xf32>
    %27 = vector.shape_cast %26 : vector<16xf32> to vector<16x1xf32>
    %cst_19 = arith.constant 3.200000e+01 : f32
    %28 = vector.broadcast %cst_19 : f32 to vector<16x1xf32>
    %29 = arith.divf %27, %28 : vector<16x1xf32>
    %30 = vector.broadcast %22 : vector<16x1xf32> to vector<16x32xf32>
    %31 = arith.subf %18, %30 : vector<16x32xf32>
    %cst_20 = arith.constant 9.99999974E-6 : f32
    %32 = vector.broadcast %cst_20 : f32 to vector<16x1xf32>
    %33 = arith.addf %29, %32 : vector<16x1xf32>
    %34 = math.rsqrt %33 : vector<16x1xf32>
    %35 = vector.broadcast %34 : vector<16x1xf32> to vector<16x32xf32>
    %36 = arith.mulf %31, %35 : vector<16x32xf32>
    %c0_21 = arith.constant 0 : index
    %c0_22 = arith.constant 0 : index
    %c0_23 = arith.constant 0 : index
    %37 = vector.load %arg7[%c0_21, %c0_22, %c0_23] : memref<2x1x32xf32, #tpu.memory_space<vmem>>, vector<1x1x32xf32>
    %38 = vector.shape_cast %37 : vector<1x1x32xf32> to vector<1x32xf32>
    %39 = vector.broadcast %38 : vector<1x32xf32> to vector<16x32xf32>
    %40 = arith.mulf %36, %39 : vector<16x32xf32>
    %c0_24 = arith.constant 0 : index
    %c0_25 = arith.constant 0 : index
    %c0_26 = arith.constant 0 : index
    %41 = vector.load %arg8[%c0_24, %c0_25, %c0_26] : memref<2x1x32xf32, #tpu.memory_space<vmem>>, vector<1x1x32xf32>
    %42 = vector.shape_cast %41 : vector<1x1x32xf32> to vector<1x32xf32>
    %43 = vector.broadcast %42 : vector<1x32xf32> to vector<16x32xf32>
    %44 = arith.addf %40, %43 : vector<16x32xf32>
    %45 = arith.truncf %44 : vector<16x32xf32> to vector<16x32xbf16>
    %c0_27 = arith.constant 0 : index
    %c0_28 = arith.constant 0 : index
    %c0_29 = arith.constant 0 : index
    %46 = vector.load %arg9[%c0_27, %c0_28, %c0_29] : memref<2x32x64xbf16, #tpu.memory_space<vmem>>, vector<1x32x64xbf16>
    %47 = vector.shape_cast %46 : vector<1x32x64xbf16> to vector<32x64xbf16>
    %cst_30 = arith.constant dense<0.000000e+00> : vector<16x64xf32>
    %48 = tpu.matmul %45, %47, %cst_30 {dimension_numbers = #tpu.dot_dimension_numbers<[1], [0], [0], [1], [0, 0, 1, 1], [], []>} : vector<16x32xbf16>, vector<32x64xbf16>, vector<16x64xf32> -> vector<16x64xf32>
    %c0_31 = arith.constant 0 : index
    %c0_32 = arith.constant 0 : index
    %c0_33 = arith.constant 0 : index
    %49 = vector.load %arg10[%c0_31, %c0_32, %c0_33] : memref<2x1x64xf32, #tpu.memory_space<vmem>>, vector<1x1x64xf32>
    %50 = vector.shape_cast %49 : vector<1x1x64xf32> to vector<1x64xf32>
    %51 = vector.broadcast %50 : vector<1x64xf32> to vector<16x64xf32>
    %52 = arith.addf %48, %51 : vector<16x64xf32>
    %cst_34 = arith.constant 5.000000e-01 : f32
    %53 = vector.broadcast %cst_34 : f32 to vector<16x64xf32>
    %54 = arith.mulf %53, %52 : vector<16x64xf32>
    %cst_35 = arith.constant 0.707106769 : f32
    %55 = vector.broadcast %cst_35 : f32 to vector<16x64xf32>
    %56 = arith.mulf %52, %55 : vector<16x64xf32>
    %cst_36 = arith.constant 0.000000e+00 : f32
    %57 = vector.broadcast %cst_36 : f32 to vector<16x64xf32>
    %58 = arith.cmpf oge, %56, %57 : vector<16x64xf32>
    %cst_37 = arith.constant 1.000000e+00 : f32
    %cst_38 = arith.constant -1.000000e+00 : f32
    %59 = vector.broadcast %cst_37 : f32 to vector<16x64xf32>
    %60 = vector.broadcast %cst_38 : f32 to vector<16x64xf32>
    %61 = arith.select %58, %59, %60 : vector<16x64xi1>, vector<16x64xf32>
    %62 = math.absf %56 : vector<16x64xf32>
    %cst_39 = arith.constant 0.327591091 : f32
    %63 = vector.broadcast %cst_39 : f32 to vector<16x64xf32>
    %64 = arith.mulf %63, %62 : vector<16x64xf32>
    %cst_40 = arith.constant 1.000000e+00 : f32
    %65 = vector.broadcast %cst_40 : f32 to vector<16x64xf32>
    %66 = arith.addf %65, %64 : vector<16x64xf32>
    %cst_41 = arith.constant 1.000000e+00 : f32
    %67 = vector.broadcast %cst_41 : f32 to vector<16x64xf32>
    %68 = arith.divf %67, %66 : vector<16x64xf32>
    %cst_42 = arith.constant 1.06140542 : f32
    %69 = vector.broadcast %cst_42 : f32 to vector<16x64xf32>
    %70 = arith.mulf %69, %68 : vector<16x64xf32>
    %cst_43 = arith.constant -1.45315206 : f32
    %71 = vector.broadcast %cst_43 : f32 to vector<16x64xf32>
    %72 = arith.addf %70, %71 : vector<16x64xf32>
    %73 = arith.mulf %72, %68 : vector<16x64xf32>
    %cst_44 = arith.constant 1.42141378 : f32
    %74 = vector.broadcast %cst_44 : f32 to vector<16x64xf32>
    %75 = arith.addf %73, %74 : vector<16x64xf32>
    %76 = arith.mulf %75, %68 : vector<16x64xf32>
    %cst_45 = arith.constant -0.284496725 : f32
    %77 = vector.broadcast %cst_45 : f32 to vector<16x64xf32>
    %78 = arith.addf %76, %77 : vector<16x64xf32>
    %79 = arith.mulf %78, %68 : vector<16x64xf32>
    %cst_46 = arith.constant 0.254829586 : f32
    %80 = vector.broadcast %cst_46 : f32 to vector<16x64xf32>
    %81 = arith.addf %79, %80 : vector<16x64xf32>
    %82 = arith.mulf %81, %68 : vector<16x64xf32>
    %cst_47 = arith.constant 0.000000e+00 : f32
    %83 = vector.broadcast %cst_47 : f32 to vector<16x64xf32>
    %84 = arith.subf %83, %62 : vector<16x64xf32>
    %85 = arith.mulf %84, %62 : vector<16x64xf32>
    %86 = math.exp %85 : vector<16x64xf32>
    %87 = arith.mulf %82, %86 : vector<16x64xf32>
    %cst_48 = arith.constant 1.000000e+00 : f32
    %88 = vector.broadcast %cst_48 : f32 to vector<16x64xf32>
    %89 = arith.subf %88, %87 : vector<16x64xf32>
    %90 = arith.mulf %61, %89 : vector<16x64xf32>
    %cst_49 = arith.constant 1.000000e+00 : f32
    %91 = vector.broadcast %cst_49 : f32 to vector<16x64xf32>
    %92 = arith.addf %91, %90 : vector<16x64xf32>
    %93 = arith.mulf %54, %92 : vector<16x64xf32>
    %94 = arith.truncf %93 : vector<16x64xf32> to vector<16x64xbf16>
    %c0_50 = arith.constant 0 : index
    %c0_51 = arith.constant 0 : index
    %c0_52 = arith.constant 0 : index
    %95 = vector.load %arg11[%c0_50, %c0_51, %c0_52] : memref<2x64x32xbf16, #tpu.memory_space<vmem>>, vector<1x64x32xbf16>
    %96 = vector.shape_cast %95 : vector<1x64x32xbf16> to vector<64x32xbf16>
    %cst_53 = arith.constant dense<0.000000e+00> : vector<16x32xf32>
    %97 = tpu.matmul %94, %96, %cst_53 {dimension_numbers = #tpu.dot_dimension_numbers<[1], [0], [0], [1], [0, 0, 1, 1], [], []>} : vector<16x64xbf16>, vector<64x32xbf16>, vector<16x32xf32> -> vector<16x32xf32>
    %c0_54 = arith.constant 0 : index
    %c0_55 = arith.constant 0 : index
    %c0_56 = arith.constant 0 : index
    %98 = vector.load %arg12[%c0_54, %c0_55, %c0_56] : memref<2x1x32xf32, #tpu.memory_space<vmem>>, vector<1x1x32xf32>
    %99 = vector.shape_cast %98 : vector<1x1x32xf32> to vector<1x32xf32>
    %100 = vector.broadcast %99 : vector<1x32xf32> to vector<16x32xf32>
    %101 = arith.addf %97, %100 : vector<16x32xf32>
    %102 = arith.addf %101, %44 : vector<16x32xf32>
    %cst_57 = arith.constant dense<0.000000e+00> : vector<16xf32>
    %103 = vector.multi_reduction <add>, %102, %cst_57 [1] : vector<16x32xf32> to vector<16xf32>
    %104 = vector.shape_cast %103 : vector<16xf32> to vector<16x1xf32>
    %cst_58 = arith.constant 3.200000e+01 : f32
    %105 = vector.broadcast %cst_58 : f32 to vector<16x1xf32>
    %106 = arith.divf %104, %105 : vector<16x1xf32>
    %107 = vector.broadcast %106 : vector<16x1xf32> to vector<16x32xf32>
    %108 = arith.subf %102, %107 : vector<16x32xf32>
    %109 = arith.mulf %108, %108 : vector<16x32xf32>
    %cst_59 = arith.constant dense<0.000000e+00> : vector<16xf32>
    %110 = vector.multi_reduction <add>, %109, %cst_59 [1] : vector<16x32xf32> to vector<16xf32>
    %111 = vector.shape_cast %110 : vector<16xf32> to vector<16x1xf32>
    %cst_60 = arith.constant 3.200000e+01 : f32
    %112 = vector.broadcast %cst_60 : f32 to vector<16x1xf32>
    %113 = arith.divf %111, %112 : vector<16x1xf32>
    %114 = vector.broadcast %106 : vector<16x1xf32> to vector<16x32xf32>
    %115 = arith.subf %102, %114 : vector<16x32xf32>
    %cst_61 = arith.constant 9.99999974E-6 : f32
    %116 = vector.broadcast %cst_61 : f32 to vector<16x1xf32>
    %117 = arith.addf %113, %116 : vector<16x1xf32>
    %118 = math.rsqrt %117 : vector<16x1xf32>
    %119 = vector.broadcast %118 : vector<16x1xf32> to vector<16x32xf32>
    %120 = arith.mulf %115, %119 : vector<16x32xf32>
    %c0_62 = arith.constant 0 : index
    %c0_63 = arith.constant 0 : index
    %c0_64 = arith.constant 0 : index
    %121 = vector.load %arg13[%c0_62, %c0_63, %c0_64] : memref<2x1x32xf32, #tpu.memory_space<vmem>>, vector<1x1x32xf32>
    %122 = vector.shape_cast %121 : vector<1x1x32xf32> to vector<1x32xf32>
    %123 = vector.broadcast %122 : vector<1x32xf32> to vector<16x32xf32>
    %124 = arith.mulf %120, %123 : vector<16x32xf32>
    %c0_65 = arith.constant 0 : index
    %c0_66 = arith.constant 0 : index
    %c0_67 = arith.constant 0 : index
    %125 = vector.load %arg14[%c0_65, %c0_66, %c0_67] : memref<2x1x32xf32, #tpu.memory_space<vmem>>, vector<1x1x32xf32>
    %126 = vector.shape_cast %125 : vector<1x1x32xf32> to vector<1x32xf32>
    %127 = vector.broadcast %126 : vector<1x32xf32> to vector<16x32xf32>
    %128 = arith.addf %124, %127 : vector<16x32xf32>
    %129 = arith.truncf %128 : vector<16x32xf32> to vector<16x32xbf16>
    %cst_68 = arith.constant dense<0.000000e+00> : vector<16x32xf32>
    %130 = tpu.matmul %4, %129, %cst_68 {dimension_numbers = #tpu.dot_dimension_numbers<[1], [0], [0], [1], [0, 0, 1, 1], [], []>} : vector<16x16xbf16>, vector<16x32xbf16>, vector<16x32xf32> -> vector<16x32xf32>
    %cst_69 = arith.constant dense<0.000000e+00> : vector<16x32xf32>
    %131 = tpu.matmul %5, %129, %cst_69 {dimension_numbers = #tpu.dot_dimension_numbers<[1], [0], [0], [1], [0, 0, 1, 1], [], []>} : vector<16x16xbf16>, vector<16x32xbf16>, vector<16x32xf32> -> vector<16x32xf32>
    %132 = arith.truncf %130 : vector<16x32xf32> to vector<16x32xbf16>
    %cst_70 = arith.constant dense<0.000000e+00> : vector<16x32xf32>
    %133 = tpu.matmul %132, %6, %cst_70 {dimension_numbers = #tpu.dot_dimension_numbers<[1], [0], [0], [1], [0, 0, 1, 1], [], []>} : vector<16x32xbf16>, vector<32x32xbf16>, vector<16x32xf32> -> vector<16x32xf32>
    %134 = arith.truncf %131 : vector<16x32xf32> to vector<16x32xbf16>
    %cst_71 = arith.constant dense<0.000000e+00> : vector<16x32xf32>
    %135 = tpu.matmul %134, %7, %cst_71 {dimension_numbers = #tpu.dot_dimension_numbers<[1], [0], [0], [1], [0, 0, 1, 1], [], []>} : vector<16x32xbf16>, vector<32x32xbf16>, vector<16x32xf32> -> vector<16x32xf32>
    %136 = arith.subf %133, %135 : vector<16x32xf32>
    %137 = vector.broadcast %3 : vector<16x1xf32> to vector<16x32xf32>
    %138 = arith.mulf %136, %137 : vector<16x32xf32>
    %139 = arith.addf %138, %128 : vector<16x32xf32>
    %cst_72 = arith.constant dense<0.000000e+00> : vector<16xf32>
    %140 = vector.multi_reduction <add>, %139, %cst_72 [1] : vector<16x32xf32> to vector<16xf32>
    %141 = vector.shape_cast %140 : vector<16xf32> to vector<16x1xf32>
    %cst_73 = arith.constant 3.200000e+01 : f32
    %142 = vector.broadcast %cst_73 : f32 to vector<16x1xf32>
    %143 = arith.divf %141, %142 : vector<16x1xf32>
    %144 = vector.broadcast %143 : vector<16x1xf32> to vector<16x32xf32>
    %145 = arith.subf %139, %144 : vector<16x32xf32>
    %146 = arith.mulf %145, %145 : vector<16x32xf32>
    %cst_74 = arith.constant dense<0.000000e+00> : vector<16xf32>
    %147 = vector.multi_reduction <add>, %146, %cst_74 [1] : vector<16x32xf32> to vector<16xf32>
    %148 = vector.shape_cast %147 : vector<16xf32> to vector<16x1xf32>
    %cst_75 = arith.constant 3.200000e+01 : f32
    %149 = vector.broadcast %cst_75 : f32 to vector<16x1xf32>
    %150 = arith.divf %148, %149 : vector<16x1xf32>
    %151 = vector.broadcast %143 : vector<16x1xf32> to vector<16x32xf32>
    %152 = arith.subf %139, %151 : vector<16x32xf32>
    %cst_76 = arith.constant 9.99999974E-6 : f32
    %153 = vector.broadcast %cst_76 : f32 to vector<16x1xf32>
    %154 = arith.addf %150, %153 : vector<16x1xf32>
    %155 = math.rsqrt %154 : vector<16x1xf32>
    %156 = vector.broadcast %155 : vector<16x1xf32> to vector<16x32xf32>
    %157 = arith.mulf %152, %156 : vector<16x32xf32>
    %c1 = arith.constant 1 : index
    %c0_77 = arith.constant 0 : index
    %c0_78 = arith.constant 0 : index
    %158 = vector.load %arg7[%c1, %c0_77, %c0_78] : memref<2x1x32xf32, #tpu.memory_space<vmem>>, vector<1x1x32xf32>
    %159 = vector.shape_cast %158 : vector<1x1x32xf32> to vector<1x32xf32>
    %160 = vector.broadcast %159 : vector<1x32xf32> to vector<16x32xf32>
    %161 = arith.mulf %157, %160 : vector<16x32xf32>
    %c1_79 = arith.constant 1 : index
    %c0_80 = arith.constant 0 : index
    %c0_81 = arith.constant 0 : index
    %162 = vector.load %arg8[%c1_79, %c0_80, %c0_81] : memref<2x1x32xf32, #tpu.memory_space<vmem>>, vector<1x1x32xf32>
    %163 = vector.shape_cast %162 : vector<1x1x32xf32> to vector<1x32xf32>
    %164 = vector.broadcast %163 : vector<1x32xf32> to vector<16x32xf32>
    %165 = arith.addf %161, %164 : vector<16x32xf32>
    %166 = arith.truncf %165 : vector<16x32xf32> to vector<16x32xbf16>
    %c1_82 = arith.constant 1 : index
    %c0_83 = arith.constant 0 : index
    %c0_84 = arith.constant 0 : index
    %167 = vector.load %arg9[%c1_82, %c0_83, %c0_84] : memref<2x32x64xbf16, #tpu.memory_space<vmem>>, vector<1x32x64xbf16>
    %168 = vector.shape_cast %167 : vector<1x32x64xbf16> to vector<32x64xbf16>
    %cst_85 = arith.constant dense<0.000000e+00> : vector<16x64xf32>
    %169 = tpu.matmul %166, %168, %cst_85 {dimension_numbers = #tpu.dot_dimension_numbers<[1], [0], [0], [1], [0, 0, 1, 1], [], []>} : vector<16x32xbf16>, vector<32x64xbf16>, vector<16x64xf32> -> vector<16x64xf32>
    %c1_86 = arith.constant 1 : index
    %c0_87 = arith.constant 0 : index
    %c0_88 = arith.constant 0 : index
    %170 = vector.load %arg10[%c1_86, %c0_87, %c0_88] : memref<2x1x64xf32, #tpu.memory_space<vmem>>, vector<1x1x64xf32>
    %171 = vector.shape_cast %170 : vector<1x1x64xf32> to vector<1x64xf32>
    %172 = vector.broadcast %171 : vector<1x64xf32> to vector<16x64xf32>
    %173 = arith.addf %169, %172 : vector<16x64xf32>
    %cst_89 = arith.constant 5.000000e-01 : f32
    %174 = vector.broadcast %cst_89 : f32 to vector<16x64xf32>
    %175 = arith.mulf %174, %173 : vector<16x64xf32>
    %cst_90 = arith.constant 0.707106769 : f32
    %176 = vector.broadcast %cst_90 : f32 to vector<16x64xf32>
    %177 = arith.mulf %173, %176 : vector<16x64xf32>
    %cst_91 = arith.constant 0.000000e+00 : f32
    %178 = vector.broadcast %cst_91 : f32 to vector<16x64xf32>
    %179 = arith.cmpf oge, %177, %178 : vector<16x64xf32>
    %cst_92 = arith.constant 1.000000e+00 : f32
    %cst_93 = arith.constant -1.000000e+00 : f32
    %180 = vector.broadcast %cst_92 : f32 to vector<16x64xf32>
    %181 = vector.broadcast %cst_93 : f32 to vector<16x64xf32>
    %182 = arith.select %179, %180, %181 : vector<16x64xi1>, vector<16x64xf32>
    %183 = math.absf %177 : vector<16x64xf32>
    %cst_94 = arith.constant 0.327591091 : f32
    %184 = vector.broadcast %cst_94 : f32 to vector<16x64xf32>
    %185 = arith.mulf %184, %183 : vector<16x64xf32>
    %cst_95 = arith.constant 1.000000e+00 : f32
    %186 = vector.broadcast %cst_95 : f32 to vector<16x64xf32>
    %187 = arith.addf %186, %185 : vector<16x64xf32>
    %cst_96 = arith.constant 1.000000e+00 : f32
    %188 = vector.broadcast %cst_96 : f32 to vector<16x64xf32>
    %189 = arith.divf %188, %187 : vector<16x64xf32>
    %cst_97 = arith.constant 1.06140542 : f32
    %190 = vector.broadcast %cst_97 : f32 to vector<16x64xf32>
    %191 = arith.mulf %190, %189 : vector<16x64xf32>
    %cst_98 = arith.constant -1.45315206 : f32
    %192 = vector.broadcast %cst_98 : f32 to vector<16x64xf32>
    %193 = arith.addf %191, %192 : vector<16x64xf32>
    %194 = arith.mulf %193, %189 : vector<16x64xf32>
    %cst_99 = arith.constant 1.42141378 : f32
    %195 = vector.broadcast %cst_99 : f32 to vector<16x64xf32>
    %196 = arith.addf %194, %195 : vector<16x64xf32>
    %197 = arith.mulf %196, %189 : vector<16x64xf32>
    %cst_100 = arith.constant -0.284496725 : f32
    %198 = vector.broadcast %cst_100 : f32 to vector<16x64xf32>
    %199 = arith.addf %197, %198 : vector<16x64xf32>
    %200 = arith.mulf %199, %189 : vector<16x64xf32>
    %cst_101 = arith.constant 0.254829586 : f32
    %201 = vector.broadcast %cst_101 : f32 to vector<16x64xf32>
    %202 = arith.addf %200, %201 : vector<16x64xf32>
    %203 = arith.mulf %202, %189 : vector<16x64xf32>
    %cst_102 = arith.constant 0.000000e+00 : f32
    %204 = vector.broadcast %cst_102 : f32 to vector<16x64xf32>
    %205 = arith.subf %204, %183 : vector<16x64xf32>
    %206 = arith.mulf %205, %183 : vector<16x64xf32>
    %207 = math.exp %206 : vector<16x64xf32>
    %208 = arith.mulf %203, %207 : vector<16x64xf32>
    %cst_103 = arith.constant 1.000000e+00 : f32
    %209 = vector.broadcast %cst_103 : f32 to vector<16x64xf32>
    %210 = arith.subf %209, %208 : vector<16x64xf32>
    %211 = arith.mulf %182, %210 : vector<16x64xf32>
    %cst_104 = arith.constant 1.000000e+00 : f32
    %212 = vector.broadcast %cst_104 : f32 to vector<16x64xf32>
    %213 = arith.addf %212, %211 : vector<16x64xf32>
    %214 = arith.mulf %175, %213 : vector<16x64xf32>
    %215 = arith.truncf %214 : vector<16x64xf32> to vector<16x64xbf16>
    %c1_105 = arith.constant 1 : index
    %c0_106 = arith.constant 0 : index
    %c0_107 = arith.constant 0 : index
    %216 = vector.load %arg11[%c1_105, %c0_106, %c0_107] : memref<2x64x32xbf16, #tpu.memory_space<vmem>>, vector<1x64x32xbf16>
    %217 = vector.shape_cast %216 : vector<1x64x32xbf16> to vector<64x32xbf16>
    %cst_108 = arith.constant dense<0.000000e+00> : vector<16x32xf32>
    %218 = tpu.matmul %215, %217, %cst_108 {dimension_numbers = #tpu.dot_dimension_numbers<[1], [0], [0], [1], [0, 0, 1, 1], [], []>} : vector<16x64xbf16>, vector<64x32xbf16>, vector<16x32xf32> -> vector<16x32xf32>
    %c1_109 = arith.constant 1 : index
    %c0_110 = arith.constant 0 : index
    %c0_111 = arith.constant 0 : index
    %219 = vector.load %arg12[%c1_109, %c0_110, %c0_111] : memref<2x1x32xf32, #tpu.memory_space<vmem>>, vector<1x1x32xf32>
    %220 = vector.shape_cast %219 : vector<1x1x32xf32> to vector<1x32xf32>
    %221 = vector.broadcast %220 : vector<1x32xf32> to vector<16x32xf32>
    %222 = arith.addf %218, %221 : vector<16x32xf32>
    %223 = arith.addf %222, %165 : vector<16x32xf32>
    %cst_112 = arith.constant dense<0.000000e+00> : vector<16xf32>
    %224 = vector.multi_reduction <add>, %223, %cst_112 [1] : vector<16x32xf32> to vector<16xf32>
    %225 = vector.shape_cast %224 : vector<16xf32> to vector<16x1xf32>
    %cst_113 = arith.constant 3.200000e+01 : f32
    %226 = vector.broadcast %cst_113 : f32 to vector<16x1xf32>
    %227 = arith.divf %225, %226 : vector<16x1xf32>
    %228 = vector.broadcast %227 : vector<16x1xf32> to vector<16x32xf32>
    %229 = arith.subf %223, %228 : vector<16x32xf32>
    %230 = arith.mulf %229, %229 : vector<16x32xf32>
    %cst_114 = arith.constant dense<0.000000e+00> : vector<16xf32>
    %231 = vector.multi_reduction <add>, %230, %cst_114 [1] : vector<16x32xf32> to vector<16xf32>
    %232 = vector.shape_cast %231 : vector<16xf32> to vector<16x1xf32>
    %cst_115 = arith.constant 3.200000e+01 : f32
    %233 = vector.broadcast %cst_115 : f32 to vector<16x1xf32>
    %234 = arith.divf %232, %233 : vector<16x1xf32>
    %235 = vector.broadcast %227 : vector<16x1xf32> to vector<16x32xf32>
    %236 = arith.subf %223, %235 : vector<16x32xf32>
    %cst_116 = arith.constant 9.99999974E-6 : f32
    %237 = vector.broadcast %cst_116 : f32 to vector<16x1xf32>
    %238 = arith.addf %234, %237 : vector<16x1xf32>
    %239 = math.rsqrt %238 : vector<16x1xf32>
    %240 = vector.broadcast %239 : vector<16x1xf32> to vector<16x32xf32>
    %241 = arith.mulf %236, %240 : vector<16x32xf32>
    %c1_117 = arith.constant 1 : index
    %c0_118 = arith.constant 0 : index
    %c0_119 = arith.constant 0 : index
    %242 = vector.load %arg13[%c1_117, %c0_118, %c0_119] : memref<2x1x32xf32, #tpu.memory_space<vmem>>, vector<1x1x32xf32>
    %243 = vector.shape_cast %242 : vector<1x1x32xf32> to vector<1x32xf32>
    %244 = vector.broadcast %243 : vector<1x32xf32> to vector<16x32xf32>
    %245 = arith.mulf %241, %244 : vector<16x32xf32>
    %c1_120 = arith.constant 1 : index
    %c0_121 = arith.constant 0 : index
    %c0_122 = arith.constant 0 : index
    %246 = vector.load %arg14[%c1_120, %c0_121, %c0_122] : memref<2x1x32xf32, #tpu.memory_space<vmem>>, vector<1x1x32xf32>
    %247 = vector.shape_cast %246 : vector<1x1x32xf32> to vector<1x32xf32>
    %248 = vector.broadcast %247 : vector<1x32xf32> to vector<16x32xf32>
    %249 = arith.addf %245, %248 : vector<16x32xf32>
    %c0_123 = arith.constant 0 : index
    %c0_124 = arith.constant 0 : index
    %c0_125 = arith.constant 0 : index
    %250 = vector.load %arg15[%c0_123, %c0_124, %c0_125] : memref<1x16x32xf32, #tpu.memory_space<vmem>>, vector<1x16x32xf32>
    %251 = vector.shape_cast %250 : vector<1x16x32xf32> to vector<16x32xf32>
    %252 = vector.shape_cast %249 : vector<16x32xf32> to vector<1x16x32xf32>
    tpu.vector_store %arg15[%c0_123, %c0_124, %c0_125], %252 {strides = array<i32>} : memref<1x16x32xf32, #tpu.memory_space<vmem>>, vector<1x16x32xf32>,
    return
  }
  func.func @transform_0(%arg0: i32) -> (i32, i32, i32) {
    %c0_i32 = arith.constant 0 : i32
    %c0_i32_0 = arith.constant 0 : i32
    %c0_i32_1 = arith.constant 0 : i32
    return %arg0, %c0_i32, %c0_i32_0 : i32, i32, i32
  }
  func.func @transform_1(%arg0: i32) -> (i32, i32, i32) {
    %c0_i32 = arith.constant 0 : i32
    %c0_i32_0 = arith.constant 0 : i32
    %c0_i32_1 = arith.constant 0 : i32
    return %arg0, %c0_i32, %c0_i32_0 : i32, i32, i32
  }
  func.func @transform_2(%arg0: i32) -> (i32, i32) {
    %c0_i32 = arith.constant 0 : i32
    %c0_i32_0 = arith.constant 0 : i32
    %c0_i32_1 = arith.constant 0 : i32
    return %c0_i32, %c0_i32_0 : i32, i32
  }
  func.func @transform_3(%arg0: i32) -> (i32, i32) {
    %c0_i32 = arith.constant 0 : i32
    %c0_i32_0 = arith.constant 0 : i32
    %c0_i32_1 = arith.constant 0 : i32
    return %c0_i32, %c0_i32_0 : i32, i32
  }
  func.func @transform_4(%arg0: i32) -> (i32, i32) {
    %c0_i32 = arith.constant 0 : i32
    %c0_i32_0 = arith.constant 0 : i32
    %c0_i32_1 = arith.constant 0 : i32
    return %c0_i32, %c0_i32_0 : i32, i32
  }
  func.func @transform_5(%arg0: i32) -> (i32, i32) {
    %c0_i32 = arith.constant 0 : i32
    %c0_i32_0 = arith.constant 0 : i32
    %c0_i32_1 = arith.constant 0 : i32
    return %c0_i32, %c0_i32_0 : i32, i32
  }
  func.func @transform_6(%arg0: i32) -> (i32, i32, i32) {
    %c0_i32 = arith.constant 0 : i32
    %c0_i32_0 = arith.constant 0 : i32
    %c0_i32_1 = arith.constant 0 : i32
    %c0_i32_2 = arith.constant 0 : i32
    return %c0_i32, %c0_i32_0, %c0_i32_1 : i32, i32, i32
  }
  func.func @transform_7(%arg0: i32) -> (i32, i32, i32) {
    %c0_i32 = arith.constant 0 : i32
    %c0_i32_0 = arith.constant 0 : i32
    %c0_i32_1 = arith.constant 0 : i32
    %c0_i32_2 = arith.constant 0 : i32
    return %c0_i32, %c0_i32_0, %c0_i32_1 : i32, i32, i32
  }
  func.func @transform_8(%arg0: i32) -> (i32, i32, i32) {
    %c0_i32 = arith.constant 0 : i32
    %c0_i32_0 = arith.constant 0 : i32
    %c0_i32_1 = arith.constant 0 : i32
    %c0_i32_2 = arith.constant 0 : i32
    return %c0_i32, %c0_i32_0, %c0_i32_1 : i32, i32, i32
  }
  func.func @transform_9(%arg0: i32) -> (i32, i32, i32) {
    %c0_i32 = arith.constant 0 : i32
    %c0_i32_0 = arith.constant 0 : i32
    %c0_i32_1 = arith.constant 0 : i32
    %c0_i32_2 = arith.constant 0 : i32
    return %c0_i32, %c0_i32_0, %c0_i32_1 : i32, i32, i32
  }
  func.func @transform_10(%arg0: i32) -> (i32, i32, i32) {
    %c0_i32 = arith.constant 0 : i32
    %c0_i32_0 = arith.constant 0 : i32
    %c0_i32_1 = arith.constant 0 : i32
    %c0_i32_2 = arith.constant 0 : i32
    return %c0_i32, %c0_i32_0, %c0_i32_1 : i32, i32, i32
  }
  func.func @transform_11(%arg0: i32) -> (i32, i32, i32) {
    %c0_i32 = arith.constant 0 : i32
    %c0_i32_0 = arith.constant 0 : i32
    %c0_i32_1 = arith.constant 0 : i32
    %c0_i32_2 = arith.constant 0 : i32
    return %c0_i32, %c0_i32_0, %c0_i32_1 : i32, i32, i32
  }
  func.func @transform_12(%arg0: i32) -> (i32, i32, i32) {
    %c0_i32 = arith.constant 0 : i32
    %c0_i32_0 = arith.constant 0 : i32
    %c0_i32_1 = arith.constant 0 : i32
    %c0_i32_2 = arith.constant 0 : i32
    return %c0_i32, %c0_i32_0, %c0_i32_1 : i32, i32, i32
  }
  func.func @transform_13(%arg0: i32) -> (i32, i32, i32) {
    %c0_i32 = arith.constant 0 : i32
    %c0_i32_0 = arith.constant 0 : i32
    %c0_i32_1 = arith.constant 0 : i32
    %c0_i32_2 = arith.constant 0 : i32
    return %c0_i32, %c0_i32_0, %c0_i32_1 : i32, i32, i32
  }
  func.func @transform_14(%arg0: i32) -> (i32, i32, i32) {
    %c0_i32 = arith.constant 0 : i32
    %c0_i32_0 = arith.constant 0 : i32
    %c0_i32_1 = arith.constant 0 : i32
    return %arg0, %c0_i32, %c0_i32_0 : i32, i32, i32
  }
}

module attributes {stable_mosaic.version = 11 : i64} {
  func.func @_fnet_stack_kernel(%arg0: i32, %arg1: memref<1x8x32xf32, #tpu.memory_space<vmem>>, %arg2: memref<1x8x1xf32, #tpu.memory_space<vmem>>, %arg3: memref<8x8xbf16, #tpu.memory_space<vmem>>, %arg4: memref<8x8xbf16, #tpu.memory_space<vmem>>, %arg5: memref<32x32xbf16, #tpu.memory_space<vmem>>, %arg6: memref<32x32xbf16, #tpu.memory_space<vmem>>, %arg7: memref<2x1x32xf32, #tpu.memory_space<vmem>>, %arg8: memref<2x1x32xf32, #tpu.memory_space<vmem>>, %arg9: memref<2x32x64xbf16, #tpu.memory_space<vmem>>, %arg10: memref<2x1x64xf32, #tpu.memory_space<vmem>>, %arg11: memref<2x64x32xbf16, #tpu.memory_space<vmem>>, %arg12: memref<2x1x32xf32, #tpu.memory_space<vmem>>, %arg13: memref<2x1x32xf32, #tpu.memory_space<vmem>>, %arg14: memref<2x1x32xf32, #tpu.memory_space<vmem>>, %arg15: memref<1x8x32xf32, #tpu.memory_space<vmem>>) attributes {dimension_semantics = [#tpu.dimension_semantics<parallel>], iteration_bounds = array<i64: 2>, scalar_prefetch = 0 : i64, scratch_operands = 0 : i64, tpu.core_type = #tpu.core_type<tc>, window_params = [{transform_indices = @transform_0, window_bounds = array<i64: 1, 8, 32>}, {transform_indices = @transform_1, window_bounds = array<i64: 1, 8, 1>}, {pipeline_mode = #tpu.pipeline_mode<synchronous>, transform_indices = @transform_2, window_bounds = array<i64: 8, 8>}, {pipeline_mode = #tpu.pipeline_mode<synchronous>, transform_indices = @transform_3, window_bounds = array<i64: 8, 8>}, {pipeline_mode = #tpu.pipeline_mode<synchronous>, transform_indices = @transform_4, window_bounds = array<i64: 32, 32>}, {pipeline_mode = #tpu.pipeline_mode<synchronous>, transform_indices = @transform_5, window_bounds = array<i64: 32, 32>}, {pipeline_mode = #tpu.pipeline_mode<synchronous>, transform_indices = @transform_6, window_bounds = array<i64: 2, 1, 32>}, {pipeline_mode = #tpu.pipeline_mode<synchronous>, transform_indices = @transform_7, window_bounds = array<i64: 2, 1, 32>}, {pipeline_mode = #tpu.pipeline_mode<synchronous>, transform_indices = @transform_8, window_bounds = array<i64: 2, 32, 64>}, {pipeline_mode = #tpu.pipeline_mode<synchronous>, transform_indices = @transform_9, window_bounds = array<i64: 2, 1, 64>}, {pipeline_mode = #tpu.pipeline_mode<synchronous>, transform_indices = @transform_10, window_bounds = array<i64: 2, 64, 32>}, {pipeline_mode = #tpu.pipeline_mode<synchronous>, transform_indices = @transform_11, window_bounds = array<i64: 2, 1, 32>}, {pipeline_mode = #tpu.pipeline_mode<synchronous>, transform_indices = @transform_12, window_bounds = array<i64: 2, 1, 32>}, {pipeline_mode = #tpu.pipeline_mode<synchronous>, transform_indices = @transform_13, window_bounds = array<i64: 2, 1, 32>}, {transform_indices = @transform_14, window_bounds = array<i64: 1, 8, 32>}]} {
    %c0 = arith.constant 0 : index
    %c0_0 = arith.constant 0 : index
    %c0_1 = arith.constant 0 : index
    %0 = vector.load %arg1[%c0, %c0_0, %c0_1] : memref<1x8x32xf32, #tpu.memory_space<vmem>>, vector<1x8x32xf32>
    %1 = vector.shape_cast %0 : vector<1x8x32xf32> to vector<8x32xf32>
    %c0_2 = arith.constant 0 : index
    %c0_3 = arith.constant 0 : index
    %c0_4 = arith.constant 0 : index
    %2 = vector.load %arg2[%c0_2, %c0_3, %c0_4] : memref<1x8x1xf32, #tpu.memory_space<vmem>>, vector<1x8x1xf32>
    %3 = vector.shape_cast %2 : vector<1x8x1xf32> to vector<8x1xf32>
    %c0_5 = arith.constant 0 : index
    %c0_6 = arith.constant 0 : index
    %4 = vector.load %arg3[%c0_5, %c0_6] : memref<8x8xbf16, #tpu.memory_space<vmem>>, vector<8x8xbf16>
    %c0_7 = arith.constant 0 : index
    %c0_8 = arith.constant 0 : index
    %5 = vector.load %arg4[%c0_7, %c0_8] : memref<8x8xbf16, #tpu.memory_space<vmem>>, vector<8x8xbf16>
    %c0_9 = arith.constant 0 : index
    %c0_10 = arith.constant 0 : index
    %6 = vector.load %arg5[%c0_9, %c0_10] : memref<32x32xbf16, #tpu.memory_space<vmem>>, vector<32x32xbf16>
    %c0_11 = arith.constant 0 : index
    %c0_12 = arith.constant 0 : index
    %7 = vector.load %arg6[%c0_11, %c0_12] : memref<32x32xbf16, #tpu.memory_space<vmem>>, vector<32x32xbf16>
    %8 = arith.truncf %1 : vector<8x32xf32> to vector<8x32xbf16>
    %cst = arith.constant dense<0.000000e+00> : vector<8x32xf32>
    %9 = tpu.matmul %4, %8, %cst {dimension_numbers = #tpu.dot_dimension_numbers<[1], [0], [0], [1], [0, 0, 1, 1], [], []>} : vector<8x8xbf16>, vector<8x32xbf16>, vector<8x32xf32> -> vector<8x32xf32>
    %cst_13 = arith.constant dense<0.000000e+00> : vector<8x32xf32>
    %10 = tpu.matmul %5, %8, %cst_13 {dimension_numbers = #tpu.dot_dimension_numbers<[1], [0], [0], [1], [0, 0, 1, 1], [], []>} : vector<8x8xbf16>, vector<8x32xbf16>, vector<8x32xf32> -> vector<8x32xf32>
    %11 = arith.truncf %9 : vector<8x32xf32> to vector<8x32xbf16>
    %cst_14 = arith.constant dense<0.000000e+00> : vector<8x32xf32>
    %12 = tpu.matmul %11, %6, %cst_14 {dimension_numbers = #tpu.dot_dimension_numbers<[1], [0], [0], [1], [0, 0, 1, 1], [], []>} : vector<8x32xbf16>, vector<32x32xbf16>, vector<8x32xf32> -> vector<8x32xf32>
    %13 = arith.truncf %10 : vector<8x32xf32> to vector<8x32xbf16>
    %cst_15 = arith.constant dense<0.000000e+00> : vector<8x32xf32>
    %14 = tpu.matmul %13, %7, %cst_15 {dimension_numbers = #tpu.dot_dimension_numbers<[1], [0], [0], [1], [0, 0, 1, 1], [], []>} : vector<8x32xbf16>, vector<32x32xbf16>, vector<8x32xf32> -> vector<8x32xf32>
    %15 = arith.subf %12, %14 : vector<8x32xf32>
    %16 = vector.broadcast %3 : vector<8x1xf32> to vector<8x32xf32>
    %17 = arith.mulf %15, %16 : vector<8x32xf32>
    %18 = arith.addf %17, %1 : vector<8x32xf32>
    %cst_16 = arith.constant dense<0.000000e+00> : vector<8xf32>
    %19 = vector.multi_reduction <add>, %18, %cst_16 [1] : vector<8x32xf32> to vector<8xf32>
    %20 = vector.shape_cast %19 : vector<8xf32> to vector<8x1xf32>
    %cst_17 = arith.constant 3.200000e+01 : f32
    %21 = vector.broadcast %cst_17 : f32 to vector<8x1xf32>
    %22 = arith.divf %20, %21 : vector<8x1xf32>
    %23 = vector.broadcast %22 : vector<8x1xf32> to vector<8x32xf32>
    %24 = arith.subf %18, %23 : vector<8x32xf32>
    %25 = arith.mulf %24, %24 : vector<8x32xf32>
    %cst_18 = arith.constant dense<0.000000e+00> : vector<8xf32>
    %26 = vector.multi_reduction <add>, %25, %cst_18 [1] : vector<8x32xf32> to vector<8xf32>
    %27 = vector.shape_cast %26 : vector<8xf32> to vector<8x1xf32>
    %cst_19 = arith.constant 3.200000e+01 : f32
    %28 = vector.broadcast %cst_19 : f32 to vector<8x1xf32>
    %29 = arith.divf %27, %28 : vector<8x1xf32>
    %30 = vector.broadcast %22 : vector<8x1xf32> to vector<8x32xf32>
    %31 = arith.subf %18, %30 : vector<8x32xf32>
    %cst_20 = arith.constant 9.99999974E-6 : f32
    %32 = vector.broadcast %cst_20 : f32 to vector<8x1xf32>
    %33 = arith.addf %29, %32 : vector<8x1xf32>
    %34 = math.rsqrt %33 : vector<8x1xf32>
    %35 = vector.broadcast %34 : vector<8x1xf32> to vector<8x32xf32>
    %36 = arith.mulf %31, %35 : vector<8x32xf32>
    %c0_21 = arith.constant 0 : index
    %c0_22 = arith.constant 0 : index
    %c0_23 = arith.constant 0 : index
    %37 = vector.load %arg7[%c0_21, %c0_22, %c0_23] : memref<2x1x32xf32, #tpu.memory_space<vmem>>, vector<1x1x32xf32>
    %38 = vector.shape_cast %37 : vector<1x1x32xf32> to vector<1x32xf32>
    %39 = vector.broadcast %38 : vector<1x32xf32> to vector<8x32xf32>
    %40 = arith.mulf %36, %39 : vector<8x32xf32>
    %c0_24 = arith.constant 0 : index
    %c0_25 = arith.constant 0 : index
    %c0_26 = arith.constant 0 : index
    %41 = vector.load %arg8[%c0_24, %c0_25, %c0_26] : memref<2x1x32xf32, #tpu.memory_space<vmem>>, vector<1x1x32xf32>
    %42 = vector.shape_cast %41 : vector<1x1x32xf32> to vector<1x32xf32>
    %43 = vector.broadcast %42 : vector<1x32xf32> to vector<8x32xf32>
    %44 = arith.addf %40, %43 : vector<8x32xf32>
    %45 = arith.truncf %44 : vector<8x32xf32> to vector<8x32xbf16>
    %c0_27 = arith.constant 0 : index
    %c0_28 = arith.constant 0 : index
    %c0_29 = arith.constant 0 : index
    %46 = vector.load %arg9[%c0_27, %c0_28, %c0_29] : memref<2x32x64xbf16, #tpu.memory_space<vmem>>, vector<1x32x64xbf16>
    %47 = vector.shape_cast %46 : vector<1x32x64xbf16> to vector<32x64xbf16>
    %cst_30 = arith.constant dense<0.000000e+00> : vector<8x64xf32>
    %48 = tpu.matmul %45, %47, %cst_30 {dimension_numbers = #tpu.dot_dimension_numbers<[1], [0], [0], [1], [0, 0, 1, 1], [], []>} : vector<8x32xbf16>, vector<32x64xbf16>, vector<8x64xf32> -> vector<8x64xf32>
    %c0_31 = arith.constant 0 : index
    %c0_32 = arith.constant 0 : index
    %c0_33 = arith.constant 0 : index
    %49 = vector.load %arg10[%c0_31, %c0_32, %c0_33] : memref<2x1x64xf32, #tpu.memory_space<vmem>>, vector<1x1x64xf32>
    %50 = vector.shape_cast %49 : vector<1x1x64xf32> to vector<1x64xf32>
    %51 = vector.broadcast %50 : vector<1x64xf32> to vector<8x64xf32>
    %52 = arith.addf %48, %51 : vector<8x64xf32>
    %cst_34 = arith.constant 5.000000e-01 : f32
    %53 = vector.broadcast %cst_34 : f32 to vector<8x64xf32>
    %54 = arith.mulf %53, %52 : vector<8x64xf32>
    %cst_35 = arith.constant 0.707106769 : f32
    %55 = vector.broadcast %cst_35 : f32 to vector<8x64xf32>
    %56 = arith.mulf %52, %55 : vector<8x64xf32>
    %cst_36 = arith.constant 0.000000e+00 : f32
    %57 = vector.broadcast %cst_36 : f32 to vector<8x64xf32>
    %58 = arith.cmpf oge, %56, %57 : vector<8x64xf32>
    %cst_37 = arith.constant 1.000000e+00 : f32
    %cst_38 = arith.constant -1.000000e+00 : f32
    %59 = vector.broadcast %cst_37 : f32 to vector<8x64xf32>
    %60 = vector.broadcast %cst_38 : f32 to vector<8x64xf32>
    %61 = arith.select %58, %59, %60 : vector<8x64xi1>, vector<8x64xf32>
    %62 = math.absf %56 : vector<8x64xf32>
    %cst_39 = arith.constant 0.327591091 : f32
    %63 = vector.broadcast %cst_39 : f32 to vector<8x64xf32>
    %64 = arith.mulf %63, %62 : vector<8x64xf32>
    %cst_40 = arith.constant 1.000000e+00 : f32
    %65 = vector.broadcast %cst_40 : f32 to vector<8x64xf32>
    %66 = arith.addf %65, %64 : vector<8x64xf32>
    %cst_41 = arith.constant 1.000000e+00 : f32
    %67 = vector.broadcast %cst_41 : f32 to vector<8x64xf32>
    %68 = arith.divf %67, %66 : vector<8x64xf32>
    %cst_42 = arith.constant 1.06140542 : f32
    %69 = vector.broadcast %cst_42 : f32 to vector<8x64xf32>
    %70 = arith.mulf %69, %68 : vector<8x64xf32>
    %cst_43 = arith.constant -1.45315206 : f32
    %71 = vector.broadcast %cst_43 : f32 to vector<8x64xf32>
    %72 = arith.addf %70, %71 : vector<8x64xf32>
    %73 = arith.mulf %72, %68 : vector<8x64xf32>
    %cst_44 = arith.constant 1.42141378 : f32
    %74 = vector.broadcast %cst_44 : f32 to vector<8x64xf32>
    %75 = arith.addf %73, %74 : vector<8x64xf32>
    %76 = arith.mulf %75, %68 : vector<8x64xf32>
    %cst_45 = arith.constant -0.284496725 : f32
    %77 = vector.broadcast %cst_45 : f32 to vector<8x64xf32>
    %78 = arith.addf %76, %77 : vector<8x64xf32>
    %79 = arith.mulf %78, %68 : vector<8x64xf32>
    %cst_46 = arith.constant 0.254829586 : f32
    %80 = vector.broadcast %cst_46 : f32 to vector<8x64xf32>
    %81 = arith.addf %79, %80 : vector<8x64xf32>
    %82 = arith.mulf %81, %68 : vector<8x64xf32>
    %cst_47 = arith.constant 0.000000e+00 : f32
    %83 = vector.broadcast %cst_47 : f32 to vector<8x64xf32>
    %84 = arith.subf %83, %62 : vector<8x64xf32>
    %85 = arith.mulf %84, %62 : vector<8x64xf32>
    %86 = math.exp %85 : vector<8x64xf32>
    %87 = arith.mulf %82, %86 : vector<8x64xf32>
    %cst_48 = arith.constant 1.000000e+00 : f32
    %88 = vector.broadcast %cst_48 : f32 to vector<8x64xf32>
    %89 = arith.subf %88, %87 : vector<8x64xf32>
    %90 = arith.mulf %61, %89 : vector<8x64xf32>
    %cst_49 = arith.constant 1.000000e+00 : f32
    %91 = vector.broadcast %cst_49 : f32 to vector<8x64xf32>
    %92 = arith.addf %91, %90 : vector<8x64xf32>
    %93 = arith.mulf %54, %92 : vector<8x64xf32>
    %94 = arith.truncf %93 : vector<8x64xf32> to vector<8x64xbf16>
    %c0_50 = arith.constant 0 : index
    %c0_51 = arith.constant 0 : index
    %c0_52 = arith.constant 0 : index
    %95 = vector.load %arg11[%c0_50, %c0_51, %c0_52] : memref<2x64x32xbf16, #tpu.memory_space<vmem>>, vector<1x64x32xbf16>
    %96 = vector.shape_cast %95 : vector<1x64x32xbf16> to vector<64x32xbf16>
    %cst_53 = arith.constant dense<0.000000e+00> : vector<8x32xf32>
    %97 = tpu.matmul %94, %96, %cst_53 {dimension_numbers = #tpu.dot_dimension_numbers<[1], [0], [0], [1], [0, 0, 1, 1], [], []>} : vector<8x64xbf16>, vector<64x32xbf16>, vector<8x32xf32> -> vector<8x32xf32>
    %c0_54 = arith.constant 0 : index
    %c0_55 = arith.constant 0 : index
    %c0_56 = arith.constant 0 : index
    %98 = vector.load %arg12[%c0_54, %c0_55, %c0_56] : memref<2x1x32xf32, #tpu.memory_space<vmem>>, vector<1x1x32xf32>
    %99 = vector.shape_cast %98 : vector<1x1x32xf32> to vector<1x32xf32>
    %100 = vector.broadcast %99 : vector<1x32xf32> to vector<8x32xf32>
    %101 = arith.addf %97, %100 : vector<8x32xf32>
    %102 = arith.addf %101, %44 : vector<8x32xf32>
    %cst_57 = arith.constant dense<0.000000e+00> : vector<8xf32>
    %103 = vector.multi_reduction <add>, %102, %cst_57 [1] : vector<8x32xf32> to vector<8xf32>
    %104 = vector.shape_cast %103 : vector<8xf32> to vector<8x1xf32>
    %cst_58 = arith.constant 3.200000e+01 : f32
    %105 = vector.broadcast %cst_58 : f32 to vector<8x1xf32>
    %106 = arith.divf %104, %105 : vector<8x1xf32>
    %107 = vector.broadcast %106 : vector<8x1xf32> to vector<8x32xf32>
    %108 = arith.subf %102, %107 : vector<8x32xf32>
    %109 = arith.mulf %108, %108 : vector<8x32xf32>
    %cst_59 = arith.constant dense<0.000000e+00> : vector<8xf32>
    %110 = vector.multi_reduction <add>, %109, %cst_59 [1] : vector<8x32xf32> to vector<8xf32>
    %111 = vector.shape_cast %110 : vector<8xf32> to vector<8x1xf32>
    %cst_60 = arith.constant 3.200000e+01 : f32
    %112 = vector.broadcast %cst_60 : f32 to vector<8x1xf32>
    %113 = arith.divf %111, %112 : vector<8x1xf32>
    %114 = vector.broadcast %106 : vector<8x1xf32> to vector<8x32xf32>
    %115 = arith.subf %102, %114 : vector<8x32xf32>
    %cst_61 = arith.constant 9.99999974E-6 : f32
    %116 = vector.broadcast %cst_61 : f32 to vector<8x1xf32>
    %117 = arith.addf %113, %116 : vector<8x1xf32>
    %118 = math.rsqrt %117 : vector<8x1xf32>
    %119 = vector.broadcast %118 : vector<8x1xf32> to vector<8x32xf32>
    %120 = arith.mulf %115, %119 : vector<8x32xf32>
    %c0_62 = arith.constant 0 : index
    %c0_63 = arith.constant 0 : index
    %c0_64 = arith.constant 0 : index
    %121 = vector.load %arg13[%c0_62, %c0_63, %c0_64] : memref<2x1x32xf32, #tpu.memory_space<vmem>>, vector<1x1x32xf32>
    %122 = vector.shape_cast %121 : vector<1x1x32xf32> to vector<1x32xf32>
    %123 = vector.broadcast %122 : vector<1x32xf32> to vector<8x32xf32>
    %124 = arith.mulf %120, %123 : vector<8x32xf32>
    %c0_65 = arith.constant 0 : index
    %c0_66 = arith.constant 0 : index
    %c0_67 = arith.constant 0 : index
    %125 = vector.load %arg14[%c0_65, %c0_66, %c0_67] : memref<2x1x32xf32, #tpu.memory_space<vmem>>, vector<1x1x32xf32>
    %126 = vector.shape_cast %125 : vector<1x1x32xf32> to vector<1x32xf32>
    %127 = vector.broadcast %126 : vector<1x32xf32> to vector<8x32xf32>
    %128 = arith.addf %124, %127 : vector<8x32xf32>
    %129 = arith.truncf %128 : vector<8x32xf32> to vector<8x32xbf16>
    %cst_68 = arith.constant dense<0.000000e+00> : vector<8x32xf32>
    %130 = tpu.matmul %4, %129, %cst_68 {dimension_numbers = #tpu.dot_dimension_numbers<[1], [0], [0], [1], [0, 0, 1, 1], [], []>} : vector<8x8xbf16>, vector<8x32xbf16>, vector<8x32xf32> -> vector<8x32xf32>
    %cst_69 = arith.constant dense<0.000000e+00> : vector<8x32xf32>
    %131 = tpu.matmul %5, %129, %cst_69 {dimension_numbers = #tpu.dot_dimension_numbers<[1], [0], [0], [1], [0, 0, 1, 1], [], []>} : vector<8x8xbf16>, vector<8x32xbf16>, vector<8x32xf32> -> vector<8x32xf32>
    %132 = arith.truncf %130 : vector<8x32xf32> to vector<8x32xbf16>
    %cst_70 = arith.constant dense<0.000000e+00> : vector<8x32xf32>
    %133 = tpu.matmul %132, %6, %cst_70 {dimension_numbers = #tpu.dot_dimension_numbers<[1], [0], [0], [1], [0, 0, 1, 1], [], []>} : vector<8x32xbf16>, vector<32x32xbf16>, vector<8x32xf32> -> vector<8x32xf32>
    %134 = arith.truncf %131 : vector<8x32xf32> to vector<8x32xbf16>
    %cst_71 = arith.constant dense<0.000000e+00> : vector<8x32xf32>
    %135 = tpu.matmul %134, %7, %cst_71 {dimension_numbers = #tpu.dot_dimension_numbers<[1], [0], [0], [1], [0, 0, 1, 1], [], []>} : vector<8x32xbf16>, vector<32x32xbf16>, vector<8x32xf32> -> vector<8x32xf32>
    %136 = arith.subf %133, %135 : vector<8x32xf32>
    %137 = vector.broadcast %3 : vector<8x1xf32> to vector<8x32xf32>
    %138 = arith.mulf %136, %137 : vector<8x32xf32>
    %139 = arith.addf %138, %128 : vector<8x32xf32>
    %cst_72 = arith.constant dense<0.000000e+00> : vector<8xf32>
    %140 = vector.multi_reduction <add>, %139, %cst_72 [1] : vector<8x32xf32> to vector<8xf32>
    %141 = vector.shape_cast %140 : vector<8xf32> to vector<8x1xf32>
    %cst_73 = arith.constant 3.200000e+01 : f32
    %142 = vector.broadcast %cst_73 : f32 to vector<8x1xf32>
    %143 = arith.divf %141, %142 : vector<8x1xf32>
    %144 = vector.broadcast %143 : vector<8x1xf32> to vector<8x32xf32>
    %145 = arith.subf %139, %144 : vector<8x32xf32>
    %146 = arith.mulf %145, %145 : vector<8x32xf32>
    %cst_74 = arith.constant dense<0.000000e+00> : vector<8xf32>
    %147 = vector.multi_reduction <add>, %146, %cst_74 [1] : vector<8x32xf32> to vector<8xf32>
    %148 = vector.shape_cast %147 : vector<8xf32> to vector<8x1xf32>
    %cst_75 = arith.constant 3.200000e+01 : f32
    %149 = vector.broadcast %cst_75 : f32 to vector<8x1xf32>
    %150 = arith.divf %148, %149 : vector<8x1xf32>
    %151 = vector.broadcast %143 : vector<8x1xf32> to vector<8x32xf32>
    %152 = arith.subf %139, %151 : vector<8x32xf32>
    %cst_76 = arith.constant 9.99999974E-6 : f32
    %153 = vector.broadcast %cst_76 : f32 to vector<8x1xf32>
    %154 = arith.addf %150, %153 : vector<8x1xf32>
    %155 = math.rsqrt %154 : vector<8x1xf32>
    %156 = vector.broadcast %155 : vector<8x1xf32> to vector<8x32xf32>
    %157 = arith.mulf %152, %156 : vector<8x32xf32>
    %c1 = arith.constant 1 : index
    %c0_77 = arith.constant 0 : index
    %c0_78 = arith.constant 0 : index
    %158 = vector.load %arg7[%c1, %c0_77, %c0_78] : memref<2x1x32xf32, #tpu.memory_space<vmem>>, vector<1x1x32xf32>
    %159 = vector.shape_cast %158 : vector<1x1x32xf32> to vector<1x32xf32>
    %160 = vector.broadcast %159 : vector<1x32xf32> to vector<8x32xf32>
    %161 = arith.mulf %157, %160 : vector<8x32xf32>
    %c1_79 = arith.constant 1 : index
    %c0_80 = arith.constant 0 : index
    %c0_81 = arith.constant 0 : index
    %162 = vector.load %arg8[%c1_79, %c0_80, %c0_81] : memref<2x1x32xf32, #tpu.memory_space<vmem>>, vector<1x1x32xf32>
    %163 = vector.shape_cast %162 : vector<1x1x32xf32> to vector<1x32xf32>
    %164 = vector.broadcast %163 : vector<1x32xf32> to vector<8x32xf32>
    %165 = arith.addf %161, %164 : vector<8x32xf32>
    %166 = arith.truncf %165 : vector<8x32xf32> to vector<8x32xbf16>
    %c1_82 = arith.constant 1 : index
    %c0_83 = arith.constant 0 : index
    %c0_84 = arith.constant 0 : index
    %167 = vector.load %arg9[%c1_82, %c0_83, %c0_84] : memref<2x32x64xbf16, #tpu.memory_space<vmem>>, vector<1x32x64xbf16>
    %168 = vector.shape_cast %167 : vector<1x32x64xbf16> to vector<32x64xbf16>
    %cst_85 = arith.constant dense<0.000000e+00> : vector<8x64xf32>
    %169 = tpu.matmul %166, %168, %cst_85 {dimension_numbers = #tpu.dot_dimension_numbers<[1], [0], [0], [1], [0, 0, 1, 1], [], []>} : vector<8x32xbf16>, vector<32x64xbf16>, vector<8x64xf32> -> vector<8x64xf32>
    %c1_86 = arith.constant 1 : index
    %c0_87 = arith.constant 0 : index
    %c0_88 = arith.constant 0 : index
    %170 = vector.load %arg10[%c1_86, %c0_87, %c0_88] : memref<2x1x64xf32, #tpu.memory_space<vmem>>, vector<1x1x64xf32>
    %171 = vector.shape_cast %170 : vector<1x1x64xf32> to vector<1x64xf32>
    %172 = vector.broadcast %171 : vector<1x64xf32> to vector<8x64xf32>
    %173 = arith.addf %169, %172 : vector<8x64xf32>
    %cst_89 = arith.constant 5.000000e-01 : f32
    %174 = vector.broadcast %cst_89 : f32 to vector<8x64xf32>
    %175 = arith.mulf %174, %173 : vector<8x64xf32>
    %cst_90 = arith.constant 0.707106769 : f32
    %176 = vector.broadcast %cst_90 : f32 to vector<8x64xf32>
    %177 = arith.mulf %173, %176 : vector<8x64xf32>
    %cst_91 = arith.constant 0.000000e+00 : f32
    %178 = vector.broadcast %cst_91 : f32 to vector<8x64xf32>
    %179 = arith.cmpf oge, %177, %178 : vector<8x64xf32>
    %cst_92 = arith.constant 1.000000e+00 : f32
    %cst_93 = arith.constant -1.000000e+00 : f32
    %180 = vector.broadcast %cst_92 : f32 to vector<8x64xf32>
    %181 = vector.broadcast %cst_93 : f32 to vector<8x64xf32>
    %182 = arith.select %179, %180, %181 : vector<8x64xi1>, vector<8x64xf32>
    %183 = math.absf %177 : vector<8x64xf32>
    %cst_94 = arith.constant 0.327591091 : f32
    %184 = vector.broadcast %cst_94 : f32 to vector<8x64xf32>
    %185 = arith.mulf %184, %183 : vector<8x64xf32>
    %cst_95 = arith.constant 1.000000e+00 : f32
    %186 = vector.broadcast %cst_95 : f32 to vector<8x64xf32>
    %187 = arith.addf %186, %185 : vector<8x64xf32>
    %cst_96 = arith.constant 1.000000e+00 : f32
    %188 = vector.broadcast %cst_96 : f32 to vector<8x64xf32>
    %189 = arith.divf %188, %187 : vector<8x64xf32>
    %cst_97 = arith.constant 1.06140542 : f32
    %190 = vector.broadcast %cst_97 : f32 to vector<8x64xf32>
    %191 = arith.mulf %190, %189 : vector<8x64xf32>
    %cst_98 = arith.constant -1.45315206 : f32
    %192 = vector.broadcast %cst_98 : f32 to vector<8x64xf32>
    %193 = arith.addf %191, %192 : vector<8x64xf32>
    %194 = arith.mulf %193, %189 : vector<8x64xf32>
    %cst_99 = arith.constant 1.42141378 : f32
    %195 = vector.broadcast %cst_99 : f32 to vector<8x64xf32>
    %196 = arith.addf %194, %195 : vector<8x64xf32>
    %197 = arith.mulf %196, %189 : vector<8x64xf32>
    %cst_100 = arith.constant -0.284496725 : f32
    %198 = vector.broadcast %cst_100 : f32 to vector<8x64xf32>
    %199 = arith.addf %197, %198 : vector<8x64xf32>
    %200 = arith.mulf %199, %189 : vector<8x64xf32>
    %cst_101 = arith.constant 0.254829586 : f32
    %201 = vector.broadcast %cst_101 : f32 to vector<8x64xf32>
    %202 = arith.addf %200, %201 : vector<8x64xf32>
    %203 = arith.mulf %202, %189 : vector<8x64xf32>
    %cst_102 = arith.constant 0.000000e+00 : f32
    %204 = vector.broadcast %cst_102 : f32 to vector<8x64xf32>
    %205 = arith.subf %204, %183 : vector<8x64xf32>
    %206 = arith.mulf %205, %183 : vector<8x64xf32>
    %207 = math.exp %206 : vector<8x64xf32>
    %208 = arith.mulf %203, %207 : vector<8x64xf32>
    %cst_103 = arith.constant 1.000000e+00 : f32
    %209 = vector.broadcast %cst_103 : f32 to vector<8x64xf32>
    %210 = arith.subf %209, %208 : vector<8x64xf32>
    %211 = arith.mulf %182, %210 : vector<8x64xf32>
    %cst_104 = arith.constant 1.000000e+00 : f32
    %212 = vector.broadcast %cst_104 : f32 to vector<8x64xf32>
    %213 = arith.addf %212, %211 : vector<8x64xf32>
    %214 = arith.mulf %175, %213 : vector<8x64xf32>
    %215 = arith.truncf %214 : vector<8x64xf32> to vector<8x64xbf16>
    %c1_105 = arith.constant 1 : index
    %c0_106 = arith.constant 0 : index
    %c0_107 = arith.constant 0 : index
    %216 = vector.load %arg11[%c1_105, %c0_106, %c0_107] : memref<2x64x32xbf16, #tpu.memory_space<vmem>>, vector<1x64x32xbf16>
    %217 = vector.shape_cast %216 : vector<1x64x32xbf16> to vector<64x32xbf16>
    %cst_108 = arith.constant dense<0.000000e+00> : vector<8x32xf32>
    %218 = tpu.matmul %215, %217, %cst_108 {dimension_numbers = #tpu.dot_dimension_numbers<[1], [0], [0], [1], [0, 0, 1, 1], [], []>} : vector<8x64xbf16>, vector<64x32xbf16>, vector<8x32xf32> -> vector<8x32xf32>
    %c1_109 = arith.constant 1 : index
    %c0_110 = arith.constant 0 : index
    %c0_111 = arith.constant 0 : index
    %219 = vector.load %arg12[%c1_109, %c0_110, %c0_111] : memref<2x1x32xf32, #tpu.memory_space<vmem>>, vector<1x1x32xf32>
    %220 = vector.shape_cast %219 : vector<1x1x32xf32> to vector<1x32xf32>
    %221 = vector.broadcast %220 : vector<1x32xf32> to vector<8x32xf32>
    %222 = arith.addf %218, %221 : vector<8x32xf32>
    %223 = arith.addf %222, %165 : vector<8x32xf32>
    %cst_112 = arith.constant dense<0.000000e+00> : vector<8xf32>
    %224 = vector.multi_reduction <add>, %223, %cst_112 [1] : vector<8x32xf32> to vector<8xf32>
    %225 = vector.shape_cast %224 : vector<8xf32> to vector<8x1xf32>
    %cst_113 = arith.constant 3.200000e+01 : f32
    %226 = vector.broadcast %cst_113 : f32 to vector<8x1xf32>
    %227 = arith.divf %225, %226 : vector<8x1xf32>
    %228 = vector.broadcast %227 : vector<8x1xf32> to vector<8x32xf32>
    %229 = arith.subf %223, %228 : vector<8x32xf32>
    %230 = arith.mulf %229, %229 : vector<8x32xf32>
    %cst_114 = arith.constant dense<0.000000e+00> : vector<8xf32>
    %231 = vector.multi_reduction <add>, %230, %cst_114 [1] : vector<8x32xf32> to vector<8xf32>
    %232 = vector.shape_cast %231 : vector<8xf32> to vector<8x1xf32>
    %cst_115 = arith.constant 3.200000e+01 : f32
    %233 = vector.broadcast %cst_115 : f32 to vector<8x1xf32>
    %234 = arith.divf %232, %233 : vector<8x1xf32>
    %235 = vector.broadcast %227 : vector<8x1xf32> to vector<8x32xf32>
    %236 = arith.subf %223, %235 : vector<8x32xf32>
    %cst_116 = arith.constant 9.99999974E-6 : f32
    %237 = vector.broadcast %cst_116 : f32 to vector<8x1xf32>
    %238 = arith.addf %234, %237 : vector<8x1xf32>
    %239 = math.rsqrt %238 : vector<8x1xf32>
    %240 = vector.broadcast %239 : vector<8x1xf32> to vector<8x32xf32>
    %241 = arith.mulf %236, %240 : vector<8x32xf32>
    %c1_117 = arith.constant 1 : index
    %c0_118 = arith.constant 0 : index
    %c0_119 = arith.constant 0 : index
    %242 = vector.load %arg13[%c1_117, %c0_118, %c0_119] : memref<2x1x32xf32, #tpu.memory_space<vmem>>, vector<1x1x32xf32>
    %243 = vector.shape_cast %242 : vector<1x1x32xf32> to vector<1x32xf32>
    %244 = vector.broadcast %243 : vector<1x32xf32> to vector<8x32xf32>
    %245 = arith.mulf %241, %244 : vector<8x32xf32>
    %c1_120 = arith.constant 1 : index
    %c0_121 = arith.constant 0 : index
    %c0_122 = arith.constant 0 : index
    %246 = vector.load %arg14[%c1_120, %c0_121, %c0_122] : memref<2x1x32xf32, #tpu.memory_space<vmem>>, vector<1x1x32xf32>
    %247 = vector.shape_cast %246 : vector<1x1x32xf32> to vector<1x32xf32>
    %248 = vector.broadcast %247 : vector<1x32xf32> to vector<8x32xf32>
    %249 = arith.addf %245, %248 : vector<8x32xf32>
    %c0_123 = arith.constant 0 : index
    %c0_124 = arith.constant 0 : index
    %c0_125 = arith.constant 0 : index
    %250 = vector.load %arg15[%c0_123, %c0_124, %c0_125] : memref<1x8x32xf32, #tpu.memory_space<vmem>>, vector<1x8x32xf32>
    %251 = vector.shape_cast %250 : vector<1x8x32xf32> to vector<8x32xf32>
    %252 = vector.shape_cast %249 : vector<8x32xf32> to vector<1x8x32xf32>
    tpu.vector_store %arg15[%c0_123, %c0_124, %c0_125], %252 {strides = array<i32>} : memref<1x8x32xf32, #tpu.memory_space<vmem>>, vector<1x8x32xf32>,
    return
  }
  func.func @transform_0(%arg0: i32) -> (i32, i32, i32) {
    %c0_i32 = arith.constant 0 : i32
    %c0_i32_0 = arith.constant 0 : i32
    %c0_i32_1 = arith.constant 0 : i32
    return %arg0, %c0_i32, %c0_i32_0 : i32, i32, i32
  }
  func.func @transform_1(%arg0: i32) -> (i32, i32, i32) {
    %c0_i32 = arith.constant 0 : i32
    %c0_i32_0 = arith.constant 0 : i32
    %c0_i32_1 = arith.constant 0 : i32
    return %arg0, %c0_i32, %c0_i32_0 : i32, i32, i32
  }
  func.func @transform_2(%arg0: i32) -> (i32, i32) {
    %c0_i32 = arith.constant 0 : i32
    %c0_i32_0 = arith.constant 0 : i32
    %c0_i32_1 = arith.constant 0 : i32
    return %c0_i32, %c0_i32_0 : i32, i32
  }
  func.func @transform_3(%arg0: i32) -> (i32, i32) {
    %c0_i32 = arith.constant 0 : i32
    %c0_i32_0 = arith.constant 0 : i32
    %c0_i32_1 = arith.constant 0 : i32
    return %c0_i32, %c0_i32_0 : i32, i32
  }
  func.func @transform_4(%arg0: i32) -> (i32, i32) {
    %c0_i32 = arith.constant 0 : i32
    %c0_i32_0 = arith.constant 0 : i32
    %c0_i32_1 = arith.constant 0 : i32
    return %c0_i32, %c0_i32_0 : i32, i32
  }
  func.func @transform_5(%arg0: i32) -> (i32, i32) {
    %c0_i32 = arith.constant 0 : i32
    %c0_i32_0 = arith.constant 0 : i32
    %c0_i32_1 = arith.constant 0 : i32
    return %c0_i32, %c0_i32_0 : i32, i32
  }
  func.func @transform_6(%arg0: i32) -> (i32, i32, i32) {
    %c0_i32 = arith.constant 0 : i32
    %c0_i32_0 = arith.constant 0 : i32
    %c0_i32_1 = arith.constant 0 : i32
    %c0_i32_2 = arith.constant 0 : i32
    return %c0_i32, %c0_i32_0, %c0_i32_1 : i32, i32, i32
  }
  func.func @transform_7(%arg0: i32) -> (i32, i32, i32) {
    %c0_i32 = arith.constant 0 : i32
    %c0_i32_0 = arith.constant 0 : i32
    %c0_i32_1 = arith.constant 0 : i32
    %c0_i32_2 = arith.constant 0 : i32
    return %c0_i32, %c0_i32_0, %c0_i32_1 : i32, i32, i32
  }
  func.func @transform_8(%arg0: i32) -> (i32, i32, i32) {
    %c0_i32 = arith.constant 0 : i32
    %c0_i32_0 = arith.constant 0 : i32
    %c0_i32_1 = arith.constant 0 : i32
    %c0_i32_2 = arith.constant 0 : i32
    return %c0_i32, %c0_i32_0, %c0_i32_1 : i32, i32, i32
  }
  func.func @transform_9(%arg0: i32) -> (i32, i32, i32) {
    %c0_i32 = arith.constant 0 : i32
    %c0_i32_0 = arith.constant 0 : i32
    %c0_i32_1 = arith.constant 0 : i32
    %c0_i32_2 = arith.constant 0 : i32
    return %c0_i32, %c0_i32_0, %c0_i32_1 : i32, i32, i32
  }
  func.func @transform_10(%arg0: i32) -> (i32, i32, i32) {
    %c0_i32 = arith.constant 0 : i32
    %c0_i32_0 = arith.constant 0 : i32
    %c0_i32_1 = arith.constant 0 : i32
    %c0_i32_2 = arith.constant 0 : i32
    return %c0_i32, %c0_i32_0, %c0_i32_1 : i32, i32, i32
  }
  func.func @transform_11(%arg0: i32) -> (i32, i32, i32) {
    %c0_i32 = arith.constant 0 : i32
    %c0_i32_0 = arith.constant 0 : i32
    %c0_i32_1 = arith.constant 0 : i32
    %c0_i32_2 = arith.constant 0 : i32
    return %c0_i32, %c0_i32_0, %c0_i32_1 : i32, i32, i32
  }
  func.func @transform_12(%arg0: i32) -> (i32, i32, i32) {
    %c0_i32 = arith.constant 0 : i32
    %c0_i32_0 = arith.constant 0 : i32
    %c0_i32_1 = arith.constant 0 : i32
    %c0_i32_2 = arith.constant 0 : i32
    return %c0_i32, %c0_i32_0, %c0_i32_1 : i32, i32, i32
  }
  func.func @transform_13(%arg0: i32) -> (i32, i32, i32) {
    %c0_i32 = arith.constant 0 : i32
    %c0_i32_0 = arith.constant 0 : i32
    %c0_i32_1 = arith.constant 0 : i32
    %c0_i32_2 = arith.constant 0 : i32
    return %c0_i32, %c0_i32_0, %c0_i32_1 : i32, i32, i32
  }
  func.func @transform_14(%arg0: i32) -> (i32, i32, i32) {
    %c0_i32 = arith.constant 0 : i32
    %c0_i32_0 = arith.constant 0 : i32
    %c0_i32_1 = arith.constant 0 : i32
    return %arg0, %c0_i32, %c0_i32_0 : i32, i32, i32
  }
}

module attributes {stable_mosaic.version = 11 : i64} {
  func.func @_crossmatch_pool_kernel(%arg0: i32, %arg1: memref<2x8x32xf32, #tpu.memory_space<vmem>>, %arg2: memref<2x16x32xf32, #tpu.memory_space<vmem>>, %arg3: memref<2x8x1xf32, #tpu.memory_space<vmem>>, %arg4: memref<2x1x16xf32, #tpu.memory_space<vmem>>, %arg5: memref<2x11xf32, #tpu.memory_space<vmem>>, %arg6: memref<2x11xf32, #tpu.memory_space<vmem>>) attributes {dimension_semantics = [#tpu.dimension_semantics<parallel>], iteration_bounds = array<i64: 1>, scalar_prefetch = 0 : i64, scratch_operands = 0 : i64, tpu.core_type = #tpu.core_type<tc>, window_params = [{transform_indices = @transform_0, window_bounds = array<i64: 2, 8, 32>}, {transform_indices = @transform_1, window_bounds = array<i64: 2, 16, 32>}, {transform_indices = @transform_2, window_bounds = array<i64: 2, 8, 1>}, {transform_indices = @transform_3, window_bounds = array<i64: 2, 1, 16>}, {transform_indices = @transform_4, window_bounds = array<i64: 2, 11>}, {transform_indices = @transform_5, window_bounds = array<i64: 2, 11>}]} {
    %c0 = arith.constant 0 : index
    %c0_0 = arith.constant 0 : index
    %c0_1 = arith.constant 0 : index
    %0 = vector.load %arg1[%c0, %c0_0, %c0_1] : memref<2x8x32xf32, #tpu.memory_space<vmem>>, vector<2x8x32xf32>
    %c0_2 = arith.constant 0 : index
    %c0_3 = arith.constant 0 : index
    %c0_4 = arith.constant 0 : index
    %1 = vector.load %arg2[%c0_2, %c0_3, %c0_4] : memref<2x16x32xf32, #tpu.memory_space<vmem>>, vector<2x16x32xf32>
    %c0_5 = arith.constant 0 : index
    %c0_6 = arith.constant 0 : index
    %c0_7 = arith.constant 0 : index
    %2 = vector.load %arg3[%c0_5, %c0_6, %c0_7] : memref<2x8x1xf32, #tpu.memory_space<vmem>>, vector<2x8x1xf32>
    %c0_8 = arith.constant 0 : index
    %c0_9 = arith.constant 0 : index
    %c0_10 = arith.constant 0 : index
    %3 = vector.load %arg4[%c0_8, %c0_9, %c0_10] : memref<2x1x16xf32, #tpu.memory_space<vmem>>, vector<2x1x16xf32>
    %4 = arith.mulf %0, %0 : vector<2x8x32xf32>
    %cst = arith.constant dense<0.000000e+00> : vector<2x8xf32>
    %5 = vector.multi_reduction <add>, %4, %cst [2] : vector<2x8x32xf32> to vector<2x8xf32>
    %6 = vector.shape_cast %5 : vector<2x8xf32> to vector<2x8x1xf32>
    %7 = math.sqrt %6 : vector<2x8x1xf32>
    %cst_11 = arith.constant 9.99999982E-14 : f32
    %8 = vector.broadcast %cst_11 : f32 to vector<2x8x1xf32>
    %9 = arith.addf %7, %8 : vector<2x8x1xf32>
    %10 = vector.broadcast %9 : vector<2x8x1xf32> to vector<2x8x32xf32>
    %11 = arith.divf %0, %10 : vector<2x8x32xf32>
    %12 = arith.mulf %1, %1 : vector<2x16x32xf32>
    %cst_12 = arith.constant dense<0.000000e+00> : vector<2x16xf32>
    %13 = vector.multi_reduction <add>, %12, %cst_12 [2] : vector<2x16x32xf32> to vector<2x16xf32>
    %14 = vector.shape_cast %13 : vector<2x16xf32> to vector<2x16x1xf32>
    %15 = math.sqrt %14 : vector<2x16x1xf32>
    %cst_13 = arith.constant 9.99999982E-14 : f32
    %16 = vector.broadcast %cst_13 : f32 to vector<2x16x1xf32>
    %17 = arith.addf %15, %16 : vector<2x16x1xf32>
    %18 = vector.broadcast %17 : vector<2x16x1xf32> to vector<2x16x32xf32>
    %19 = arith.divf %1, %18 : vector<2x16x32xf32>
    "tpu.trace_start"() <{level = 10 : i32, message = "bqd,bkd->bqk"}> : () -> ()
    %cst_14 = arith.constant dense<0.000000e+00> : vector<2x8x16xf32>
    %20 = tpu.matmul %11, %19, %cst_14 {dimension_numbers = #tpu.dot_dimension_numbers<[2], [2], [1], [1], [0, 0, 0, 1, 1, 1], [0], [0]>} : vector<2x8x32xf32>, vector<2x16x32xf32>, vector<2x8x16xf32> -> vector<2x8x16xf32>
    "tpu.trace_stop"() : () -> ()
    %21 = vector.broadcast %2 : vector<2x8x1xf32> to vector<2x8x16xf32>
    %22 = vector.broadcast %3 : vector<2x1x16xf32> to vector<2x8x16xf32>
    %23 = arith.mulf %21, %22 : vector<2x8x16xf32>
    %24 = arith.mulf %20, %23 : vector<2x8x16xf32>
    %25 = math.tanh %24 : vector<2x8x16xf32>
    %cst_15 = arith.constant dense<0.000000e+00> : vector<2x1xf32>
    %26 = vector.multi_reduction <add>, %3, %cst_15 [2] : vector<2x1x16xf32> to vector<2x1xf32>
    %27 = vector.shape_cast %26 : vector<2x1xf32> to vector<2x1x1xf32>
    %cst_16 = arith.constant 9.99999974E-5 : f32
    %28 = vector.broadcast %cst_16 : f32 to vector<2x1x1xf32>
    %29 = arith.addf %27, %28 : vector<2x1x1xf32>
    %cst_17 = arith.constant 1.000000e+00 : f32
    %30 = vector.broadcast %cst_17 : f32 to vector<2x1x1xf32>
    %31 = arith.divf %30, %29 : vector<2x1x1xf32>
    %cst_18 = arith.constant 0.00999999977 : f32
    %32 = vector.broadcast %cst_18 : f32 to vector<2x8x1xf32>
    %33 = arith.mulf %32, %2 : vector<2x8x1xf32>
    %cst_19 = arith.constant 1.000000e+00 : f32
    %34 = vector.broadcast %cst_19 : f32 to vector<2x8x16xf32>
    %35 = arith.subf %25, %34 : vector<2x8x16xf32>
    %36 = arith.mulf %35, %35 : vector<2x8x16xf32>
    %cst_20 = arith.constant 0.000000e+00 : f32
    %37 = vector.broadcast %cst_20 : f32 to vector<2x8x16xf32>
    %38 = arith.subf %37, %36 : vector<2x8x16xf32>
    %cst_21 = arith.constant 5.000000e+07 : f32
    %39 = vector.broadcast %cst_21 : f32 to vector<2x8x16xf32>
    %40 = arith.mulf %38, %39 : vector<2x8x16xf32>
    %41 = math.exp %40 : vector<2x8x16xf32>
    %42 = arith.mulf %41, %23 : vector<2x8x16xf32>
    %cst_22 = arith.constant dense<0.000000e+00> : vector<2x8xf32>
    %43 = vector.multi_reduction <add>, %42, %cst_22 [2] : vector<2x8x16xf32> to vector<2x8xf32>
    %44 = vector.shape_cast %43 : vector<2x8xf32> to vector<2x8x1xf32>
    %cst_23 = arith.constant 1.000000e-10 : f32
    %45 = vector.broadcast %cst_23 : f32 to vector<2x8x1xf32>
    %46 = arith.maximumf %44, %45 : vector<2x8x1xf32>
    %47 = math.log %46 : vector<2x8x1xf32>
    %cst_24 = arith.constant 1.44269502 : f32
    %48 = vector.broadcast %cst_24 : f32 to vector<2x8x1xf32>
    %49 = arith.mulf %47, %48 : vector<2x8x1xf32>
    %50 = arith.mulf %49, %33 : vector<2x8x1xf32>
    %cst_25 = arith.constant dense<0.000000e+00> : vector<2x1xf32>
    %51 = vector.multi_reduction <add>, %50, %cst_25 [1] : vector<2x8x1xf32> to vector<2x1xf32>
    %52 = vector.broadcast %31 : vector<2x1x1xf32> to vector<2x8x1xf32>
    %53 = arith.mulf %44, %52 : vector<2x8x1xf32>
    %54 = arith.mulf %53, %33 : vector<2x8x1xf32>
    %cst_26 = arith.constant dense<0.000000e+00> : vector<2x1xf32>
    %55 = vector.multi_reduction <add>, %54, %cst_26 [1] : vector<2x8x1xf32> to vector<2x1xf32>
    %cst_27 = arith.constant 0.000000e+00 : f32
    %56 = vector.broadcast %cst_27 : f32 to vector<2x8x16xf32>
    %57 = arith.cmpf oge, %25, %56 : vector<2x8x16xf32>
    %58 = arith.extui %57 : vector<2x8x16xi1> to vector<2x8x16xi32>
    %59 = arith.sitofp %58 : vector<2x8x16xi32> to vector<2x8x16xf32>
    %60 = arith.mulf %23, %59 : vector<2x8x16xf32>
    %61 = arith.subf %23, %60 : vector<2x8x16xf32>
    %cst_28 = arith.constant 2.000000e+01 : f32
    %62 = vector.broadcast %cst_28 : f32 to vector<2x8x16xf32>
    %63 = arith.mulf %62, %25 : vector<2x8x16xf32>
    %64 = math.exp %63 : vector<2x8x16xf32>
    %cst_29 = arith.constant -0.899999976 : f32
    %65 = vector.broadcast %cst_29 : f32 to vector<2x8x16xf32>
    %66 = arith.subf %25, %65 : vector<2x8x16xf32>
    %67 = arith.mulf %66, %66 : vector<2x8x16xf32>
    %cst_30 = arith.constant 0.000000e+00 : f32
    %68 = vector.broadcast %cst_30 : f32 to vector<2x8x16xf32>
    %69 = arith.subf %68, %67 : vector<2x8x16xf32>
    %cst_31 = arith.constant 5.000000e+01 : f32
    %70 = vector.broadcast %cst_31 : f32 to vector<2x8x16xf32>
    %71 = arith.mulf %69, %70 : vector<2x8x16xf32>
    %72 = math.exp %71 : vector<2x8x16xf32>
    %73 = arith.mulf %72, %61 : vector<2x8x16xf32>
    %cst_32 = arith.constant dense<0.000000e+00> : vector<2x8xf32>
    %74 = vector.multi_reduction <add>, %73, %cst_32 [2] : vector<2x8x16xf32> to vector<2x8xf32>
    %75 = vector.shape_cast %74 : vector<2x8xf32> to vector<2x8x1xf32>
    %76 = arith.mulf %72, %64 : vector<2x8x16xf32>
    %cst_33 = arith.constant 0x4B07975F : f32
    %77 = vector.broadcast %cst_33 : f32 to vector<2x8x16xf32>
    %78 = arith.mulf %76, %77 : vector<2x8x16xf32>
    %79 = arith.mulf %78, %61 : vector<2x8x16xf32>
    %cst_34 = arith.constant dense<0.000000e+00> : vector<2x8xf32>
    %80 = vector.multi_reduction <add>, %79, %cst_34 [2] : vector<2x8x16xf32> to vector<2x8xf32>
    %81 = vector.shape_cast %80 : vector<2x8xf32> to vector<2x8x1xf32>
    %82 = arith.mulf %78, %64 : vector<2x8x16xf32>
    %cst_35 = arith.constant 162754.797 : f32
    %83 = vector.broadcast %cst_35 : f32 to vector<2x8x16xf32>
    %84 = arith.mulf %82, %83 : vector<2x8x16xf32>
    %85 = arith.mulf %84, %61 : vector<2x8x16xf32>
    %cst_36 = arith.constant dense<0.000000e+00> : vector<2x8xf32>
    %86 = vector.multi_reduction <add>, %85, %cst_36 [2] : vector<2x8x16xf32> to vector<2x8xf32>
    %87 = vector.shape_cast %86 : vector<2x8xf32> to vector<2x8x1xf32>
    %88 = arith.mulf %84, %64 : vector<2x8x16xf32>
    %cst_37 = arith.constant 2980.95801 : f32
    %89 = vector.broadcast %cst_37 : f32 to vector<2x8x16xf32>
    %90 = arith.mulf %88, %89 : vector<2x8x16xf32>
    %91 = arith.mulf %90, %61 : vector<2x8x16xf32>
    %cst_38 = arith.constant dense<0.000000e+00> : vector<2x8xf32>
    %92 = vector.multi_reduction <add>, %91, %cst_38 [2] : vector<2x8x16xf32> to vector<2x8xf32>
    %93 = vector.shape_cast %92 : vector<2x8xf32> to vector<2x8x1xf32>
    %94 = arith.mulf %90, %64 : vector<2x8x16xf32>
    %cst_39 = arith.constant 54.5981483 : f32
    %95 = vector.broadcast %cst_39 : f32 to vector<2x8x16xf32>
    %96 = arith.mulf %94, %95 : vector<2x8x16xf32>
    %97 = arith.mulf %96, %61 : vector<2x8x16xf32>
    %cst_40 = arith.constant dense<0.000000e+00> : vector<2x8xf32>
    %98 = vector.multi_reduction <add>, %97, %cst_40 [2] : vector<2x8x16xf32> to vector<2x8xf32>
    %99 = vector.shape_cast %98 : vector<2x8xf32> to vector<2x8x1xf32>
    %100 = arith.mulf %96, %64 : vector<2x8x16xf32>
    %cst_41 = arith.constant 1.000000e+00 : f32
    %101 = vector.broadcast %cst_41 : f32 to vector<2x8x16xf32>
    %102 = arith.mulf %100, %101 : vector<2x8x16xf32>
    %103 = arith.mulf %102, %61 : vector<2x8x16xf32>
    %cst_42 = arith.constant dense<0.000000e+00> : vector<2x8xf32>
    %104 = vector.multi_reduction <add>, %103, %cst_42 [2] : vector<2x8x16xf32> to vector<2x8xf32>
    %105 = vector.shape_cast %104 : vector<2x8xf32> to vector<2x8x1xf32>
    %106 = arith.mulf %102, %64 : vector<2x8x16xf32>
    %cst_43 = arith.constant 0.0183156393 : f32
    %107 = vector.broadcast %cst_43 : f32 to vector<2x8x16xf32>
    %108 = arith.mulf %106, %107 : vector<2x8x16xf32>
    %109 = arith.mulf %108, %61 : vector<2x8x16xf32>
    %cst_44 = arith.constant dense<0.000000e+00> : vector<2x8xf32>
    %110 = vector.multi_reduction <add>, %109, %cst_44 [2] : vector<2x8x16xf32> to vector<2x8xf32>
    %111 = vector.shape_cast %110 : vector<2x8xf32> to vector<2x8x1xf32>
    %112 = arith.mulf %108, %64 : vector<2x8x16xf32>
    %cst_45 = arith.constant 3.35462624E-4 : f32
    %113 = vector.broadcast %cst_45 : f32 to vector<2x8x16xf32>
    %114 = arith.mulf %112, %113 : vector<2x8x16xf32>
    %115 = arith.mulf %114, %61 : vector<2x8x16xf32>
    %cst_46 = arith.constant dense<0.000000e+00> : vector<2x8xf32>
    %116 = vector.multi_reduction <add>, %115, %cst_46 [2] : vector<2x8x16xf32> to vector<2x8xf32>
    %117 = vector.shape_cast %116 : vector<2x8xf32> to vector<2x8x1xf32>
    %118 = arith.mulf %114, %64 : vector<2x8x16xf32>
    %cst_47 = arith.constant 6.14421242E-6 : f32
    %119 = vector.broadcast %cst_47 : f32 to vector<2x8x16xf32>
    %120 = arith.mulf %118, %119 : vector<2x8x16xf32>
    %121 = arith.mulf %120, %61 : vector<2x8x16xf32>
    %cst_48 = arith.constant dense<0.000000e+00> : vector<2x8xf32>
    %122 = vector.multi_reduction <add>, %121, %cst_48 [2] : vector<2x8x16xf32> to vector<2x8xf32>
    %123 = vector.shape_cast %122 : vector<2x8xf32> to vector<2x8x1xf32>
    %124 = arith.mulf %120, %64 : vector<2x8x16xf32>
    %cst_49 = arith.constant 1.12535176E-7 : f32
    %125 = vector.broadcast %cst_49 : f32 to vector<2x8x16xf32>
    %126 = arith.mulf %124, %125 : vector<2x8x16xf32>
    %127 = arith.mulf %126, %61 : vector<2x8x16xf32>
    %cst_50 = arith.constant dense<0.000000e+00> : vector<2x8xf32>
    %128 = vector.multi_reduction <add>, %127, %cst_50 [2] : vector<2x8x16xf32> to vector<2x8xf32>
    %129 = vector.shape_cast %128 : vector<2x8xf32> to vector<2x8x1xf32>
    %cst_51 = arith.constant -2.000000e+01 : f32
    %130 = vector.broadcast %cst_51 : f32 to vector<2x8x16xf32>
    %131 = arith.mulf %130, %25 : vector<2x8x16xf32>
    %132 = math.exp %131 : vector<2x8x16xf32>
    %cst_52 = arith.constant 0.899999976 : f32
    %133 = vector.broadcast %cst_52 : f32 to vector<2x8x16xf32>
    %134 = arith.subf %25, %133 : vector<2x8x16xf32>
    %135 = arith.mulf %134, %134 : vector<2x8x16xf32>
    %cst_53 = arith.constant 0.000000e+00 : f32
    %136 = vector.broadcast %cst_53 : f32 to vector<2x8x16xf32>
    %137 = arith.subf %136, %135 : vector<2x8x16xf32>
    %cst_54 = arith.constant 5.000000e+01 : f32
    %138 = vector.broadcast %cst_54 : f32 to vector<2x8x16xf32>
    %139 = arith.mulf %137, %138 : vector<2x8x16xf32>
    %140 = math.exp %139 : vector<2x8x16xf32>
    %141 = arith.mulf %140, %60 : vector<2x8x16xf32>
    %cst_55 = arith.constant dense<0.000000e+00> : vector<2x8xf32>
    %142 = vector.multi_reduction <add>, %141, %cst_55 [2] : vector<2x8x16xf32> to vector<2x8xf32>
    %143 = vector.shape_cast %142 : vector<2x8xf32> to vector<2x8x1xf32>
    %144 = arith.addf %143, %129 : vector<2x8x1xf32>
    %cst_56 = arith.constant 1.000000e-10 : f32
    %145 = vector.broadcast %cst_56 : f32 to vector<2x8x1xf32>
    %146 = arith.maximumf %144, %145 : vector<2x8x1xf32>
    %147 = math.log %146 : vector<2x8x1xf32>
    %cst_57 = arith.constant 1.44269502 : f32
    %148 = vector.broadcast %cst_57 : f32 to vector<2x8x1xf32>
    %149 = arith.mulf %147, %148 : vector<2x8x1xf32>
    %150 = arith.mulf %149, %33 : vector<2x8x1xf32>
    %cst_58 = arith.constant dense<0.000000e+00> : vector<2x1xf32>
    %151 = vector.multi_reduction <add>, %150, %cst_58 [1] : vector<2x8x1xf32> to vector<2x1xf32>
    %152 = vector.broadcast %31 : vector<2x1x1xf32> to vector<2x8x1xf32>
    %153 = arith.mulf %144, %152 : vector<2x8x1xf32>
    %154 = arith.mulf %153, %33 : vector<2x8x1xf32>
    %cst_59 = arith.constant dense<0.000000e+00> : vector<2x1xf32>
    %155 = vector.multi_reduction <add>, %154, %cst_59 [1] : vector<2x8x1xf32> to vector<2x1xf32>
    %156 = arith.mulf %140, %132 : vector<2x8x16xf32>
    %cst_60 = arith.constant 0x4B07975F : f32
    %157 = vector.broadcast %cst_60 : f32 to vector<2x8x16xf32>
    %158 = arith.mulf %156, %157 : vector<2x8x16xf32>
    %159 = arith.mulf %158, %60 : vector<2x8x16xf32>
    %cst_61 = arith.constant dense<0.000000e+00> : vector<2x8xf32>
    %160 = vector.multi_reduction <add>, %159, %cst_61 [2] : vector<2x8x16xf32> to vector<2x8xf32>
    %161 = vector.shape_cast %160 : vector<2x8xf32> to vector<2x8x1xf32>
    %162 = arith.addf %161, %123 : vector<2x8x1xf32>
    %cst_62 = arith.constant 1.000000e-10 : f32
    %163 = vector.broadcast %cst_62 : f32 to vector<2x8x1xf32>
    %164 = arith.maximumf %162, %163 : vector<2x8x1xf32>
    %165 = math.log %164 : vector<2x8x1xf32>
    %cst_63 = arith.constant 1.44269502 : f32
    %166 = vector.broadcast %cst_63 : f32 to vector<2x8x1xf32>
    %167 = arith.mulf %165, %166 : vector<2x8x1xf32>
    %168 = arith.mulf %167, %33 : vector<2x8x1xf32>
    %cst_64 = arith.constant dense<0.000000e+00> : vector<2x1xf32>
    %169 = vector.multi_reduction <add>, %168, %cst_64 [1] : vector<2x8x1xf32> to vector<2x1xf32>
    %170 = vector.broadcast %31 : vector<2x1x1xf32> to vector<2x8x1xf32>
    %171 = arith.mulf %162, %170 : vector<2x8x1xf32>
    %172 = arith.mulf %171, %33 : vector<2x8x1xf32>
    %cst_65 = arith.constant dense<0.000000e+00> : vector<2x1xf32>
    %173 = vector.multi_reduction <add>, %172, %cst_65 [1] : vector<2x8x1xf32> to vector<2x1xf32>
    %174 = arith.mulf %158, %132 : vector<2x8x16xf32>
    %cst_66 = arith.constant 162754.797 : f32
    %175 = vector.broadcast %cst_66 : f32 to vector<2x8x16xf32>
    %176 = arith.mulf %174, %175 : vector<2x8x16xf32>
    %177 = arith.mulf %176, %60 : vector<2x8x16xf32>
    %cst_67 = arith.constant dense<0.000000e+00> : vector<2x8xf32>
    %178 = vector.multi_reduction <add>, %177, %cst_67 [2] : vector<2x8x16xf32> to vector<2x8xf32>
    %179 = vector.shape_cast %178 : vector<2x8xf32> to vector<2x8x1xf32>
    %180 = arith.addf %179, %117 : vector<2x8x1xf32>
    %cst_68 = arith.constant 1.000000e-10 : f32
    %181 = vector.broadcast %cst_68 : f32 to vector<2x8x1xf32>
    %182 = arith.maximumf %180, %181 : vector<2x8x1xf32>
    %183 = math.log %182 : vector<2x8x1xf32>
    %cst_69 = arith.constant 1.44269502 : f32
    %184 = vector.broadcast %cst_69 : f32 to vector<2x8x1xf32>
    %185 = arith.mulf %183, %184 : vector<2x8x1xf32>
    %186 = arith.mulf %185, %33 : vector<2x8x1xf32>
    %cst_70 = arith.constant dense<0.000000e+00> : vector<2x1xf32>
    %187 = vector.multi_reduction <add>, %186, %cst_70 [1] : vector<2x8x1xf32> to vector<2x1xf32>
    %188 = vector.broadcast %31 : vector<2x1x1xf32> to vector<2x8x1xf32>
    %189 = arith.mulf %180, %188 : vector<2x8x1xf32>
    %190 = arith.mulf %189, %33 : vector<2x8x1xf32>
    %cst_71 = arith.constant dense<0.000000e+00> : vector<2x1xf32>
    %191 = vector.multi_reduction <add>, %190, %cst_71 [1] : vector<2x8x1xf32> to vector<2x1xf32>
    %192 = arith.mulf %176, %132 : vector<2x8x16xf32>
    %cst_72 = arith.constant 2980.95801 : f32
    %193 = vector.broadcast %cst_72 : f32 to vector<2x8x16xf32>
    %194 = arith.mulf %192, %193 : vector<2x8x16xf32>
    %195 = arith.mulf %194, %60 : vector<2x8x16xf32>
    %cst_73 = arith.constant dense<0.000000e+00> : vector<2x8xf32>
    %196 = vector.multi_reduction <add>, %195, %cst_73 [2] : vector<2x8x16xf32> to vector<2x8xf32>
    %197 = vector.shape_cast %196 : vector<2x8xf32> to vector<2x8x1xf32>
    %198 = arith.addf %197, %111 : vector<2x8x1xf32>
    %cst_74 = arith.constant 1.000000e-10 : f32
    %199 = vector.broadcast %cst_74 : f32 to vector<2x8x1xf32>
    %200 = arith.maximumf %198, %199 : vector<2x8x1xf32>
    %201 = math.log %200 : vector<2x8x1xf32>
    %cst_75 = arith.constant 1.44269502 : f32
    %202 = vector.broadcast %cst_75 : f32 to vector<2x8x1xf32>
    %203 = arith.mulf %201, %202 : vector<2x8x1xf32>
    %204 = arith.mulf %203, %33 : vector<2x8x1xf32>
    %cst_76 = arith.constant dense<0.000000e+00> : vector<2x1xf32>
    %205 = vector.multi_reduction <add>, %204, %cst_76 [1] : vector<2x8x1xf32> to vector<2x1xf32>
    %206 = vector.broadcast %31 : vector<2x1x1xf32> to vector<2x8x1xf32>
    %207 = arith.mulf %198, %206 : vector<2x8x1xf32>
    %208 = arith.mulf %207, %33 : vector<2x8x1xf32>
    %cst_77 = arith.constant dense<0.000000e+00> : vector<2x1xf32>
    %209 = vector.multi_reduction <add>, %208, %cst_77 [1] : vector<2x8x1xf32> to vector<2x1xf32>
    %210 = arith.mulf %194, %132 : vector<2x8x16xf32>
    %cst_78 = arith.constant 54.5981483 : f32
    %211 = vector.broadcast %cst_78 : f32 to vector<2x8x16xf32>
    %212 = arith.mulf %210, %211 : vector<2x8x16xf32>
    %213 = arith.mulf %212, %60 : vector<2x8x16xf32>
    %cst_79 = arith.constant dense<0.000000e+00> : vector<2x8xf32>
    %214 = vector.multi_reduction <add>, %213, %cst_79 [2] : vector<2x8x16xf32> to vector<2x8xf32>
    %215 = vector.shape_cast %214 : vector<2x8xf32> to vector<2x8x1xf32>
    %216 = arith.addf %215, %105 : vector<2x8x1xf32>
    %cst_80 = arith.constant 1.000000e-10 : f32
    %217 = vector.broadcast %cst_80 : f32 to vector<2x8x1xf32>
    %218 = arith.maximumf %216, %217 : vector<2x8x1xf32>
    %219 = math.log %218 : vector<2x8x1xf32>
    %cst_81 = arith.constant 1.44269502 : f32
    %220 = vector.broadcast %cst_81 : f32 to vector<2x8x1xf32>
    %221 = arith.mulf %219, %220 : vector<2x8x1xf32>
    %222 = arith.mulf %221, %33 : vector<2x8x1xf32>
    %cst_82 = arith.constant dense<0.000000e+00> : vector<2x1xf32>
    %223 = vector.multi_reduction <add>, %222, %cst_82 [1] : vector<2x8x1xf32> to vector<2x1xf32>
    %224 = vector.broadcast %31 : vector<2x1x1xf32> to vector<2x8x1xf32>
    %225 = arith.mulf %216, %224 : vector<2x8x1xf32>
    %226 = arith.mulf %225, %33 : vector<2x8x1xf32>
    %cst_83 = arith.constant dense<0.000000e+00> : vector<2x1xf32>
    %227 = vector.multi_reduction <add>, %226, %cst_83 [1] : vector<2x8x1xf32> to vector<2x1xf32>
    %228 = arith.mulf %212, %132 : vector<2x8x16xf32>
    %cst_84 = arith.constant 1.000000e+00 : f32
    %229 = vector.broadcast %cst_84 : f32 to vector<2x8x16xf32>
    %230 = arith.mulf %228, %229 : vector<2x8x16xf32>
    %231 = arith.mulf %230, %60 : vector<2x8x16xf32>
    %cst_85 = arith.constant dense<0.000000e+00> : vector<2x8xf32>
    %232 = vector.multi_reduction <add>, %231, %cst_85 [2] : vector<2x8x16xf32> to vector<2x8xf32>
    %233 = vector.shape_cast %232 : vector<2x8xf32> to vector<2x8x1xf32>
    %234 = arith.addf %233, %99 : vector<2x8x1xf32>
    %cst_86 = arith.constant 1.000000e-10 : f32
    %235 = vector.broadcast %cst_86 : f32 to vector<2x8x1xf32>
    %236 = arith.maximumf %234, %235 : vector<2x8x1xf32>
    %237 = math.log %236 : vector<2x8x1xf32>
    %cst_87 = arith.constant 1.44269502 : f32
    %238 = vector.broadcast %cst_87 : f32 to vector<2x8x1xf32>
    %239 = arith.mulf %237, %238 : vector<2x8x1xf32>
    %240 = arith.mulf %239, %33 : vector<2x8x1xf32>
    %cst_88 = arith.constant dense<0.000000e+00> : vector<2x1xf32>
    %241 = vector.multi_reduction <add>, %240, %cst_88 [1] : vector<2x8x1xf32> to vector<2x1xf32>
    %242 = vector.broadcast %31 : vector<2x1x1xf32> to vector<2x8x1xf32>
    %243 = arith.mulf %234, %242 : vector<2x8x1xf32>
    %244 = arith.mulf %243, %33 : vector<2x8x1xf32>
    %cst_89 = arith.constant dense<0.000000e+00> : vector<2x1xf32>
    %245 = vector.multi_reduction <add>, %244, %cst_89 [1] : vector<2x8x1xf32> to vector<2x1xf32>
    %246 = arith.mulf %230, %132 : vector<2x8x16xf32>
    %cst_90 = arith.constant 0.0183156393 : f32
    %247 = vector.broadcast %cst_90 : f32 to vector<2x8x16xf32>
    %248 = arith.mulf %246, %247 : vector<2x8x16xf32>
    %249 = arith.mulf %248, %60 : vector<2x8x16xf32>
    %cst_91 = arith.constant dense<0.000000e+00> : vector<2x8xf32>
    %250 = vector.multi_reduction <add>, %249, %cst_91 [2] : vector<2x8x16xf32> to vector<2x8xf32>
    %251 = vector.shape_cast %250 : vector<2x8xf32> to vector<2x8x1xf32>
    %252 = arith.addf %251, %93 : vector<2x8x1xf32>
    %cst_92 = arith.constant 1.000000e-10 : f32
    %253 = vector.broadcast %cst_92 : f32 to vector<2x8x1xf32>
    %254 = arith.maximumf %252, %253 : vector<2x8x1xf32>
    %255 = math.log %254 : vector<2x8x1xf32>
    %cst_93 = arith.constant 1.44269502 : f32
    %256 = vector.broadcast %cst_93 : f32 to vector<2x8x1xf32>
    %257 = arith.mulf %255, %256 : vector<2x8x1xf32>
    %258 = arith.mulf %257, %33 : vector<2x8x1xf32>
    %cst_94 = arith.constant dense<0.000000e+00> : vector<2x1xf32>
    %259 = vector.multi_reduction <add>, %258, %cst_94 [1] : vector<2x8x1xf32> to vector<2x1xf32>
    %260 = vector.broadcast %31 : vector<2x1x1xf32> to vector<2x8x1xf32>
    %261 = arith.mulf %252, %260 : vector<2x8x1xf32>
    %262 = arith.mulf %261, %33 : vector<2x8x1xf32>
    %cst_95 = arith.constant dense<0.000000e+00> : vector<2x1xf32>
    %263 = vector.multi_reduction <add>, %262, %cst_95 [1] : vector<2x8x1xf32> to vector<2x1xf32>
    %264 = arith.mulf %248, %132 : vector<2x8x16xf32>
    %cst_96 = arith.constant 3.35462624E-4 : f32
    %265 = vector.broadcast %cst_96 : f32 to vector<2x8x16xf32>
    %266 = arith.mulf %264, %265 : vector<2x8x16xf32>
    %267 = arith.mulf %266, %60 : vector<2x8x16xf32>
    %cst_97 = arith.constant dense<0.000000e+00> : vector<2x8xf32>
    %268 = vector.multi_reduction <add>, %267, %cst_97 [2] : vector<2x8x16xf32> to vector<2x8xf32>
    %269 = vector.shape_cast %268 : vector<2x8xf32> to vector<2x8x1xf32>
    %270 = arith.addf %269, %87 : vector<2x8x1xf32>
    %cst_98 = arith.constant 1.000000e-10 : f32
    %271 = vector.broadcast %cst_98 : f32 to vector<2x8x1xf32>
    %272 = arith.maximumf %270, %271 : vector<2x8x1xf32>
    %273 = math.log %272 : vector<2x8x1xf32>
    %cst_99 = arith.constant 1.44269502 : f32
    %274 = vector.broadcast %cst_99 : f32 to vector<2x8x1xf32>
    %275 = arith.mulf %273, %274 : vector<2x8x1xf32>
    %276 = arith.mulf %275, %33 : vector<2x8x1xf32>
    %cst_100 = arith.constant dense<0.000000e+00> : vector<2x1xf32>
    %277 = vector.multi_reduction <add>, %276, %cst_100 [1] : vector<2x8x1xf32> to vector<2x1xf32>
    %278 = vector.broadcast %31 : vector<2x1x1xf32> to vector<2x8x1xf32>
    %279 = arith.mulf %270, %278 : vector<2x8x1xf32>
    %280 = arith.mulf %279, %33 : vector<2x8x1xf32>
    %cst_101 = arith.constant dense<0.000000e+00> : vector<2x1xf32>
    %281 = vector.multi_reduction <add>, %280, %cst_101 [1] : vector<2x8x1xf32> to vector<2x1xf32>
    %282 = arith.mulf %266, %132 : vector<2x8x16xf32>
    %cst_102 = arith.constant 6.14421242E-6 : f32
    %283 = vector.broadcast %cst_102 : f32 to vector<2x8x16xf32>
    %284 = arith.mulf %282, %283 : vector<2x8x16xf32>
    %285 = arith.mulf %284, %60 : vector<2x8x16xf32>
    %cst_103 = arith.constant dense<0.000000e+00> : vector<2x8xf32>
    %286 = vector.multi_reduction <add>, %285, %cst_103 [2] : vector<2x8x16xf32> to vector<2x8xf32>
    %287 = vector.shape_cast %286 : vector<2x8xf32> to vector<2x8x1xf32>
    %288 = arith.addf %287, %81 : vector<2x8x1xf32>
    %cst_104 = arith.constant 1.000000e-10 : f32
    %289 = vector.broadcast %cst_104 : f32 to vector<2x8x1xf32>
    %290 = arith.maximumf %288, %289 : vector<2x8x1xf32>
    %291 = math.log %290 : vector<2x8x1xf32>
    %cst_105 = arith.constant 1.44269502 : f32
    %292 = vector.broadcast %cst_105 : f32 to vector<2x8x1xf32>
    %293 = arith.mulf %291, %292 : vector<2x8x1xf32>
    %294 = arith.mulf %293, %33 : vector<2x8x1xf32>
    %cst_106 = arith.constant dense<0.000000e+00> : vector<2x1xf32>
    %295 = vector.multi_reduction <add>, %294, %cst_106 [1] : vector<2x8x1xf32> to vector<2x1xf32>
    %296 = vector.broadcast %31 : vector<2x1x1xf32> to vector<2x8x1xf32>
    %297 = arith.mulf %288, %296 : vector<2x8x1xf32>
    %298 = arith.mulf %297, %33 : vector<2x8x1xf32>
    %cst_107 = arith.constant dense<0.000000e+00> : vector<2x1xf32>
    %299 = vector.multi_reduction <add>, %298, %cst_107 [1] : vector<2x8x1xf32> to vector<2x1xf32>
    %300 = arith.mulf %284, %132 : vector<2x8x16xf32>
    %cst_108 = arith.constant 1.12535176E-7 : f32
    %301 = vector.broadcast %cst_108 : f32 to vector<2x8x16xf32>
    %302 = arith.mulf %300, %301 : vector<2x8x16xf32>
    %303 = arith.mulf %302, %60 : vector<2x8x16xf32>
    %cst_109 = arith.constant dense<0.000000e+00> : vector<2x8xf32>
    %304 = vector.multi_reduction <add>, %303, %cst_109 [2] : vector<2x8x16xf32> to vector<2x8xf32>
    %305 = vector.shape_cast %304 : vector<2x8xf32> to vector<2x8x1xf32>
    %306 = arith.addf %305, %75 : vector<2x8x1xf32>
    %cst_110 = arith.constant 1.000000e-10 : f32
    %307 = vector.broadcast %cst_110 : f32 to vector<2x8x1xf32>
    %308 = arith.maximumf %306, %307 : vector<2x8x1xf32>
    %309 = math.log %308 : vector<2x8x1xf32>
    %cst_111 = arith.constant 1.44269502 : f32
    %310 = vector.broadcast %cst_111 : f32 to vector<2x8x1xf32>
    %311 = arith.mulf %309, %310 : vector<2x8x1xf32>
    %312 = arith.mulf %311, %33 : vector<2x8x1xf32>
    %cst_112 = arith.constant dense<0.000000e+00> : vector<2x1xf32>
    %313 = vector.multi_reduction <add>, %312, %cst_112 [1] : vector<2x8x1xf32> to vector<2x1xf32>
    %314 = vector.broadcast %31 : vector<2x1x1xf32> to vector<2x8x1xf32>
    %315 = arith.mulf %306, %314 : vector<2x8x1xf32>
    %316 = arith.mulf %315, %33 : vector<2x8x1xf32>
    %cst_113 = arith.constant dense<0.000000e+00> : vector<2x1xf32>
    %317 = vector.multi_reduction <add>, %316, %cst_113 [1] : vector<2x8x1xf32> to vector<2x1xf32>
    %318 = tpu.concatenate %51, %151, %169, %187, %205, %223, %241, %259, %277, %295, %313 in 1 : vector<2x1xf32>, vector<2x1xf32>, vector<2x1xf32>, vector<2x1xf32>, vector<2x1xf32>, vector<2x1xf32>, vector<2x1xf32>, vector<2x1xf32>, vector<2x1xf32>, vector<2x1xf32>, vector<2x1xf32> -> vector<2x11xf32>
    %c0_114 = arith.constant 0 : index
    %c0_115 = arith.constant 0 : index
    %319 = vector.load %arg5[%c0_114, %c0_115] : memref<2x11xf32, #tpu.memory_space<vmem>>, vector<2x11xf32>
    tpu.vector_store %arg5[%c0_114, %c0_115], %318 {strides = array<i32>} : memref<2x11xf32, #tpu.memory_space<vmem>>, vector<2x11xf32>,
    %320 = tpu.concatenate %55, %155, %173, %191, %209, %227, %245, %263, %281, %299, %317 in 1 : vector<2x1xf32>, vector<2x1xf32>, vector<2x1xf32>, vector<2x1xf32>, vector<2x1xf32>, vector<2x1xf32>, vector<2x1xf32>, vector<2x1xf32>, vector<2x1xf32>, vector<2x1xf32>, vector<2x1xf32> -> vector<2x11xf32>
    %c0_116 = arith.constant 0 : index
    %c0_117 = arith.constant 0 : index
    %321 = vector.load %arg6[%c0_116, %c0_117] : memref<2x11xf32, #tpu.memory_space<vmem>>, vector<2x11xf32>
    tpu.vector_store %arg6[%c0_116, %c0_117], %320 {strides = array<i32>} : memref<2x11xf32, #tpu.memory_space<vmem>>, vector<2x11xf32>,
    return
  }
  func.func @transform_0(%arg0: i32) -> (i32, i32, i32) {
    %c0_i32 = arith.constant 0 : i32
    %c0_i32_0 = arith.constant 0 : i32
    %c0_i32_1 = arith.constant 0 : i32
    return %arg0, %c0_i32, %c0_i32_0 : i32, i32, i32
  }
  func.func @transform_1(%arg0: i32) -> (i32, i32, i32) {
    %c0_i32 = arith.constant 0 : i32
    %c0_i32_0 = arith.constant 0 : i32
    %c0_i32_1 = arith.constant 0 : i32
    return %arg0, %c0_i32, %c0_i32_0 : i32, i32, i32
  }
  func.func @transform_2(%arg0: i32) -> (i32, i32, i32) {
    %c0_i32 = arith.constant 0 : i32
    %c0_i32_0 = arith.constant 0 : i32
    %c0_i32_1 = arith.constant 0 : i32
    return %arg0, %c0_i32, %c0_i32_0 : i32, i32, i32
  }
  func.func @transform_3(%arg0: i32) -> (i32, i32, i32) {
    %c0_i32 = arith.constant 0 : i32
    %c0_i32_0 = arith.constant 0 : i32
    %c0_i32_1 = arith.constant 0 : i32
    return %arg0, %c0_i32, %c0_i32_0 : i32, i32, i32
  }
  func.func @transform_4(%arg0: i32) -> (i32, i32) {
    %c0_i32 = arith.constant 0 : i32
    %c0_i32_0 = arith.constant 0 : i32
    return %arg0, %c0_i32 : i32, i32
  }
  func.func @transform_5(%arg0: i32) -> (i32, i32) {
    %c0_i32 = arith.constant 0 : i32
    %c0_i32_0 = arith.constant 0 : i32
    return %arg0, %c0_i32 : i32, i32
  }
}

</mosaic_0001>

<llo_original>
// kernel: fk_forward.3
$region0: #{fk_forward.3}
  #allocation0 [shape = 'u32[]', space=smem, size = 0x4, offset = 0x4, fixed_abs, tag = 'smem constant byte address 0x4 - core index']
  #allocation1 [shape = 'u32[144,128]{1,0:T(1,128)}', space=vmem, size = 0x12000, scoped, tag = 'internal scratch']
  %s0 = inlined_call_operand.vmem [shape: f32[2,8,32], index: 0, kind: input, shape index: {}]
  %s1 = inlined_call_operand.vmem [shape: f32[2,8,1], index: 1, kind: input, shape index: {}]
  %s2 = inlined_call_operand.vmem [shape: bf16[8,8], index: 2, kind: input, shape index: {}]
  %s3 = inlined_call_operand.vmem [shape: bf16[8,8], index: 3, kind: input, shape index: {}]
  %s4 = inlined_call_operand.vmem [shape: bf16[32,32], index: 4, kind: input, shape index: {}]
  %s5 = inlined_call_operand.vmem [shape: bf16[32,32], index: 5, kind: input, shape index: {}]
  %s6 = inlined_call_operand.vmem [shape: f32[2,1,32], index: 6, kind: input, shape index: {}, may-alias: {6,12}]
  %s7 = inlined_call_operand.vmem [shape: f32[2,1,32], index: 7, kind: input, shape index: {}, may-alias: {7,13}]
  %s8 = inlined_call_operand.vmem [shape: bf16[2,32,64], index: 8, kind: input, shape index: {}]
  %s9 = inlined_call_operand.vmem [shape: f32[2,1,64], index: 9, kind: input, shape index: {}]
  %s10 = inlined_call_operand.vmem [shape: bf16[2,64,32], index: 10, kind: input, shape index: {}]
  %s11 = inlined_call_operand.vmem [shape: f32[2,1,32], index: 11, kind: input, shape index: {}]
  %s12 = inlined_call_operand.vmem [shape: f32[2,1,32], index: 12, kind: input, shape index: {}, may-alias: {6,12}]
  %s13 = inlined_call_operand.vmem [shape: f32[2,1,32], index: 13, kind: input, shape index: {}, may-alias: {7,13}]
  %s14 = inlined_call_operand.vmem [shape: f32[2,8,32], index: 14, kind: output, shape index: {}]
  %s15 = sld [smem:[#allocation0]]
  $region89: #{fk_forward.3} parent=0
    _
  %s17 = ssub.s32 1, %s15
  %s18 = scalar_select 0, %s17, %s15
  loop: start=0, step=1, limit=4
  $region2: #{fk_forward.3} parent=0 // loop_pre_header
    _
  $region3: #{fk_forward.3} parent=0 // loop_header
    %s20 = sphi 0, %s24
    %p21 = scmp.ge.s32.totalorder %s20, 4
    %s30 = sphi 0, %s32
    %s33 = sphi 0, %s30
    %s34 = sphi 0, %s33
    %s50 = sphi 0, %s34
    %s56 = sphi 0, %s58
    %s59 = sphi 0, %s56
    %s60 = sphi 0, %s59
    %s76 = sphi 0, %s60
    %s80 = sphi 0, %s80
    %s82 = sphi 0, %s80
    %s83 = sphi 0, %s82
    %s97 = sphi 0, %s83
    %s101 = sphi 0, %s101
    %s103 = sphi 0, %s101
    %s104 = sphi 0, %s103
    %s118 = sphi 0, %s104
    %s122 = sphi 0, %s122
    %s124 = sphi 0, %s122
    %s125 = sphi 0, %s124
    %s139 = sphi 0, %s125
    %s143 = sphi 0, %s143
    %s145 = sphi 0, %s143
    %s146 = sphi 0, %s145
    %s160 = sphi 0, %s146
    %s164 = sphi 0, %s164
    %s166 = sphi 0, %s164
    %s167 = sphi 0, %s166
    %s181 = sphi 0, %s167
    %s185 = sphi 0, %s185
    %s187 = sphi 0, %s185
    %s188 = sphi 0, %s187
    %s202 = sphi 0, %s188
    %s206 = sphi 0, %s206
    %s208 = sphi 0, %s206
    %s209 = sphi 0, %s208
    %s223 = sphi 0, %s209
    %s227 = sphi 0, %s227
    %s229 = sphi 0, %s227
    %s230 = sphi 0, %s229
    %s244 = sphi 0, %s230
    %s248 = sphi 0, %s248
    %s250 = sphi 0, %s248
    %s251 = sphi 0, %s250
    %s265 = sphi 0, %s251
    %s269 = sphi 0, %s269
    %s271 = sphi 0, %s269
    %s272 = sphi 0, %s271
    %s286 = sphi 0, %s272
    %s290 = sphi 0, %s290
    %s292 = sphi 0, %s290
    %s293 = sphi 0, %s292
    %s307 = sphi 0, %s293
    %s311 = sphi 0, %s311
    %s313 = sphi 0, %s311
    %s314 = sphi 0, %s313
    %s328 = sphi 0, %s314
    %s334 = sphi 0, %s336
    %s337 = sphi 0, %s334
    %s338 = sphi 0, %s337
    %s354 = sphi 0, %s338
  $region4: #{fk_forward.3} parent=0 // loop_header_branch
    %23 = sbr.rel (%p21) target = $region8
  $region5: #{fk_forward.3} parent=0 // loop_body
    %s25 = ssub.s32 %s20, 1
    %s26 = ssub.s32 %s20, 2
    %s27 = sadd.s32 %s20, 1
    %s28 = ssub.s32 %s20, %s27
    %p29 = scmp.eq.s32.totalorder %s28, 0
    %s31 = sadd.s32 %s30, 1
    %s32 = scalar_select %p29, %s30, %s31
    %p35 = pneg %p29
    %p36 = scmp.eq.s32.totalorder %s20, 1
    %p37 = por %p35, %p36
    %p38 = scmp.ne.s32.totalorder %s30, %s33
    %p39 = scmp.eq.s32.totalorder %s20, 0
    %p40 = por %p38, %p39
    %p41 = scmp.ne.s32.totalorder %s30, %s33
    %p42 = scmp.eq.s32.totalorder %s25, 1
    %p43 = por %p41, %p42
    %p44 = scmp.ne.s32.totalorder %s33, %s34
    %p45 = scmp.eq.s32.totalorder %s25, 0
    %p46 = por %p44, %p45
    %p47 = scmp.ne.s32.totalorder %s33, %s34
    %p48 = scmp.eq.s32.totalorder %s26, 1
    %p49 = por %p47, %p48
    %p51 = scmp.ne.s32.totalorder %s34, %s50
    %p52 = scmp.eq.s32.totalorder %s26, 0
    %p53 = por %p51, %p52
    %s54 = ssub.s32 %s20, %s27
    %p55 = scmp.eq.s32.totalorder %s54, 0
    %s57 = sadd.s32 %s56, 1
    %s58 = scalar_select %p55, %s56, %s57
    %p61 = pneg %p55
    %p62 = scmp.eq.s32.totalorder %s20, 1
    %p63 = por %p61, %p62
    %p64 = scmp.ne.s32.totalorder %s56, %s59
    %p65 = scmp.eq.s32.totalorder %s20, 0
    %p66 = por %p64, %p65
    %p67 = scmp.ne.s32.totalorder %s56, %s59
    %p68 = scmp.eq.s32.totalorder %s25, 1
    %p69 = por %p67, %p68
    %p70 = scmp.ne.s32.totalorder %s59, %s60
    %p71 = scmp.eq.s32.totalorder %s25, 0
    %p72 = por %p70, %p71
    %p73 = scmp.ne.s32.totalorder %s59, %s60
    %p74 = scmp.eq.s32.totalorder %s26, 1
    %p75 = por %p73, %p74
    %p77 = scmp.ne.s32.totalorder %s60, %s76
    %p78 = scmp.eq.s32.totalorder %s26, 0
    %p79 = por %p77, %p78
    %s81 = sadd.s32 %s80, 1
    %p84 = scmp.eq.s32.totalorder %s20, 1
    %p85 = scmp.ne.s32.totalorder %s80, %s82
    %p86 = scmp.eq.s32.totalorder %s20, 0
    %p87 = por %p85, %p86
    %p88 = scmp.ne.s32.totalorder %s80, %s82
    %p89 = scmp.eq.s32.totalorder %s25, 1
    %p90 = por %p88, %p89
    %p91 = scmp.ne.s32.totalorder %s82, %s83
    %p92 = scmp.eq.s32.totalorder %s25, 0
    %p93 = por %p91, %p92
    %p94 = scmp.ne.s32.totalorder %s82, %s83
    %p95 = scmp.eq.s32.totalorder %s26, 1
    %p96 = por %p94, %p95
    %p98 = scmp.ne.s32.totalorder %s83, %s97
    %p99 = scmp.eq.s32.totalorder %s26, 0
    %p100 = por %p98, %p99
    %s102 = sadd.s32 %s101, 1
    %p105 = scmp.eq.s32.totalorder %s20, 1
    %p106 = scmp.ne.s32.totalorder %s101, %s103
    %p107 = scmp.eq.s32.totalorder %s20, 0
    %p108 = por %p106, %p107
    %p109 = scmp.ne.s32.totalorder %s101, %s103
    %p110 = scmp.eq.s32.totalorder %s25, 1
    %p111 = por %p109, %p110
    %p112 = scmp.ne.s32.totalorder %s103, %s104
    %p113 = scmp.eq.s32.totalorder %s25, 0
    %p114 = por %p112, %p113
    %p115 = scmp.ne.s32.totalorder %s103, %s104
    %p116 = scmp.eq.s32.totalorder %s26, 1
    %p117 = por %p115, %p116
    %p119 = scmp.ne.s32.totalorder %s104, %s118
    %p120 = scmp.eq.s32.totalorder %s26, 0
    %p121 = por %p119, %p120
    %s123 = sadd.s32 %s122, 1
    %p126 = scmp.eq.s32.totalorder %s20, 1
    %p127 = scmp.ne.s32.totalorder %s122, %s124
    %p128 = scmp.eq.s32.totalorder %s20, 0
    %p129 = por %p127, %p128
    %p130 = scmp.ne.s32.totalorder %s122, %s124
    %p131 = scmp.eq.s32.totalorder %s25, 1
    %p132 = por %p130, %p131
    %p133 = scmp.ne.s32.totalorder %s124, %s125
    %p134 = scmp.eq.s32.totalorder %s25, 0
    %p135 = por %p133, %p134
    %p136 = scmp.ne.s32.totalorder %s124, %s125
    %p137 = scmp.eq.s32.totalorder %s26, 1
    %p138 = por %p136, %p137
    %p140 = scmp.ne.s32.totalorder %s125, %s139
    %p141 = scmp.eq.s32.totalorder %s26, 0
    %p142 = por %p140, %p141
    %s144 = sadd.s32 %s143, 1
    %p147 = scmp.eq.s32.totalorder %s20, 1
    %p148 = scmp.ne.s32.totalorder %s143, %s145
    %p149 = scmp.eq.s32.totalorder %s20, 0
    %p150 = por %p148, %p149
    %p151 = scmp.ne.s32.totalorder %s143, %s145
    %p152 = scmp.eq.s32.totalorder %s25, 1
    %p153 = por %p151, %p152
    %p154 = scmp.ne.s32.totalorder %s145, %s146
    %p155 = scmp.eq.s32.totalorder %s25, 0
    %p156 = por %p154, %p155
    %p157 = scmp.ne.s32.totalorder %s145, %s146
    %p158 = scmp.eq.s32.totalorder %s26, 1
    %p159 = por %p157, %p158
    %p161 = scmp.ne.s32.totalorder %s146, %s160
    %p162 = scmp.eq.s32.totalorder %s26, 0
    %p163 = por %p161, %p162
    %s165 = sadd.s32 %s164, 1
    %p168 = scmp.eq.s32.totalorder %s20, 1
    %p169 = scmp.ne.s32.totalorder %s164, %s166
    %p170 = scmp.eq.s32.totalorder %s20, 0
    %p171 = por %p169, %p170
    %p172 = scmp.ne.s32.totalorder %s164, %s166
    %p173 = scmp.eq.s32.totalorder %s25, 1
    %p174 = por %p172, %p173
    %p175 = scmp.ne.s32.totalorder %s166, %s167
    %p176 = scmp.eq.s32.totalorder %s25, 0
    %p177 = por %p175, %p176
    %p178 = scmp.ne.s32.totalorder %s166, %s167
    %p179 = scmp.eq.s32.totalorder %s26, 1
    %p180 = por %p178, %p179
    %p182 = scmp.ne.s32.totalorder %s167, %s181
    %p183 = scmp.eq.s32.totalorder %s26, 0
    %p184 = por %p182, %p183
    %s186 = sadd.s32 %s185, 1
    %p189 = scmp.eq.s32.totalorder %s20, 1
    %p190 = scmp.ne.s32.totalorder %s185, %s187
    %p191 = scmp.eq.s32.totalorder %s20, 0
    %p192 = por %p190, %p191
    %p193 = scmp.ne.s32.totalorder %s185, %s187
    %p194 = scmp.eq.s32.totalorder %s25, 1
    %p195 = por %p193, %p194
    %p196 = scmp.ne.s32.totalorder %s187, %s188
    %p197 = scmp.eq.s32.totalorder %s25, 0
    %p198 = por %p196, %p197
    %p199 = scmp.ne.s32.totalorder %s187, %s188
    %p200 = scmp.eq.s32.totalorder %s26, 1
    %p201 = por %p199, %p200
    %p203 = scmp.ne.s32.totalorder %s188, %s202
    %p204 = scmp.eq.s32.totalorder %s26, 0
    %p205 = por %p203, %p204
    %s207 = sadd.s32 %s206, 1
    %p210 = scmp.eq.s32.totalorder %s20, 1
    %p211 = scmp.ne.s32.totalorder %s206, %s208
    %p212 = scmp.eq.s32.totalorder %s20, 0
    %p213 = por %p211, %p212
    %p214 = scmp.ne.s32.totalorder %s206, %s208
    %p215 = scmp.eq.s32.totalorder %s25, 1
    %p216 = por %p214, %p215
    %p217 = scmp.ne.s32.totalorder %s208, %s209
    %p218 = scmp.eq.s32.totalorder %s25, 0
    %p219 = por %p217, %p218
    %p220 = scmp.ne.s32.totalorder %s208, %s209
    %p221 = scmp.eq.s32.totalorder %s26, 1
    %p222 = por %p220, %p221
    %p224 = scmp.ne.s32.totalorder %s209, %s223
    %p225 = scmp.eq.s32.totalorder %s26, 0
    %p226 = por %p224, %p225
    %s228 = sadd.s32 %s227, 1
    %p231 = scmp.eq.s32.totalorder %s20, 1
    %p232 = scmp.ne.s32.totalorder %s227, %s229
    %p233 = scmp.eq.s32.totalorder %s20, 0
    %p234 = por %p232, %p233
    %p235 = scmp.ne.s32.totalorder %s227, %s229
    %p236 = scmp.eq.s32.totalorder %s25, 1
    %p237 = por %p235, %p236
    %p238 = scmp.ne.s32.totalorder %s229, %s230
    %p239 = scmp.eq.s32.totalorder %s25, 0
    %p240 = por %p238, %p239
    %p241 = scmp.ne.s32.totalorder %s229, %s230
    %p242 = scmp.eq.s32.totalorder %s26, 1
    %p243 = por %p241, %p242
    %p245 = scmp.ne.s32.totalorder %s230, %s244
    %p246 = scmp.eq.s32.totalorder %s26, 0
    %p247 = por %p245, %p246
    %s249 = sadd.s32 %s248, 1
    %p252 = scmp.eq.s32.totalorder %s20, 1
    %p253 = scmp.ne.s32.totalorder %s248, %s250
    %p254 = scmp.eq.s32.totalorder %s20, 0
    %p255 = por %p253, %p254
    %p256 = scmp.ne.s32.totalorder %s248, %s250
    %p257 = scmp.eq.s32.totalorder %s25, 1
    %p258 = por %p256, %p257
    %p259 = scmp.ne.s32.totalorder %s250, %s251
    %p260 = scmp.eq.s32.totalorder %s25, 0
    %p261 = por %p259, %p260
    %p262 = scmp.ne.s32.totalorder %s250, %s251
    %p263 = scmp.eq.s32.totalorder %s26, 1
    %p264 = por %p262, %p263
    %p266 = scmp.ne.s32.totalorder %s251, %s265
    %p267 = scmp.eq.s32.totalorder %s26, 0
    %p268 = por %p266, %p267
    %s270 = sadd.s32 %s269, 1
    %p273 = scmp.eq.s32.totalorder %s20, 1
    %p274 = scmp.ne.s32.totalorder %s269, %s271
    %p275 = scmp.eq.s32.totalorder %s20, 0
    %p276 = por %p274, %p275
    %p277 = scmp.ne.s32.totalorder %s269, %s271
    %p278 = scmp.eq.s32.totalorder %s25, 1
    %p279 = por %p277, %p278
    %p280 = scmp.ne.s32.totalorder %s271, %s272
    %p281 = scmp.eq.s32.totalorder %s25, 0
    %p282 = por %p280, %p281
    %p283 = scmp.ne.s32.totalorder %s271, %s272
    %p284 = scmp.eq.s32.totalorder %s26, 1
    %p285 = por %p283, %p284
    %p287 = scmp.ne.s32.totalorder %s272, %s286
    %p288 = scmp.eq.s32.totalorder %s26, 0
    %p289 = por %p287, %p288
    %s291 = sadd.s32 %s290, 1
    %p294 = scmp.eq.s32.totalorder %s20, 1
    %p295 = scmp.ne.s32.totalorder %s290, %s292
    %p296 = scmp.eq.s32.totalorder %s20, 0
    %p297 = por %p295, %p296
    %p298 = scmp.ne.s32.totalorder %s290, %s292
    %p299 = scmp.eq.s32.totalorder %s25, 1
    %p300 = por %p298, %p299
    %p301 = scmp.ne.s32.totalorder %s292, %s293
    %p302 = scmp.eq.s32.totalorder %s25, 0
    %p303 = por %p301, %p302
    %p304 = scmp.ne.s32.totalorder %s292, %s293
    %p305 = scmp.eq.s32.totalorder %s26, 1
    %p306 = por %p304, %p305
    %p308 = scmp.ne.s32.totalorder %s293, %s307
    %p309 = scmp.eq.s32.totalorder %s26, 0
    %p310 = por %p308, %p309
    %s312 = sadd.s32 %s311, 1
    %p315 = scmp.eq.s32.totalorder %s20, 1
    %p316 = scmp.ne.s32.totalorder %s311, %s313
    %p317 = scmp.eq.s32.totalorder %s20, 0
    %p318 = por %p316, %p317
    %p319 = scmp.ne.s32.totalorder %s311, %s313
    %p320 = scmp.eq.s32.totalorder %s25, 1
    %p321 = por %p319, %p320
    %p322 = scmp.ne.s32.totalorder %s313, %s314
    %p323 = scmp.eq.s32.totalorder %s25, 0
    %p324 = por %p322, %p323
    %p325 = scmp.ne.s32.totalorder %s313, %s314
    %p326 = scmp.eq.s32.totalorder %s26, 1
    %p327 = por %p325, %p326
    %p329 = scmp.ne.s32.totalorder %s314, %s328
    %p330 = scmp.eq.s32.totalorder %s26, 0
    %p331 = por %p329, %p330
    %s332 = ssub.s32 %s20, %s27
    %p333 = scmp.eq.s32.totalorder %s332, 0
    %s335 = sadd.s32 %s334, 1
    %s336 = scalar_select %p333, %s334, %s335
    %p339 = pneg %p333
    %p340 = scmp.eq.s32.totalorder %s20, 1
    %p341 = por %p339, %p340
    %p342 = scmp.ne.s32.totalorder %s334, %s337
    %p343 = scmp.eq.s32.totalorder %s20, 0
    %p344 = por %p342, %p343
    %p345 = scmp.ne.s32.totalorder %s334, %s337
    %p346 = scmp.eq.s32.totalorder %s25, 1
    %p347 = por %p345, %p346
    %p348 = scmp.ne.s32.totalorder %s337, %s338
    %p349 = scmp.eq.s32.totalorder %s25, 0
    %p350 = por %p348, %p349
    %p351 = scmp.ne.s32.totalorder %s337, %s338
    %p352 = scmp.eq.s32.totalorder %s26, 1
    %p353 = por %p351, %p352
    %p355 = scmp.ne.s32.totalorder %s338, %s354
    %p356 = scmp.eq.s32.totalorder %s26, 0
    %p357 = por %p355, %p356
    %p358 = scmp.le.s32.totalorder 1, %s20
    %p359 = scmp.lt.s32.totalorder %s20, 3
    %p360 = pnand %p358, %p359
    %p361 = pneg %p360
    // Predicated region
    $region9: #{fk_forward.3} parent=5 // pred_check
      _
    $region10: #{fk_forward.3} parent=5 // pred_check_branch
      %363 = sbr.rel (%p360) target = $region12
    $region11: #{fk_forward.3} parent=5 // pred_region
      %s364 = ssub.s32 %s20, 1
      // Predicated region
      $region13: #{fk_forward.3} parent=11 // pred_check
        %p365 = pneg %p93
      $region14: #{fk_forward.3} parent=11 // pred_check_branch
        %367 = sbr.rel (%p365) target = $region16
      $region15: #{fk_forward.3} parent=11 // pred_region
        _
      $region16: #{fk_forward.3} parent=11 // pred_fallthru
        _
      // Predicated region
      $region17: #{fk_forward.3} parent=11 // pred_check
        %p368 = pneg %p114
      $region18: #{fk_forward.3} parent=11 // pred_check_branch
        %370 = sbr.rel (%p368) target = $region20
      $region19: #{fk_forward.3} parent=11 // pred_region
        _
      $region20: #{fk_forward.3} parent=11 // pred_fallthru
        _
      // Predicated region
      $region21: #{fk_forward.3} parent=11 // pred_check
        %p371 = pneg %p135
      $region22: #{fk_forward.3} parent=11 // pred_check_branch
        %373 = sbr.rel (%p371) target = $region24
      $region23: #{fk_forward.3} parent=11 // pred_region
        _
      $region24: #{fk_forward.3} parent=11 // pred_fallthru
        _
      // Predicated region
      $region25: #{fk_forward.3} parent=11 // pred_check
        %p374 = pneg %p156
      $region26: #{fk_forward.3} parent=11 // pred_check_branch
        %376 = sbr.rel (%p374) target = $region28
      $region27: #{fk_forward.3} parent=11 // pred_region
        _
      $region28: #{fk_forward.3} parent=11 // pred_fallthru
        _
      // Predicated region
      $region29: #{fk_forward.3} parent=11 // pred_check
        %p377 = pneg %p177
      $region30: #{fk_forward.3} parent=11 // pred_check_branch
        %379 = sbr.rel (%p377) target = $region32
      $region31: #{fk_forward.3} parent=11 // pred_region
        _
      $region32: #{fk_forward.3} parent=11 // pred_fallthru
        _
      // Predicated region
      $region33: #{fk_forward.3} parent=11 // pred_check
        %p380 = pneg %p198
      $region34: #{fk_forward.3} parent=11 // pred_check_branch
        %382 = sbr.rel (%p380) target = $region36
      $region35: #{fk_forward.3} parent=11 // pred_region
        _
      $region36: #{fk_forward.3} parent=11 // pred_fallthru
        _
      // Predicated region
      $region37: #{fk_forward.3} parent=11 // pred_check
        %p383 = pneg %p219
      $region38: #{fk_forward.3} parent=11 // pred_check_branch
        %385 = sbr.rel (%p383) target = $region40
      $region39: #{fk_forward.3} parent=11 // pred_region
        _
      $region40: #{fk_forward.3} parent=11 // pred_fallthru
        _
      // Predicated region
      $region41: #{fk_forward.3} parent=11 // pred_check
        %p386 = pneg %p240
      $region42: #{fk_forward.3} parent=11 // pred_check_branch
        %388 = sbr.rel (%p386) target = $region44
      $region43: #{fk_forward.3} parent=11 // pred_region
        _
      $region44: #{fk_forward.3} parent=11 // pred_fallthru
        _
      // Predicated region
      $region45: #{fk_forward.3} parent=11 // pred_check
        %p389 = pneg %p261
      $region46: #{fk_forward.3} parent=11 // pred_check_branch
        %391 = sbr.rel (%p389) target = $region48
      $region47: #{fk_forward.3} parent=11 // pred_region
        _
      $region48: #{fk_forward.3} parent=11 // pred_fallthru
        _
      // Predicated region
      $region49: #{fk_forward.3} parent=11 // pred_check
        %p392 = pneg %p282
      $region50: #{fk_forward.3} parent=11 // pred_check_branch
        %394 = sbr.rel (%p392) target = $region52
      $region51: #{fk_forward.3} parent=11 // pred_region
        _
      $region52: #{fk_forward.3} parent=11 // pred_fallthru
        _
      // Predicated region
      $region53: #{fk_forward.3} parent=11 // pred_check
        %p395 = pneg %p303
      $region54: #{fk_forward.3} parent=11 // pred_check_branch
        %397 = sbr.rel (%p395) target = $region56
      $region55: #{fk_forward.3} parent=11 // pred_region
        _
      $region56: #{fk_forward.3} parent=11 // pred_fallthru
        _
      // Predicated region
      $region57: #{fk_forward.3} parent=11 // pred_check
        %p398 = pneg %p324
      $region58: #{fk_forward.3} parent=11 // pred_check_branch
        %400 = sbr.rel (%p398) target = $region60
      $region59: #{fk_forward.3} parent=11 // pred_region
        _
      $region60: #{fk_forward.3} parent=11 // pred_fallthru
        _
    $region12: #{fk_forward.3} parent=5 // pred_fallthru
      _
    %p401 = scmp.lt.s32.totalorder %s20, 2
    // Predicated region
    $region61: #{fk_forward.3} parent=5 // pred_check
      %p402 = pneg %p401
    $region62: #{fk_forward.3} parent=5 // pred_check_branch
      %404 = sbr.rel (%p402) target = $region64
    $region63: #{fk_forward.3} parent=5 // pred_region
      // Predicated region
      $region65: #{fk_forward.3} parent=63 // pred_check
        %p405 = pneg %p40
      $region66: #{fk_forward.3} parent=63 // pred_check_branch
        %407 = sbr.rel (%p405) target = $region68
      $region67: #{fk_forward.3} parent=63 // pred_region
        %p408 = scmp.lt.s32.totalorder %s20, 1
        %s409 = scalar_select %p408, %s20, 1
        %s410 = smul.addr %s409, 8
        %s411 = scalar_lea.vmem %s0, %s410
      $region68: #{fk_forward.3} parent=63 // pred_fallthru
        _
      // Predicated region
      $region69: #{fk_forward.3} parent=63 // pred_check
        %p412 = pneg %p66
      $region70: #{fk_forward.3} parent=63 // pred_check_branch
        %414 = sbr.rel (%p412) target = $region72
      $region71: #{fk_forward.3} parent=63 // pred_region
        %p415 = scmp.lt.s32.totalorder %s20, 1
        %s416 = scalar_select %p415, %s20, 1
        %s417 = smul.addr %s416, 8
        %s418 = scalar_lea.vmem %s1, %s417
      $region72: #{fk_forward.3} parent=63 // pred_fallthru
        _
    $region64: #{fk_forward.3} parent=5 // pred_fallthru
      _
    %p419 = scmp.le.s32.totalorder 1, %s20
    %p420 = scmp.lt.s32.totalorder %s20, 3
    %p421 = pnand %p419, %p420
    %p422 = pneg %p421
    // Predicated region
    $region73: #{fk_forward.3} parent=5 // pred_check
      _
    $region74: #{fk_forward.3} parent=5 // pred_check_branch
      %424 = sbr.rel (%p421) target = $region76
    $region75: #{fk_forward.3} parent=5 // pred_region
      %s425 = ssub.s32 %s20, 1
      %p426 = scmp.lt.s32.totalorder %s25, 1
      %s427 = scalar_select %p426, %s25, 1
      %s428 = smul.addr %s427, 8
      %s429 = scalar_lea.vmem %s0, %s428
      %p430 = pneg %p46
      %p431 = pneg %p43
      %p432 = scmp.lt.s32.totalorder %s25, 1
      %s433 = scalar_select %p432, %s25, 1
      %s434 = smul.addr %s433, 8
      %s435 = scalar_lea.vmem %s1, %s434
      %p436 = pneg %p72
      %p437 = pneg %p69
      %p438 = pneg %p93
      %p439 = pneg %p90
      %p440 = pneg %p114
      %p441 = pneg %p111
      %p442 = pneg %p135
      %p443 = pneg %p132
      %p444 = pneg %p156
      %p445 = pneg %p153
      %p446 = pneg %p177
      %p447 = pneg %p174
      %p448 = pneg %p198
      %p449 = pneg %p195
      %p450 = pneg %p219
      %p451 = pneg %p216
      %p452 = pneg %p240
      %p453 = pneg %p237
      %p454 = pneg %p261
      %p455 = pneg %p258
      %p456 = pneg %p282
      %p457 = pneg %p279
      %p458 = pneg %p303
      %p459 = pneg %p300
      %p460 = pneg %p324
      %p461 = pneg %p321
      %p462 = pneg %p350
      %p463 = pneg %p347
      %p464 = scmp.lt.s32.totalorder %s25, 1
      %s465 = scalar_select %p464, %s25, 1
      %s466 = smul.addr %s465, 8
      %s467 = scalar_lea.vmem %s14, %s466
      %p468 = scmp.lt.s32.totalorder %s25, 1
      %s469 = scalar_select %p468, %s25, 1
      %s470 = smul.addr %s469, 8
      %s471 = scalar_lea.vmem %s0, %s470
      %p472 = scmp.lt.s32.totalorder %s25, 1
      %s473 = scalar_select %p472, %s25, 1
      %s474 = smul.addr %s473, 8
      %s475 = scalar_lea.vmem %s1, %s474
      %p476 = scmp.lt.s32.totalorder %s25, 1
      %s477 = scalar_select %p476, %s25, 1
      %s478 = smul.addr %s477, 8
      %s479 = scalar_lea.vmem %s14, %s478
      %v481 = vld [vmem:[%s471] sm:$0xff]
      %v482 = vld [vmem:[%s475] sm:$0xff]
      %v483 = vld [vmem:[%s2] sm:$0xf]
      %v484 = vld [vmem:[%s3] sm:$0xf]
      %v485 = vld [vmem:[%s4] sm:$0xf]
      %v486 = vld [vmem:[%s4 + $0x4] sm:$0xf]
      %v487 = vld [vmem:[%s4 + $0x8] sm:$0xf]
      %v488 = vld [vmem:[%s4 + $0xc] sm:$0xf]
      %v489 = vld [vmem:[%s5] sm:$0xf]
      %v490 = vld [vmem:[%s5 + $0x4] sm:$0xf]
      %v491 = vld [vmem:[%s5 + $0x8] sm:$0xf]
      %v492 = vld [vmem:[%s5 + $0xc] sm:$0xf]
      %v493 = vpack.c.bf16 %v481, %v481
      %vm494 = vcmask 64512
      %v496 = vsel %vm494, %v483, 0
      %vm498 = vcmask 1043456
      %v500 = vsel %vm498, %v493, 0
      %502 = vmatprep.subr.bf16.mxu0 0
      %503 = vmatpush1.bf16.msra.mxu0 %v500
      %504 = vmatprep.subr.bf16.mxu0 0
      %505 = vmatpush1.bf16.msra.mxu0 0
      %506 = vmatprep.subr.bf16.mxu0 0
      %507 = vmatpush1.bf16.msra.mxu0 0
      %508 = vmatprep.subr.bf16.mxu0 0
      %509 = vmatpush1.bf16.msra.mxu0 0
      %510 = vmatprep.subr.bf16.mxu0 0
      %511 = vmatpush1.bf16.msra.mxu0 0
      %512 = vmatprep.subr.bf16.mxu0 0
      %513 = vmatpush1.bf16.msra.mxu0 0
      %514 = vmatprep.subr.bf16.mxu0 0
      %515 = vmatpush1.bf16.msra.mxu0 0
      %516 = vmatprep.subr.bf16.mxu0 0
      %517 = vmatpush1.bf16.msra.mxu0 0
      %518 = vmatprep.subr.bf16.mxu0 0
      %519 = vmatpush1.bf16.msra.mxu0 0
      %520 = vmatprep.subr.bf16.mxu0 0
      %521 = vmatpush1.bf16.msra.mxu0 0
      %522 = vmatprep.subr.bf16.mxu0 0
      %523 = vmatpush1.bf16.msra.mxu0 0
      %524 = vmatprep.subr.bf16.mxu0 0
      %525 = vmatpush1.bf16.msra.mxu0 0
      %526 = vmatprep.subr.bf16.mxu0 0
      %527 = vmatpush1.bf16.msra.mxu0 0
      %528 = vmatprep.subr.bf16.mxu0 0
      %529 = vmatpush1.bf16.msra.mxu0 0
      %530 = vmatprep.subr.bf16.mxu0 0
      %531 = vmatpush1.bf16.msra.mxu0 0
      %532 = vmatprep.subr.bf16.mxu0 0
      %533 = vmatpush1.bf16.msra.mxu0 0
      %534 = vmatprep.mubr.bf16.mxu0 0
      %535 = vmatmul.mubr.bf16.gmra.mrb[0].mxu0 %v496
      %v536 = vpop.f32.mrb[0].mxu0
      %v537 = vadd.f32 0.0, %v536
      %v538 = vpop.f32.mrb[0].mxu0
      %v539 = vpop.f32.mrb[0].mxu0
      %v540 = vpop.f32.mrb[0].mxu0
      %541 = vdwg.mxu0
      %v543 = vsel %vm494, %v484, 0
      %545 = vmatprep.subr.bf16.mxu0 0
      %546 = vmatpush1.bf16.msra.mxu0 %v500
      %547 = vmatprep.subr.bf16.mxu0 0
      %548 = vmatpush1.bf16.msra.mxu0 0
      %549 = vmatprep.subr.bf16.mxu0 0
      %550 = vmatpush1.bf16.msra.mxu0 0
      %551 = vmatprep.subr.bf16.mxu0 0
      %552 = vmatpush1.bf16.msra.mxu0 0
      %553 = vmatprep.subr.bf16.mxu0 0
      %554 = vmatpush1.bf16.msra.mxu0 0
      %555 = vmatprep.subr.bf16.mxu0 0
      %556 = vmatpush1.bf16.msra.mxu0 0
      %557 = vmatprep.subr.bf16.mxu0 0
      %558 = vmatpush1.bf16.msra.mxu0 0
      %559 = vmatprep.subr.bf16.mxu0 0
      %560 = vmatpush1.bf16.msra.mxu0 0
      %561 = vmatprep.subr.bf16.mxu0 0
      %562 = vmatpush1.bf16.msra.mxu0 0
      %563 = vmatprep.subr.bf16.mxu0 0
      %564 = vmatpush1.bf16.msra.mxu0 0
      %565 = vmatprep.subr.bf16.mxu0 0
      %566 = vmatpush1.bf16.msra.mxu0 0
      %567 = vmatprep.subr.bf16.mxu0 0
      %568 = vmatpush1.bf16.msra.mxu0 0
      %569 = vmatprep.subr.bf16.mxu0 0
      %570 = vmatpush1.bf16.msra.mxu0 0
      %571 = vmatprep.subr.bf16.mxu0 0
      %572 = vmatpush1.bf16.msra.mxu0 0
      %573 = vmatprep.subr.bf16.mxu0 0
      %574 = vmatpush1.bf16.msra.mxu0 0
      %575 = vmatprep.subr.bf16.mxu0 0
      %576 = vmatpush1.bf16.msra.mxu0 0
      %577 = vmatprep.mubr.bf16.mxu0 0
      %578 = vmatmul.mubr.bf16.gmra.mrb[0].mxu0 %v543
      %v579 = vpop.f32.mrb[0].mxu0
      %v580 = vadd.f32 0.0, %v579
      %v581 = vpop.f32.mrb[0].mxu0
      %v582 = vpop.f32.mrb[0].mxu0
      %v583 = vpop.f32.mrb[0].mxu0
      %584 = vdwg.mxu0
      %v585 = vpack.c.bf16 %v537, %v537
      %v590 = vunpack.c.l.b16 %v485
      %v591 = vunpack.c.l.b16 %v486
      %v592 = vunpack.c.l.b16 %v487
      %v593 = vunpack.c.l.b16 %v488
      %v594 = vpack.c.b16 %v591, %v590
      %v595 = vpack.c.b16 %v593, %v592
      %vm598 = vcmask 261120
      %v600 = vsel %vm598, %v585, 0
      %602 = vmatprep.subr.bf16.mxu0 0
      %603 = vmatpush1.bf16.msra.mxu0 %v594
      %604 = vmatprep.subr.bf16.mxu0 0
      %605 = vmatpush1.bf16.msra.mxu0 %v595
      %606 = vmatprep.subr.bf16.mxu0 0
      %607 = vmatpush1.bf16.msra.mxu0 0
      %608 = vmatprep.subr.bf16.mxu0 0
      %609 = vmatpush1.bf16.msra.mxu0 0
      %610 = vmatprep.subr.bf16.mxu0 0
      %611 = vmatpush1.bf16.msra.mxu0 0
      %612 = vmatprep.subr.bf16.mxu0 0
      %613 = vmatpush1.bf16.msra.mxu0 0
      %614 = vmatprep.subr.bf16.mxu0 0
      %615 = vmatpush1.bf16.msra.mxu0 0
      %616 = vmatprep.subr.bf16.mxu0 0
      %617 = vmatpush1.bf16.msra.mxu0 0
      %618 = vmatprep.subr.bf16.mxu0 0
      %619 = vmatpush1.bf16.msra.mxu0 0
      %620 = vmatprep.subr.bf16.mxu0 0
      %621 = vmatpush1.bf16.msra.mxu0 0
      %622 = vmatprep.subr.bf16.mxu0 0
      %623 = vmatpush1.bf16.msra.mxu0 0
      %624 = vmatprep.subr.bf16.mxu0 0
      %625 = vmatpush1.bf16.msra.mxu0 0
      %626 = vmatprep.subr.bf16.mxu0 0
      %627 = vmatpush1.bf16.msra.mxu0 0
      %628 = vmatprep.subr.bf16.mxu0 0
      %629 = vmatpush1.bf16.msra.mxu0 0
      %630 = vmatprep.subr.bf16.mxu0 0
      %631 = vmatpush1.bf16.msra.mxu0 0
      %632 = vmatprep.subr.bf16.mxu0 0
      %633 = vmatpush1.bf16.msra.mxu0 0
      %634 = vmatprep.mubr.bf16.mxu0 0
      %635 = vmatmul.mubr.bf16.gmra.mrb[0].mxu0 %v600
      %v636 = vpop.f32.mrb[0].mxu0
      %v637 = vadd.f32 0.0, %v636
      %v638 = vpop.f32.mrb[0].mxu0
      %v639 = vpop.f32.mrb[0].mxu0
      %v640 = vpop.f32.mrb[0].mxu0
      %641 = vdwg.mxu0
      %v642 = vpack.c.bf16 %v580, %v580
      %v647 = vunpack.c.l.b16 %v489
      %v648 = vunpack.c.l.b16 %v490
      %v649 = vunpack.c.l.b16 %v491
      %v650 = vunpack.c.l.b16 %v492
      %v651 = vpack.c.b16 %v648, %v647
      %v652 = vpack.c.b16 %v650, %v649
      %v656 = vsel %vm598, %v642, 0
      %658 = vmatprep.subr.bf16.mxu0 0
      %659 = vmatpush1.bf16.msra.mxu0 %v651
      %660 = vmatprep.subr.bf16.mxu0 0
      %661 = vmatpush1.bf16.msra.mxu0 %v652
      %662 = vmatprep.subr.bf16.mxu0 0
      %663 = vmatpush1.bf16.msra.mxu0 0
      %664 = vmatprep.subr.bf16.mxu0 0
      %665 = vmatpush1.bf16.msra.mxu0 0
      %666 = vmatprep.subr.bf16.mxu0 0
      %667 = vmatpush1.bf16.msra.mxu0 0
      %668 = vmatprep.subr.bf16.mxu0 0
      %669 = vmatpush1.bf16.msra.mxu0 0
      %670 = vmatprep.subr.bf16.mxu0 0
      %671 = vmatpush1.bf16.msra.mxu0 0
      %672 = vmatprep.subr.bf16.mxu0 0
      %673 = vmatpush1.bf16.msra.mxu0 0
      %674 = vmatprep.subr.bf16.mxu0 0
      %675 = vmatpush1.bf16.msra.mxu0 0
      %676 = vmatprep.subr.bf16.mxu0 0
      %677 = vmatpush1.bf16.msra.mxu0 0
      %678 = vmatprep.subr.bf16.mxu0 0
      %679 = vmatpush1.bf16.msra.mxu0 0
      %680 = vmatprep.subr.bf16.mxu0 0
      %681 = vmatpush1.bf16.msra.mxu0 0
      %682 = vmatprep.subr.bf16.mxu0 0
      %683 = vmatpush1.bf16.msra.mxu0 0
      %684 = vmatprep.subr.bf16.mxu0 0
      %685 = vmatpush1.bf16.msra.mxu0 0
      %686 = vmatprep.subr.bf16.mxu0 0
      %687 = vmatpush1.bf16.msra.mxu0 0
      %688 = vmatprep.subr.bf16.mxu0 0
      %689 = vmatpush1.bf16.msra.mxu0 0
      %690 = vmatprep.mubr.bf16.mxu0 0
      %691 = vmatmul.mubr.bf16.gmra.mrb[0].mxu0 %v656
      %v692 = vpop.f32.mrb[0].mxu0
      %v693 = vadd.f32 0.0, %v692
      %v694 = vpop.f32.mrb[0].mxu0
      %v695 = vpop.f32.mrb[0].mxu0
      %v696 = vpop.f32.mrb[0].mxu0
      %697 = vdwg.mxu0
      %v698 = vsub.f32 %v637, %v693
      %700 = vset.pattern.permute.xlu0 0
      %701 = vperm.xlu0 %700, %v482
      %v702 = vpop.permute.xlu0 %701
      %v704 = vmul.f32 %v698, %v702
      %v705 = vadd.f32 %v704, %v481
      %v706 = vsel %vm598, %v705, 0.0
      %707 = vadd.xlane.f32.xlu0 %v706
      %v708 = vpop.xlane.xlu0 %707
      %v709 = vrcp.pop 32.0
      %v710 = vmul.f32 %v708, %v709
      %v711 = vsub.f32 %v705, %v710
      %v712 = vmul.f32 %v711, %v711
      %v713 = vsel %vm598, %v712, 0.0
      %714 = vadd.xlane.f32.xlu0 %v713
      %v715 = vpop.xlane.xlu0 %714
      %v716 = vmul.f32 %v715, %v709
      %v717 = vadd.f32 %v716, 1e-05
      %v718 = vrsqrt.pop %v717
      %v719 = vmul.f32 %v711, %v718
      %v720 = vld [vmem:[%s6] sm:$0x1]
      %v722 = vlaneseq
      %v723 = vshrl.u32 %v722, 7
      %v724 = vsub.s32 0, %v723
      %v725 = vrot.slane %v720, %v724
      %v727 = vmul.f32 %v719, %v725
      %v728 = vld [vmem:[%s7] sm:$0x1]
      %v730 = vlaneseq
      %v731 = vshrl.u32 %v730, 7
      %v732 = vsub.s32 0, %v731
      %v733 = vrot.slane %v728, %v732
      %v735 = vadd.f32 %v727, %v733
      %v736 = vpack.c.bf16 %v735, %v735
      %v737 = vld [vmem:[%s8] sm:$0xf]
      %v738 = vld [vmem:[%s8 + $0x4] sm:$0xf]
      %v739 = vld [vmem:[%s8 + $0x8] sm:$0xf]
      %v740 = vld [vmem:[%s8 + $0xc] sm:$0xf]
      %v741 = vld [vmem:[%s9] sm:$0x1]
      %v743 = vlaneseq
      %v744 = vshrl.u32 %v743, 7
      %v745 = vsub.s32 0, %v744
      %v746 = vrot.slane %v741, %v745
      %v752 = vunpack.c.l.b16 %v737
      %v753 = vunpack.c.l.b16 %v738
      %v754 = vunpack.c.l.b16 %v739
      %v755 = vunpack.c.l.b16 %v740
      %v756 = vpack.c.b16 %v753, %v752
      %v757 = vpack.c.b16 %v755, %v754
      %v761 = vsel %vm598, %v736, 0
      %763 = vmatprep.subr.bf16.mxu0 0
      %764 = vmatpush1.bf16.msra.mxu0 %v756
      %765 = vmatprep.subr.bf16.mxu0 0
      %766 = vmatpush1.bf16.msra.mxu0 %v757
      %767 = vmatprep.subr.bf16.mxu0 0
      %768 = vmatpush1.bf16.msra.mxu0 0
      %769 = vmatprep.subr.bf16.mxu0 0
      %770 = vmatpush1.bf16.msra.mxu0 0
      %771 = vmatprep.subr.bf16.mxu0 0
      %772 = vmatpush1.bf16.msra.mxu0 0
      %773 = vmatprep.subr.bf16.mxu0 0
      %774 = vmatpush1.bf16.msra.mxu0 0
      %775 = vmatprep.subr.bf16.mxu0 0
      %776 = vmatpush1.bf16.msra.mxu0 0
      %777 = vmatprep.subr.bf16.mxu0 0
      %778 = vmatpush1.bf16.msra.mxu0 0
      %779 = vmatprep.subr.bf16.mxu0 0
      %780 = vmatpush1.bf16.msra.mxu0 0
      %781 = vmatprep.subr.bf16.mxu0 0
      %782 = vmatpush1.bf16.msra.mxu0 0
      %783 = vmatprep.subr.bf16.mxu0 0
      %784 = vmatpush1.bf16.msra.mxu0 0
      %785 = vmatprep.subr.bf16.mxu0 0
      %786 = vmatpush1.bf16.msra.mxu0 0
      %787 = vmatprep.subr.bf16.mxu0 0
      %788 = vmatpush1.bf16.msra.mxu0 0
      %789 = vmatprep.subr.bf16.mxu0 0
      %790 = vmatpush1.bf16.msra.mxu0 0
      %791 = vmatprep.subr.bf16.mxu0 0
      %792 = vmatpush1.bf16.msra.mxu0 0
      %793 = vmatprep.subr.bf16.mxu0 0
      %794 = vmatpush1.bf16.msra.mxu0 0
      %795 = vmatprep.mubr.bf16.mxu0 0
      %796 = vmatmul.mubr.bf16.gmra.mrb[0].mxu0 %v761
      %v797 = vpop.f32.mrb[0].mxu0
      %v798 = vadd.f32 %v746, %v797
      %v799 = vpop.f32.mrb[0].mxu0
      %v800 = vpop.f32.mrb[0].mxu0
      %v801 = vpop.f32.mrb[0].mxu0
      %802 = vdwg.mxu0
      %v803 = vmul.f32 %v798, 0.5
      %v804 = vmul.f32 %v798, 0.70710677
      %vm805 = vcmp.ge.f32.partialorder %v804, 0.0
      %v806 = vsel %vm805, 1.0, -1.0
      %v807 = vand.u32 2147483647, %v804
      %v808 = vmul.f32 %v807, 0.3275911
      %v809 = vadd.f32 %v808, 1.0
      %v810 = vrcp.pop %v809
      %v811 = vmul.f32 1.0, %v810
      %v812 = vmul.f32 %v811, 1.0614054
      %v813 = vadd.f32 %v812, -1.4531521
      %v814 = vmul.f32 %v813, %v811
      %v815 = vadd.f32 %v814, 1.4214138
      %v816 = vmul.f32 %v815, %v811
      %v817 = vadd.f32 %v816, -0.28449672
      %v818 = vmul.f32 %v817, %v811
      %v819 = vadd.f32 %v818, 0.2548296
      %v820 = vmul.f32 %v819, %v811
      %v821 = vsub.f32 0.0, %v807
      %v822 = vmul.f32 %v821, %v807
      %v823 = vmul.f32 %v822, 1.442695
      %v824 = vpow.pop %v823
      %v825 = vmul.f32 %v820, %v824
      %v826 = vsub.f32 1.0, %v825
      %v827 = vmul.f32 %v806, %v826
      %v828 = vadd.f32 %v827, 1.0
      %v829 = vmul.f32 %v803, %v828
      %v830 = vpack.c.bf16 %v829, %v829
      %v831 = vld [vmem:[%s10] sm:$0xf]
      %v832 = vld [vmem:[%s10 + $0x4] sm:$0xf]
      %v833 = vld [vmem:[%s10 + $0x8] sm:$0xf]
      %v834 = vld [vmem:[%s10 + $0xc] sm:$0xf]
      %v835 = vld [vmem:[%s10 + $0x10] sm:$0xf]
      %v836 = vld [vmem:[%s10 + $0x14] sm:$0xf]
      %v837 = vld [vmem:[%s10 + $0x18] sm:$0xf]
      %v838 = vld [vmem:[%s10 + $0x1c] sm:$0xf]
      %v839 = vld [vmem:[%s11] sm:$0x1]
      %v841 = vlaneseq
      %v842 = vshrl.u32 %v841, 7
      %v843 = vsub.s32 0, %v842
      %v844 = vrot.slane %v839, %v843
      %v854 = vunpack.c.l.b16 %v831
      %v855 = vunpack.c.l.b16 %v832
      %v856 = vunpack.c.l.b16 %v833
      %v857 = vunpack.c.l.b16 %v834
      %v858 = vunpack.c.l.b16 %v835
      %v859 = vunpack.c.l.b16 %v836
      %v860 = vunpack.c.l.b16 %v837
      %v861 = vunpack.c.l.b16 %v838
      %v862 = vpack.c.b16 %v855, %v854
      %v863 = vpack.c.b16 %v857, %v856
      %v864 = vpack.c.b16 %v859, %v858
      %v865 = vpack.c.b16 %v861, %v860
      %vm870 = vcmask 523264
      %v872 = vsel %vm870, %v830, 0
      %874 = vmatprep.subr.bf16.mxu0 0
      %875 = vmatpush1.bf16.msra.mxu0 %v862
      %876 = vmatprep.subr.bf16.mxu0 0
      %877 = vmatpush1.bf16.msra.mxu0 %v863
      %878 = vmatprep.subr.bf16.mxu0 0
      %879 = vmatpush1.bf16.msra.mxu0 %v864
      %880 = vmatprep.subr.bf16.mxu0 0
      %881 = vmatpush1.bf16.msra.mxu0 %v865
      %882 = vmatprep.subr.bf16.mxu0 0
      %883 = vmatpush1.bf16.msra.mxu0 0
      %884 = vmatprep.subr.bf16.mxu0 0
      %885 = vmatpush1.bf16.msra.mxu0 0
      %886 = vmatprep.subr.bf16.mxu0 0
      %887 = vmatpush1.bf16.msra.mxu0 0
      %888 = vmatprep.subr.bf16.mxu0 0
      %889 = vmatpush1.bf16.msra.mxu0 0
      %890 = vmatprep.subr.bf16.mxu0 0
      %891 = vmatpush1.bf16.msra.mxu0 0
      %892 = vmatprep.subr.bf16.mxu0 0
      %893 = vmatpush1.bf16.msra.mxu0 0
      %894 = vmatprep.subr.bf16.mxu0 0
      %895 = vmatpush1.bf16.msra.mxu0 0
      %896 = vmatprep.subr.bf16.mxu0 0
      %897 = vmatpush1.bf16.msra.mxu0 0
      %898 = vmatprep.subr.bf16.mxu0 0
      %899 = vmatpush1.bf16.msra.mxu0 0
      %900 = vmatprep.subr.bf16.mxu0 0
      %901 = vmatpush1.bf16.msra.mxu0 0
      %902 = vmatprep.subr.bf16.mxu0 0
      %903 = vmatpush1.bf16.msra.mxu0 0
      %904 = vmatprep.subr.bf16.mxu0 0
      %905 = vmatpush1.bf16.msra.mxu0 0
      %906 = vmatprep.mubr.bf16.mxu0 0
      %907 = vmatmul.mubr.bf16.gmra.mrb[0].mxu0 %v872
      %v908 = vpop.f32.mrb[0].mxu0
      %v909 = vadd.f32 %v844, %v908
      %v910 = vpop.f32.mrb[0].mxu0
      %v911 = vpop.f32.mrb[0].mxu0
      %v912 = vpop.f32.mrb[0].mxu0
      %913 = vdwg.mxu0
      %v914 = vadd.f32 %v909, %v735
      %v915 = vsel %vm598, %v914, 0.0
      %916 = vadd.xlane.f32.xlu0 %v915
      %v917 = vpop.xlane.xlu0 %916
      %v918 = vmul.f32 %v917, %v709
      %v919 = vsub.f32 %v914, %v918
      %v920 = vmul.f32 %v919, %v919
      %v921 = vsel %vm598, %v920, 0.0
      %922 = vadd.xlane.f32.xlu0 %v921
      %v923 = vpop.xlane.xlu0 %922
      %v924 = vmul.f32 %v923, %v709
      %v925 = vadd.f32 %v924, 1e-05
      %v926 = vrsqrt.pop %v925
      %v927 = vmul.f32 %v919, %v926
      %v928 = vld [vmem:[%s12] sm:$0x1]
      %v930 = vlaneseq
      %v931 = vshrl.u32 %v930, 7
      %v932 = vsub.s32 0, %v931
      %v933 = vrot.slane %v928, %v932
      %v935 = vmul.f32 %v927, %v933
      %v936 = vld [vmem:[%s13] sm:$0x1]
      %v938 = vlaneseq
      %v939 = vshrl.u32 %v938, 7
      %v940 = vsub.s32 0, %v939
      %v941 = vrot.slane %v936, %v940
      %v943 = vadd.f32 %v935, %v941
      %v944 = vpack.c.bf16 %v943, %v943
      %v946 = vsel %vm498, %v944, 0
      %948 = vmatprep.subr.bf16.mxu0 0
      %949 = vmatpush1.bf16.msra.mxu0 %v946
      %950 = vmatprep.subr.bf16.mxu0 0
      %951 = vmatpush1.bf16.msra.mxu0 0
      %952 = vmatprep.subr.bf16.mxu0 0
      %953 = vmatpush1.bf16.msra.mxu0 0
      %954 = vmatprep.subr.bf16.mxu0 0
      %955 = vmatpush1.bf16.msra.mxu0 0
      %956 = vmatprep.subr.bf16.mxu0 0
      %957 = vmatpush1.bf16.msra.mxu0 0
      %958 = vmatprep.subr.bf16.mxu0 0
      %959 = vmatpush1.bf16.msra.mxu0 0
      %960 = vmatprep.subr.bf16.mxu0 0
      %961 = vmatpush1.bf16.msra.mxu0 0
      %962 = vmatprep.subr.bf16.mxu0 0
      %963 = vmatpush1.bf16.msra.mxu0 0
      %964 = vmatprep.subr.bf16.mxu0 0
      %965 = vmatpush1.bf16.msra.mxu0 0
      %966 = vmatprep.subr.bf16.mxu0 0
      %967 = vmatpush1.bf16.msra.mxu0 0
      %968 = vmatprep.subr.bf16.mxu0 0
      %969 = vmatpush1.bf16.msra.mxu0 0
      %970 = vmatprep.subr.bf16.mxu0 0
      %971 = vmatpush1.bf16.msra.mxu0 0
      %972 = vmatprep.subr.bf16.mxu0 0
      %973 = vmatpush1.bf16.msra.mxu0 0
      %974 = vmatprep.subr.bf16.mxu0 0
      %975 = vmatpush1.bf16.msra.mxu0 0
      %976 = vmatprep.subr.bf16.mxu0 0
      %977 = vmatpush1.bf16.msra.mxu0 0
      %978 = vmatprep.subr.bf16.mxu0 0
      %979 = vmatpush1.bf16.msra.mxu0 0
      %980 = vmatprep.mubr.bf16.mxu0 0
      %981 = vmatmul.mubr.bf16.gmra.mrb[0].mxu0 %v496
      %v982 = vpop.f32.mrb[0].mxu0
      %v983 = vadd.f32 0.0, %v982
      %v984 = vpop.f32.mrb[0].mxu0
      %v985 = vpop.f32.mrb[0].mxu0
      %v986 = vpop.f32.mrb[0].mxu0
      %987 = vdwg.mxu0
      %988 = vmatprep.subr.bf16.mxu0 0
      %989 = vmatpush1.bf16.msra.mxu0 %v946
      %990 = vmatprep.subr.bf16.mxu0 0
      %991 = vmatpush1.bf16.msra.mxu0 0
      %992 = vmatprep.subr.bf16.mxu0 0
      %993 = vmatpush1.bf16.msra.mxu0 0
      %994 = vmatprep.subr.bf16.mxu0 0
      %995 = vmatpush1.bf16.msra.mxu0 0
      %996 = vmatprep.subr.bf16.mxu0 0
      %997 = vmatpush1.bf16.msra.mxu0 0
      %998 = vmatprep.subr.bf16.mxu0 0
      %999 = vmatpush1.bf16.msra.mxu0 0
      %1000 = vmatprep.subr.bf16.mxu0 0
      %1001 = vmatpush1.bf16.msra.mxu0 0
      %1002 = vmatprep.subr.bf16.mxu0 0
      %1003 = vmatpush1.bf16.msra.mxu0 0
      %1004 = vmatprep.subr.bf16.mxu0 0
      %1005 = vmatpush1.bf16.msra.mxu0 0
      %1006 = vmatprep.subr.bf16.mxu0 0
      %1007 = vmatpush1.bf16.msra.mxu0 0
      %1008 = vmatprep.subr.bf16.mxu0 0
      %1009 = vmatpush1.bf16.msra.mxu0 0
      %1010 = vmatprep.subr.bf16.mxu0 0
      %1011 = vmatpush1.bf16.msra.mxu0 0
      %1012 = vmatprep.subr.bf16.mxu0 0
      %1013 = vmatpush1.bf16.msra.mxu0 0
      %1014 = vmatprep.subr.bf16.mxu0 0
      %1015 = vmatpush1.bf16.msra.mxu0 0
      %1016 = vmatprep.subr.bf16.mxu0 0
      %1017 = vmatpush1.bf16.msra.mxu0 0
      %1018 = vmatprep.subr.bf16.mxu0 0
      %1019 = vmatpush1.bf16.msra.mxu0 0
      %1020 = vmatprep.mubr.bf16.mxu0 0
      %1021 = vmatmul.mubr.bf16.gmra.mrb[0].mxu0 %v543
      %v1022 = vpop.f32.mrb[0].mxu0
      %v1023 = vadd.f32 0.0, %v1022
      %v1024 = vpop.f32.mrb[0].mxu0
      %v1025 = vpop.f32.mrb[0].mxu0
      %v1026 = vpop.f32.mrb[0].mxu0
      %1027 = vdwg.mxu0
      %v1028 = vpack.c.bf16 %v983, %v983
      %v1030 = vsel %vm598, %v1028, 0
      %1032 = vmatprep.subr.bf16.mxu0 0
      %1033 = vmatpush1.bf16.msra.mxu0 %v594
      %1034 = vmatprep.subr.bf16.mxu0 0
      %1035 = vmatpush1.bf16.msra.mxu0 %v595
      %1036 = vmatprep.subr.bf16.mxu0 0
      %1037 = vmatpush1.bf16.msra.mxu0 0
      %1038 = vmatprep.subr.bf16.mxu0 0
      %1039 = vmatpush1.bf16.msra.mxu0 0
      %1040 = vmatprep.subr.bf16.mxu0 0
      %1041 = vmatpush1.bf16.msra.mxu0 0
      %1042 = vmatprep.subr.bf16.mxu0 0
      %1043 = vmatpush1.bf16.msra.mxu0 0
      %1044 = vmatprep.subr.bf16.mxu0 0
      %1045 = vmatpush1.bf16.msra.mxu0 0
      %1046 = vmatprep.subr.bf16.mxu0 0
      %1047 = vmatpush1.bf16.msra.mxu0 0
      %1048 = vmatprep.subr.bf16.mxu0 0
      %1049 = vmatpush1.bf16.msra.mxu0 0
      %1050 = vmatprep.subr.bf16.mxu0 0
      %1051 = vmatpush1.bf16.msra.mxu0 0
      %1052 = vmatprep.subr.bf16.mxu0 0
      %1053 = vmatpush1.bf16.msra.mxu0 0
      %1054 = vmatprep.subr.bf16.mxu0 0
      %1055 = vmatpush1.bf16.msra.mxu0 0
      %1056 = vmatprep.subr.bf16.mxu0 0
      %1057 = vmatpush1.bf16.msra.mxu0 0
      %1058 = vmatprep.subr.bf16.mxu0 0
      %1059 = vmatpush1.bf16.msra.mxu0 0
      %1060 = vmatprep.subr.bf16.mxu0 0
      %1061 = vmatpush1.bf16.msra.mxu0 0
      %1062 = vmatprep.subr.bf16.mxu0 0
      %1063 = vmatpush1.bf16.msra.mxu0 0
      %1064 = vmatprep.mubr.bf16.mxu0 0
      %1065 = vmatmul.mubr.bf16.gmra.mrb[0].mxu0 %v1030
      %v1066 = vpop.f32.mrb[0].mxu0
      %v1067 = vadd.f32 0.0, %v1066
      %v1068 = vpop.f32.mrb[0].mxu0
      %v1069 = vpop.f32.mrb[0].mxu0
      %v1070 = vpop.f32.mrb[0].mxu0
      %1071 = vdwg.mxu0
      %v1072 = vpack.c.bf16 %v1023, %v1023
      %v1074 = vsel %vm598, %v1072, 0
      %1076 = vmatprep.subr.bf16.mxu0 0
      %1077 = vmatpush1.bf16.msra.mxu0 %v651
      %1078 = vmatprep.subr.bf16.mxu0 0
      %1079 = vmatpush1.bf16.msra.mxu0 %v652
      %1080 = vmatprep.subr.bf16.mxu0 0
      %1081 = vmatpush1.bf16.msra.mxu0 0
      %1082 = vmatprep.subr.bf16.mxu0 0
      %1083 = vmatpush1.bf16.msra.mxu0 0
      %1084 = vmatprep.subr.bf16.mxu0 0
      %1085 = vmatpush1.bf16.msra.mxu0 0
      %1086 = vmatprep.subr.bf16.mxu0 0
      %1087 = vmatpush1.bf16.msra.mxu0 0
      %1088 = vmatprep.subr.bf16.mxu0 0
      %1089 = vmatpush1.bf16.msra.mxu0 0
      %1090 = vmatprep.subr.bf16.mxu0 0
      %1091 = vmatpush1.bf16.msra.mxu0 0
      %1092 = vmatprep.subr.bf16.mxu0 0
      %1093 = vmatpush1.bf16.msra.mxu0 0
      %1094 = vmatprep.subr.bf16.mxu0 0
      %1095 = vmatpush1.bf16.msra.mxu0 0
      %1096 = vmatprep.subr.bf16.mxu0 0
      %1097 = vmatpush1.bf16.msra.mxu0 0
      %1098 = vmatprep.subr.bf16.mxu0 0
      %1099 = vmatpush1.bf16.msra.mxu0 0
      %1100 = vmatprep.subr.bf16.mxu0 0
      %1101 = vmatpush1.bf16.msra.mxu0 0
      %1102 = vmatprep.subr.bf16.mxu0 0
      %1103 = vmatpush1.bf16.msra.mxu0 0
      %1104 = vmatprep.subr.bf16.mxu0 0
      %1105 = vmatpush1.bf16.msra.mxu0 0
      %1106 = vmatprep.subr.bf16.mxu0 0
      %1107 = vmatpush1.bf16.msra.mxu0 0
      %1108 = vmatprep.mubr.bf16.mxu0 0
      %1109 = vmatmul.mubr.bf16.gmra.mrb[0].mxu0 %v1074
      %v1110 = vpop.f32.mrb[0].mxu0
      %v1111 = vadd.f32 0.0, %v1110
      %v1112 = vpop.f32.mrb[0].mxu0
      %v1113 = vpop.f32.mrb[0].mxu0
      %v1114 = vpop.f32.mrb[0].mxu0
      %1115 = vdwg.mxu0
      %v1116 = vsub.f32 %v1067, %v1111
      %v1117 = vmul.f32 %v1116, %v702
      %v1118 = vadd.f32 %v1117, %v943
      %v1119 = vsel %vm598, %v1118, 0.0
      %1120 = vadd.xlane.f32.xlu0 %v1119
      %v1121 = vpop.xlane.xlu0 %1120
      %v1122 = vmul.f32 %v1121, %v709
      %v1123 = vsub.f32 %v1118, %v1122
      %v1124 = vmul.f32 %v1123, %v1123
      %v1125 = vsel %vm598, %v1124, 0.0
      %1126 = vadd.xlane.f32.xlu0 %v1125
      %v1127 = vpop.xlane.xlu0 %1126
      %v1128 = vmul.f32 %v1127, %v709
      %v1129 = vadd.f32 %v1128, 1e-05
      %v1130 = vrsqrt.pop %v1129
      %v1131 = vmul.f32 %v1123, %v1130
      %s1132 = scalar_lea.vmem %s6, 1
      %v1133 = vld [vmem:[%s1132] sm:$0x1]
      %v1135 = vlaneseq
      %v1136 = vshrl.u32 %v1135, 7
      %v1137 = vsub.s32 0, %v1136
      %v1138 = vrot.slane %v1133, %v1137
      %v1140 = vmul.f32 %v1131, %v1138
      %s1141 = scalar_lea.vmem %s7, 1
      %v1142 = vld [vmem:[%s1141] sm:$0x1]
      %v1144 = vlaneseq
      %v1145 = vshrl.u32 %v1144, 7
      %v1146 = vsub.s32 0, %v1145
      %v1147 = vrot.slane %v1142, %v1146
      %v1149 = vadd.f32 %v1140, %v1147
      %v1150 = vpack.c.bf16 %v1149, %v1149
      %s1151 = scalar_lea.vmem %s8, 16
      %v1152 = vld [vmem:[%s1151] sm:$0xf]
      %v1153 = vld [vmem:[%s1151 + $0x4] sm:$0xf]
      %v1154 = vld [vmem:[%s1151 + $0x8] sm:$0xf]
      %v1155 = vld [vmem:[%s1151 + $0xc] sm:$0xf]
      %s1156 = scalar_lea.vmem %s9, 1
      %v1157 = vld [vmem:[%s1156] sm:$0x1]
      %v1159 = vlaneseq
      %v1160 = vshrl.u32 %v1159, 7
      %v1161 = vsub.s32 0, %v1160
      %v1162 = vrot.slane %v1157, %v1161
      %v1168 = vunpack.c.l.b16 %v1152
      %v1169 = vunpack.c.l.b16 %v1153
      %v1170 = vunpack.c.l.b16 %v1154
      %v1171 = vunpack.c.l.b16 %v1155
      %v1172 = vpack.c.b16 %v1169, %v1168
      %v1173 = vpack.c.b16 %v1171, %v1170
      %v1177 = vsel %vm598, %v1150, 0
      %1179 = vmatprep.subr.bf16.mxu0 0
      %1180 = vmatpush1.bf16.msra.mxu0 %v1172
      %1181 = vmatprep.subr.bf16.mxu0 0
      %1182 = vmatpush1.bf16.msra.mxu0 %v1173
      %1183 = vmatprep.subr.bf16.mxu0 0
      %1184 = vmatpush1.bf16.msra.mxu0 0
      %1185 = vmatprep.subr.bf16.mxu0 0
      %1186 = vmatpush1.bf16.msra.mxu0 0
      %1187 = vmatprep.subr.bf16.mxu0 0
      %1188 = vmatpush1.bf16.msra.mxu0 0
      %1189 = vmatprep.subr.bf16.mxu0 0
      %1190 = vmatpush1.bf16.msra.mxu0 0
      %1191 = vmatprep.subr.bf16.mxu0 0
      %1192 = vmatpush1.bf16.msra.mxu0 0
      %1193 = vmatprep.subr.bf16.mxu0 0
      %1194 = vmatpush1.bf16.msra.mxu0 0
      %1195 = vmatprep.subr.bf16.mxu0 0
      %1196 = vmatpush1.bf16.msra.mxu0 0
      %1197 = vmatprep.subr.bf16.mxu0 0
      %1198 = vmatpush1.bf16.msra.mxu0 0
      %1199 = vmatprep.subr.bf16.mxu0 0
      %1200 = vmatpush1.bf16.msra.mxu0 0
      %1201 = vmatprep.subr.bf16.mxu0 0
      %1202 = vmatpush1.bf16.msra.mxu0 0
      %1203 = vmatprep.subr.bf16.mxu0 0
      %1204 = vmatpush1.bf16.msra.mxu0 0
      %1205 = vmatprep.subr.bf16.mxu0 0
      %1206 = vmatpush1.bf16.msra.mxu0 0
      %1207 = vmatprep.subr.bf16.mxu0 0
      %1208 = vmatpush1.bf16.msra.mxu0 0
      %1209 = vmatprep.subr.bf16.mxu0 0
      %1210 = vmatpush1.bf16.msra.mxu0 0
      %1211 = vmatprep.mubr.bf16.mxu0 0
      %1212 = vmatmul.mubr.bf16.gmra.mrb[0].mxu0 %v1177
      %v1213 = vpop.f32.mrb[0].mxu0
      %v1214 = vadd.f32 %v1162, %v1213
      %v1215 = vpop.f32.mrb[0].mxu0
      %v1216 = vpop.f32.mrb[0].mxu0
      %v1217 = vpop.f32.mrb[0].mxu0
      %1218 = vdwg.mxu0
      %v1219 = vmul.f32 %v1214, 0.5
      %v1220 = vmul.f32 %v1214, 0.70710677
      %vm1221 = vcmp.ge.f32.partialorder %v1220, 0.0
      %v1222 = vsel %vm1221, 1.0, -1.0
      %v1223 = vand.u32 2147483647, %v1220
      %v1224 = vmul.f32 %v1223, 0.3275911
      %v1225 = vadd.f32 %v1224, 1.0
      %v1226 = vrcp.pop %v1225
      %v1227 = vmul.f32 1.0, %v1226
      %v1228 = vmul.f32 %v1227, 1.0614054
      %v1229 = vadd.f32 %v1228, -1.4531521
      %v1230 = vmul.f32 %v1229, %v1227
      %v1231 = vadd.f32 %v1230, 1.4214138
      %v1232 = vmul.f32 %v1231, %v1227
      %v1233 = vadd.f32 %v1232, -0.28449672
      %v1234 = vmul.f32 %v1233, %v1227
      %v1235 = vadd.f32 %v1234, 0.2548296
      %v1236 = vmul.f32 %v1235, %v1227
      %v1237 = vsub.f32 0.0, %v1223
      %v1238 = vmul.f32 %v1237, %v1223
      %v1239 = vmul.f32 %v1238, 1.442695
      %v1240 = vpow.pop %v1239
      %v1241 = vmul.f32 %v1236, %v1240
      %v1242 = vsub.f32 1.0, %v1241
      %v1243 = vmul.f32 %v1222, %v1242
      %v1244 = vadd.f32 %v1243, 1.0
      %v1245 = vmul.f32 %v1219, %v1244
      %v1246 = vpack.c.bf16 %v1245, %v1245
      %s1247 = scalar_lea.vmem %s10, 32
      %v1248 = vld [vmem:[%s1247] sm:$0xf]
      %v1249 = vld [vmem:[%s1247 + $0x4] sm:$0xf]
      %v1250 = vld [vmem:[%s1247 + $0x8] sm:$0xf]
      %v1251 = vld [vmem:[%s1247 + $0xc] sm:$0xf]
      %v1252 = vld [vmem:[%s1247 + $0x10] sm:$0xf]
      %v1253 = vld [vmem:[%s1247 + $0x14] sm:$0xf]
      %v1254 = vld [vmem:[%s1247 + $0x18] sm:$0xf]
      %v1255 = vld [vmem:[%s1247 + $0x1c] sm:$0xf]
      %s1256 = scalar_lea.vmem %s11, 1
      %v1257 = vld [vmem:[%s1256] sm:$0x1]
      %v1259 = vlaneseq
      %v1260 = vshrl.u32 %v1259, 7
      %v1261 = vsub.s32 0, %v1260
      %v1262 = vrot.slane %v1257, %v1261
      %v1272 = vunpack.c.l.b16 %v1248
      %v1273 = vunpack.c.l.b16 %v1249
      %v1274 = vunpack.c.l.b16 %v1250
      %v1275 = vunpack.c.l.b16 %v1251
      %v1276 = vunpack.c.l.b16 %v1252
      %v1277 = vunpack.c.l.b16 %v1253
      %v1278 = vunpack.c.l.b16 %v1254
      %v1279 = vunpack.c.l.b16 %v1255
      %v1280 = vpack.c.b16 %v1273, %v1272
      %v1281 = vpack.c.b16 %v1275, %v1274
      %v1282 = vpack.c.b16 %v1277, %v1276
      %v1283 = vpack.c.b16 %v1279, %v1278
      %v1289 = vsel %vm870, %v1246, 0
      %1291 = vmatprep.subr.bf16.mxu0 0
      %1292 = vmatpush1.bf16.msra.mxu0 %v1280
      %1293 = vmatprep.subr.bf16.mxu0 0
      %1294 = vmatpush1.bf16.msra.mxu0 %v1281
      %1295 = vmatprep.subr.bf16.mxu0 0
      %1296 = vmatpush1.bf16.msra.mxu0 %v1282
      %1297 = vmatprep.subr.bf16.mxu0 0
      %1298 = vmatpush1.bf16.msra.mxu0 %v1283
      %1299 = vmatprep.subr.bf16.mxu0 0
      %1300 = vmatpush1.bf16.msra.mxu0 0
      %1301 = vmatprep.subr.bf16.mxu0 0
      %1302 = vmatpush1.bf16.msra.mxu0 0
      %1303 = vmatprep.subr.bf16.mxu0 0
      %1304 = vmatpush1.bf16.msra.mxu0 0
      %1305 = vmatprep.subr.bf16.mxu0 0
      %1306 = vmatpush1.bf16.msra.mxu0 0
      %1307 = vmatprep.subr.bf16.mxu0 0
      %1308 = vmatpush1.bf16.msra.mxu0 0
      %1309 = vmatprep.subr.bf16.mxu0 0
      %1310 = vmatpush1.bf16.msra.mxu0 0
      %1311 = vmatprep.subr.bf16.mxu0 0
      %1312 = vmatpush1.bf16.msra.mxu0 0
      %1313 = vmatprep.subr.bf16.mxu0 0
      %1314 = vmatpush1.bf16.msra.mxu0 0
      %1315 = vmatprep.subr.bf16.mxu0 0
      %1316 = vmatpush1.bf16.msra.mxu0 0
      %1317 = vmatprep.subr.bf16.mxu0 0
      %1318 = vmatpush1.bf16.msra.mxu0 0
      %1319 = vmatprep.subr.bf16.mxu0 0
      %1320 = vmatpush1.bf16.msra.mxu0 0
      %1321 = vmatprep.subr.bf16.mxu0 0
      %1322 = vmatpush1.bf16.msra.mxu0 0
      %1323 = vmatprep.mubr.bf16.mxu0 0
      %1324 = vmatmul.mubr.bf16.gmra.mrb[0].mxu0 %v1289
      %v1325 = vpop.f32.mrb[0].mxu0
      %v1326 = vadd.f32 %v1262, %v1325
      %v1327 = vpop.f32.mrb[0].mxu0
      %v1328 = vpop.f32.mrb[0].mxu0
      %v1329 = vpop.f32.mrb[0].mxu0
      %1330 = vdwg.mxu0
      %v1331 = vadd.f32 %v1326, %v1149
      %v1332 = vsel %vm598, %v1331, 0.0
      %1333 = vadd.xlane.f32.xlu0 %v1332
      %v1334 = vpop.xlane.xlu0 %1333
      %v1335 = vmul.f32 %v1334, %v709
      %v1336 = vsub.f32 %v1331, %v1335
      %v1337 = vmul.f32 %v1336, %v1336
      %v1338 = vsel %vm598, %v1337, 0.0
      %1339 = vadd.xlane.f32.xlu0 %v1338
      %v1340 = vpop.xlane.xlu0 %1339
      %v1341 = vmul.f32 %v1340, %v709
      %v1342 = vadd.f32 %v1341, 1e-05
      %v1343 = vrsqrt.pop %v1342
      %v1344 = vmul.f32 %v1336, %v1343
      %s1345 = scalar_lea.vmem %s12, 1
      %v1346 = vld [vmem:[%s1345] sm:$0x1]
      %v1348 = vlaneseq
      %v1349 = vshrl.u32 %v1348, 7
      %v1350 = vsub.s32 0, %v1349
      %v1351 = vrot.slane %v1346, %v1350
      %v1353 = vmul.f32 %v1344, %v1351
      %s1354 = scalar_lea.vmem %s13, 1
      %v1355 = vld [vmem:[%s1354] sm:$0x1]
      %v1357 = vlaneseq
      %v1358 = vshrl.u32 %v1357, 7
      %v1359 = vsub.s32 0, %v1358
      %v1360 = vrot.slane %v1355, %v1359
      %v1362 = vadd.f32 %v1353, %v1360
      %1363 = vst.msk [vmem:[%s479] sm:$0xff] %vm598, %v1362
      %p1364 = scmp.lt.s32.totalorder %s25, 1
      %s1365 = scalar_select %p1364, %s25, 1
      %s1366 = smul.addr %s1365, 8
      %s1367 = scalar_lea.vmem %s14, %s1366
      // Predicated region
      $region77: #{fk_forward.3} parent=75 // pred_check
        %p1368 = pneg %p347
      $region78: #{fk_forward.3} parent=75 // pred_check_branch
        %1370 = sbr.rel (%p1368) target = $region80
      $region79: #{fk_forward.3} parent=75 // pred_region
        _
      $region80: #{fk_forward.3} parent=75 // pred_fallthru
        _
    $region76: #{fk_forward.3} parent=5 // pred_fallthru
      _
    %p1371 = scmp.le.s32.totalorder 2, %s20
    // Predicated region
    $region81: #{fk_forward.3} parent=5 // pred_check
      %p1372 = pneg %p1371
    $region82: #{fk_forward.3} parent=5 // pred_check_branch
      %1374 = sbr.rel (%p1372) target = $region84
    $region83: #{fk_forward.3} parent=5 // pred_region
      %s1375 = ssub.s32 %s20, 2
      // Predicated region
      $region85: #{fk_forward.3} parent=83 // pred_check
        %p1376 = pneg %p353
      $region86: #{fk_forward.3} parent=83 // pred_check_branch
        %1378 = sbr.rel (%p1376) target = $region88
      $region87: #{fk_forward.3} parent=83 // pred_region
        %p1379 = scmp.lt.s32.totalorder %s26, 1
        %s1380 = scalar_select %p1379, %s26, 1
        %s1381 = smul.addr %s1380, 8
        %s1382 = scalar_lea.vmem %s14, %s1381
      $region88: #{fk_forward.3} parent=83 // pred_fallthru
        _
    $region84: #{fk_forward.3} parent=5 // pred_fallthru
      _
  $region6: #{fk_forward.3} parent=0 // loop_footer
    %s24 = sadd.s32 1, %s20
  $region7: #{fk_forward.3} parent=0 // loop_footer_branch
    %19 = sbr.rel target = $region3
  $region8: #{fk_forward.3} parent=0 // loop_exit
    _

// kernel: fk_forward.5
$region0: #{fk_forward.5}
  #allocation0 [shape = 'u32[]', space=smem, size = 0x4, offset = 0x4, fixed_abs, tag = 'smem constant byte address 0x4 - core index']
  #allocation1 [shape = 'u32[144,128]{1,0:T(1,128)}', space=vmem, size = 0x12000, scoped, tag = 'internal scratch']
  %s0 = inlined_call_operand.vmem [shape: f32[2,8,32], index: 0, kind: input, shape index: {}]
  %s1 = inlined_call_operand.vmem [shape: f32[2,16,32], index: 1, kind: input, shape index: {}]
  %s2 = inlined_call_operand.vmem [shape: f32[2,8,1], index: 2, kind: input, shape index: {}]
  %s3 = inlined_call_operand.vmem [shape: f32[2,1,16], index: 3, kind: input, shape index: {}]
  %s4 = inlined_call_operand.vmem [shape: f32[2,11], index: 4, kind: output, shape index: {0}]
  %s5 = inlined_call_operand.vmem [shape: f32[2,11], index: 5, kind: output, shape index: {1}]
  %6 = xla_tuple %s4, %s5
  %s7 = sld [smem:[#allocation0]]
  $region34: #{fk_forward.5} parent=0
    _
  %s9 = ssub.s32 1, %s7
  %s10 = scalar_select 0, %s9, %s7
  // Predicated region
  $region2: #{fk_forward.5} parent=0 // pred_check
    _
  $region3: #{fk_forward.5} parent=0 // pred_check_branch
    %12 = sbr.rel (0) target = $region5
  $region4: #{fk_forward.5} parent=0 // pred_region
    _
  $region5: #{fk_forward.5} parent=0 // pred_fallthru
    _
  // Predicated region
  $region6: #{fk_forward.5} parent=0 // pred_check
    _
  $region7: #{fk_forward.5} parent=0 // pred_check_branch
    %14 = sbr.rel (0) target = $region9
  $region8: #{fk_forward.5} parent=0 // pred_region
    _
  $region9: #{fk_forward.5} parent=0 // pred_fallthru
    _
  // Predicated region
  $region10: #{fk_forward.5} parent=0 // pred_check
    _
  $region11: #{fk_forward.5} parent=0 // pred_check_branch
    %16 = sbr.rel (0) target = $region13
  $region12: #{fk_forward.5} parent=0 // pred_region
    _
  $region13: #{fk_forward.5} parent=0 // pred_fallthru
    _
  // Predicated region
  $region14: #{fk_forward.5} parent=0 // pred_check
    _
  $region15: #{fk_forward.5} parent=0 // pred_check_branch
    %18 = sbr.rel (0) target = $region17
  $region16: #{fk_forward.5} parent=0 // pred_region
    _
  $region17: #{fk_forward.5} parent=0 // pred_fallthru
    _
  %v19 = vld [vmem:[%s0] sm:$0xff]
  %v20 = vld [vmem:[%s0 + $0x8] sm:$0xff]
  %v21 = vld [vmem:[%s1] sm:$0xff]
  %v22 = vld [vmem:[%s1 + $0x8] sm:$0xff]
  %v23 = vld [vmem:[%s1 + $0x10] sm:$0xff]
  %v24 = vld [vmem:[%s1 + $0x18] sm:$0xff]
  %v25 = vld [vmem:[%s2] sm:$0xff]
  %v26 = vld [vmem:[%s2 + $0x8] sm:$0xff]
  %v27 = vld [vmem:[%s3] sm:$0x1]
  %v28 = vld [vmem:[%s3 + $0x1] sm:$0x1]
  %v29 = vmul.f32 %v19, %v19
  %v30 = vmul.f32 %v20, %v20
  %vm31 = vcmask 261120
  %v32 = vsel %vm31, %v29, 0.0
  %33 = vadd.xlane.f32.xlu0 %v32
  %v34 = vpop.xlane.xlu0 %33
  %v35 = vsel %vm31, %v30, 0.0
  %36 = vadd.xlane.f32.xlu0 %v35
  %v37 = vpop.xlane.xlu0 %36
  %v38 = vrsqrt.pop %v34
  %v39 = vmul.f32 %v34, %v38
  %vm40 = vcmp.eq.f32.partialorder %v34, inf
  %v41 = vsel %vm40, %v34, %v39
  %vm42 = vcmp.eq.f32.partialorder %v34, 0.0
  %v43 = vand.u32 %v34, 2147483648
  %v44 = vsel %vm42, %v43, %v41
  %v45 = vrsqrt.pop %v37
  %v46 = vmul.f32 %v37, %v45
  %vm47 = vcmp.eq.f32.partialorder %v37, inf
  %v48 = vsel %vm47, %v37, %v46
  %vm49 = vcmp.eq.f32.partialorder %v37, 0.0
  %v50 = vand.u32 %v37, 2147483648
  %v51 = vsel %vm49, %v50, %v48
  %v52 = vadd.f32 %v44, 1e-13
  %v53 = vadd.f32 %v51, 1e-13
  %v54 = vrcp.pop %v52
  %v55 = vmul.f32 %v19, %v54
  %v56 = vrcp.pop %v53
  %v57 = vmul.f32 %v20, %v56
  %v58 = vmul.f32 %v21, %v21
  %v59 = vmul.f32 %v22, %v22
  %v60 = vmul.f32 %v23, %v23
  %v61 = vmul.f32 %v24, %v24
  %v62 = vsel %vm31, %v58, 0.0
  %63 = vadd.xlane.f32.xlu0 %v62
  %v64 = vpop.xlane.xlu0 %63
  %v65 = vsel %vm31, %v59, 0.0
  %66 = vadd.xlane.f32.xlu0 %v65
  %v67 = vpop.xlane.xlu0 %66
  %v68 = vsel %vm31, %v60, 0.0
  %69 = vadd.xlane.f32.xlu0 %v68
  %v70 = vpop.xlane.xlu0 %69
  %v71 = vsel %vm31, %v61, 0.0
  %72 = vadd.xlane.f32.xlu0 %v71
  %v73 = vpop.xlane.xlu0 %72
  %v74 = vrsqrt.pop %v64
  %v75 = vmul.f32 %v64, %v74
  %vm76 = vcmp.eq.f32.partialorder %v64, inf
  %v77 = vsel %vm76, %v64, %v75
  %vm78 = vcmp.eq.f32.partialorder %v64, 0.0
  %v79 = vand.u32 %v64, 2147483648
  %v80 = vsel %vm78, %v79, %v77
  %v81 = vrsqrt.pop %v67
  %v82 = vmul.f32 %v67, %v81
  %vm83 = vcmp.eq.f32.partialorder %v67, inf
  %v84 = vsel %vm83, %v67, %v82
  %vm85 = vcmp.eq.f32.partialorder %v67, 0.0
  %v86 = vand.u32 %v67, 2147483648
  %v87 = vsel %vm85, %v86, %v84
  %v88 = vrsqrt.pop %v70
  %v89 = vmul.f32 %v70, %v88
  %vm90 = vcmp.eq.f32.partialorder %v70, inf
  %v91 = vsel %vm90, %v70, %v89
  %vm92 = vcmp.eq.f32.partialorder %v70, 0.0
  %v93 = vand.u32 %v70, 2147483648
  %v94 = vsel %vm92, %v93, %v91
  %v95 = vrsqrt.pop %v73
  %v96 = vmul.f32 %v73, %v95
  %vm97 = vcmp.eq.f32.partialorder %v73, inf
  %v98 = vsel %vm97, %v73, %v96
  %vm99 = vcmp.eq.f32.partialorder %v73, 0.0
  %v100 = vand.u32 %v73, 2147483648
  %v101 = vsel %vm99, %v100, %v98
  %v102 = vadd.f32 %v80, 1e-13
  %v103 = vadd.f32 %v87, 1e-13
  %v104 = vadd.f32 %v94, 1e-13
  %v105 = vadd.f32 %v101, 1e-13
  %v106 = vrcp.pop %v102
  %v107 = vmul.f32 %v21, %v106
  %v108 = vrcp.pop %v103
  %v109 = vmul.f32 %v22, %v108
  %v110 = vrcp.pop %v104
  %v111 = vmul.f32 %v23, %v110
  %v112 = vrcp.pop %v105
  %v113 = vmul.f32 %v24, %v112
  %v115 = vsel %vm31, %v55, 0
  %v118 = vsel %vm31, %v107, 0
  %v121 = vsel %vm31, %v109, 0
  %123 = vmatprep.subr.mxu0 0.0
  %124 = vmatpush1.xpose.msra.mxu0 %v118
  %125 = vmatprep.subr.mxu0 0.0
  %126 = vmatpush1.xpose.msra.mxu0 %v121
  %127 = vmatprep.subr.mxu0 0.0
  %128 = vmatpush1.xpose.msra.mxu0 0.0
  %129 = vmatprep.subr.mxu0 0.0
  %130 = vmatpush1.xpose.msra.mxu0 0.0
  %131 = vmatprep.subr.mxu0 0.0
  %132 = vmatpush1.xpose.msra.mxu0 0.0
  %133 = vmatprep.subr.mxu0 0.0
  %134 = vmatpush1.xpose.msra.mxu0 0.0
  %135 = vmatprep.subr.mxu0 0.0
  %136 = vmatpush1.xpose.msra.mxu0 0.0
  %137 = vmatprep.subr.mxu0 0.0
  %138 = vmatpush1.xpose.msra.mxu0 0.0
  %139 = vmatprep.subr.mxu0 0.0
  %140 = vmatpush1.xpose.msra.mxu0 0.0
  %141 = vmatprep.subr.mxu0 0.0
  %142 = vmatpush1.xpose.msra.mxu0 0.0
  %143 = vmatprep.subr.mxu0 0.0
  %144 = vmatpush1.xpose.msra.mxu0 0.0
  %145 = vmatprep.subr.mxu0 0.0
  %146 = vmatpush1.xpose.msra.mxu0 0.0
  %147 = vmatprep.subr.mxu0 0.0
  %148 = vmatpush1.xpose.msra.mxu0 0.0
  %149 = vmatprep.subr.mxu0 0.0
  %150 = vmatpush1.xpose.msra.mxu0 0.0
  %151 = vmatprep.subr.mxu0 0.0
  %152 = vmatpush1.xpose.msra.mxu0 0.0
  %153 = vmatprep.subr.mxu0 0.0
  %154 = vmatpush1.xpose.msra.mxu0 0.0
  %155 = vmatprep.subr.mxu0 0.0
  %156 = vmatpush1.xpose.msra.mxu0 0.0
  %157 = vmatprep.subr.mxu0 0.0
  %158 = vmatpush1.xpose.msra.mxu0 0.0
  %159 = vmatprep.subr.mxu0 0.0
  %160 = vmatpush1.xpose.msra.mxu0 0.0
  %161 = vmatprep.subr.mxu0 0.0
  %162 = vmatpush1.xpose.msra.mxu0 0.0
  %163 = vmatprep.subr.mxu0 0.0
  %164 = vmatpush1.xpose.msra.mxu0 0.0
  %165 = vmatprep.subr.mxu0 0.0
  %166 = vmatpush1.xpose.msra.mxu0 0.0
  %167 = vmatprep.subr.mxu0 0.0
  %168 = vmatpush1.xpose.msra.mxu0 0.0
  %169 = vmatprep.subr.mxu0 0.0
  %170 = vmatpush1.xpose.msra.mxu0 0.0
  %171 = vmatprep.subr.mxu0 0.0
  %172 = vmatpush1.xpose.msra.mxu0 0.0
  %173 = vmatprep.subr.mxu0 0.0
  %174 = vmatpush1.xpose.msra.mxu0 0.0
  %175 = vmatprep.subr.mxu0 0.0
  %176 = vmatpush1.xpose.msra.mxu0 0.0
  %177 = vmatprep.subr.mxu0 0.0
  %178 = vmatpush1.xpose.msra.mxu0 0.0
  %179 = vmatprep.subr.mxu0 0.0
  %180 = vmatpush1.xpose.msra.mxu0 0.0
  %181 = vmatprep.subr.mxu0 0.0
  %182 = vmatpush1.xpose.msra.mxu0 0.0
  %183 = vmatprep.subr.mxu0 0.0
  %184 = vmatpush1.xpose.msra.mxu0 0.0
  %185 = vmatprep.subr.mxu0 0.0
  %186 = vmatpush1.xpose.msra.mxu0 0.0
  %187 = vmatprep.mubr.f32.mxu0 0.0
  %188 = vmatmul.mubr.f32.gmra.mrb[0].mxu0 %v115
  %v189 = vpop.f32.mrb[0].mxu0
  %v190 = vadd.f32 0.0, %v189
  %v191 = vpop.f32.mrb[0].mxu0
  %192 = vdwg.mxu0
  %v194 = vsel %vm31, %v57, 0
  %v197 = vsel %vm31, %v111, 0
  %v200 = vsel %vm31, %v113, 0
  %202 = vmatprep.subr.mxu0 0.0
  %203 = vmatpush1.xpose.msra.mxu0 %v197
  %204 = vmatprep.subr.mxu0 0.0
  %205 = vmatpush1.xpose.msra.mxu0 %v200
  %206 = vmatprep.subr.mxu0 0.0
  %207 = vmatpush1.xpose.msra.mxu0 0.0
  %208 = vmatprep.subr.mxu0 0.0
  %209 = vmatpush1.xpose.msra.mxu0 0.0
  %210 = vmatprep.subr.mxu0 0.0
  %211 = vmatpush1.xpose.msra.mxu0 0.0
  %212 = vmatprep.subr.mxu0 0.0
  %213 = vmatpush1.xpose.msra.mxu0 0.0
  %214 = vmatprep.subr.mxu0 0.0
  %215 = vmatpush1.xpose.msra.mxu0 0.0
  %216 = vmatprep.subr.mxu0 0.0
  %217 = vmatpush1.xpose.msra.mxu0 0.0
  %218 = vmatprep.subr.mxu0 0.0
  %219 = vmatpush1.xpose.msra.mxu0 0.0
  %220 = vmatprep.subr.mxu0 0.0
  %221 = vmatpush1.xpose.msra.mxu0 0.0
  %222 = vmatprep.subr.mxu0 0.0
  %223 = vmatpush1.xpose.msra.mxu0 0.0
  %224 = vmatprep.subr.mxu0 0.0
  %225 = vmatpush1.xpose.msra.mxu0 0.0
  %226 = vmatprep.subr.mxu0 0.0
  %227 = vmatpush1.xpose.msra.mxu0 0.0
  %228 = vmatprep.subr.mxu0 0.0
  %229 = vmatpush1.xpose.msra.mxu0 0.0
  %230 = vmatprep.subr.mxu0 0.0
  %231 = vmatpush1.xpose.msra.mxu0 0.0
  %232 = vmatprep.subr.mxu0 0.0
  %233 = vmatpush1.xpose.msra.mxu0 0.0
  %234 = vmatprep.subr.mxu0 0.0
  %235 = vmatpush1.xpose.msra.mxu0 0.0
  %236 = vmatprep.subr.mxu0 0.0
  %237 = vmatpush1.xpose.msra.mxu0 0.0
  %238 = vmatprep.subr.mxu0 0.0
  %239 = vmatpush1.xpose.msra.mxu0 0.0
  %240 = vmatprep.subr.mxu0 0.0
  %241 = vmatpush1.xpose.msra.mxu0 0.0
  %242 = vmatprep.subr.mxu0 0.0
  %243 = vmatpush1.xpose.msra.mxu0 0.0
  %244 = vmatprep.subr.mxu0 0.0
  %245 = vmatpush1.xpose.msra.mxu0 0.0
  %246 = vmatprep.subr.mxu0 0.0
  %247 = vmatpush1.xpose.msra.mxu0 0.0
  %248 = vmatprep.subr.mxu0 0.0
  %249 = vmatpush1.xpose.msra.mxu0 0.0
  %250 = vmatprep.subr.mxu0 0.0
  %251 = vmatpush1.xpose.msra.mxu0 0.0
  %252 = vmatprep.subr.mxu0 0.0
  %253 = vmatpush1.xpose.msra.mxu0 0.0
  %254 = vmatprep.subr.mxu0 0.0
  %255 = vmatpush1.xpose.msra.mxu0 0.0
  %256 = vmatprep.subr.mxu0 0.0
  %257 = vmatpush1.xpose.msra.mxu0 0.0
  %258 = vmatprep.subr.mxu0 0.0
  %259 = vmatpush1.xpose.msra.mxu0 0.0
  %260 = vmatprep.subr.mxu0 0.0
  %261 = vmatpush1.xpose.msra.mxu0 0.0
  %262 = vmatprep.subr.mxu0 0.0
  %263 = vmatpush1.xpose.msra.mxu0 0.0
  %264 = vmatprep.subr.mxu0 0.0
  %265 = vmatpush1.xpose.msra.mxu0 0.0
  %266 = vmatprep.mubr.f32.mxu0 0.0
  %267 = vmatmul.mubr.f32.gmra.mrb[0].mxu0 %v194
  %v268 = vpop.f32.mrb[0].mxu0
  %v269 = vadd.f32 0.0, %v268
  %v270 = vpop.f32.mrb[0].mxu0
  %271 = vdwg.mxu0
  %273 = vset.pattern.permute.xlu0 0
  %274 = vperm.xlu0 %273, %v25
  %v275 = vpop.permute.xlu0 %274
  %278 = vset.pattern.permute.xlu0 0
  %279 = vperm.xlu0 %278, %v26
  %v280 = vpop.permute.xlu0 %279
  %v284 = vlaneseq
  %v285 = vshrl.u32 %v284, 7
  %v286 = vsub.s32 0, %v285
  %v287 = vrot.slane %v27, %v286
  %v288 = vlaneseq
  %v289 = vshrl.u32 %v288, 7
  %v290 = vsub.s32 0, %v289
  %v291 = vrot.slane %v28, %v290
  %v294 = vmul.f32 %v275, %v287
  %v295 = vmul.f32 %v280, %v291
  %v296 = vmul.f32 %v190, %v294
  %v297 = vmul.f32 %v269, %v295
  %v298 = vtanh.pop %v296
  %v299 = vtanh.pop %v297
  %vm300 = vcmask 122880
  %v301 = vsel %vm300, %v27, 0.0
  %302 = vadd.xlane.f32.xlu0 %v301
  %v303 = vpop.xlane.xlu0 %302
  %v304 = vsel %vm300, %v28, 0.0
  %305 = vadd.xlane.f32.xlu0 %v304
  %v306 = vpop.xlane.xlu0 %305
  %v307 = vadd.f32 %v303, 0.0001
  %v308 = vadd.f32 %v306, 0.0001
  %v309 = vrcp.pop %v307
  %v310 = vmul.f32 1.0, %v309
  %v311 = vrcp.pop %v308
  %v312 = vmul.f32 1.0, %v311
  %v313 = vmul.f32 %v25, 0.01
  %v314 = vmul.f32 %v26, 0.01
  %v315 = vsub.f32 %v298, 1.0
  %v316 = vsub.f32 %v299, 1.0
  %v317 = vmul.f32 %v315, %v315
  %v318 = vmul.f32 %v316, %v316
  %v319 = vsub.f32 0.0, %v317
  %v320 = vsub.f32 0.0, %v318
  %v321 = vmul.f32 %v319, 50000000.0
  %v322 = vmul.f32 %v320, 50000000.0
  %v323 = vmul.f32 %v321, 1.442695
  %v324 = vpow.pop %v323
  %v325 = vmul.f32 %v322, 1.442695
  %v326 = vpow.pop %v325
  %v327 = vmul.f32 %v324, %v294
  %v328 = vmul.f32 %v326, %v295
  %vm329 = vcmask 130048
  %v330 = vsel %vm329, %v327, 0.0
  %331 = vadd.xlane.f32.xlu0 %v330
  %v332 = vpop.xlane.xlu0 %331
  %v333 = vsel %vm329, %v328, 0.0
  %334 = vadd.xlane.f32.xlu0 %v333
  %v335 = vpop.xlane.xlu0 %334
  %v336 = vmax.f32 %v332, 1e-10
  %v337 = vmax.f32 %v335, 1e-10
  %v338 = vlog2.pop %v336
  %v339 = vmul.f32 %v338, 0.6931472
  %v340 = vlog2.pop %v337
  %v341 = vmul.f32 %v340, 0.6931472
  %v342 = vmul.f32 %v339, 1.442695
  %v343 = vmul.f32 %v341, 1.442695
  %v344 = vmul.f32 %v342, %v313
  %v345 = vmul.f32 %v343, %v314
  %vm346 = vcmask 7168
  %v347 = vsel %vm346, %v344, 0.0
  %v348 = vrot.slane %v347, 4
  %v349 = vadd.f32 %v347, %v348
  %v350 = vrot.slane %v349, 2
  %v351 = vadd.f32 %v349, %v350
  %v352 = vrot.slane %v351, 1
  %v353 = vadd.f32 %v351, %v352
  %v354 = vsel %vm346, %v345, 0.0
  %v355 = vrot.slane %v354, 4
  %v356 = vadd.f32 %v354, %v355
  %v357 = vrot.slane %v356, 2
  %v358 = vadd.f32 %v356, %v357
  %v359 = vrot.slane %v358, 1
  %v360 = vadd.f32 %v358, %v359
  %v361 = vlaneseq
  %v362 = vshrl.u32 %v361, 7
  %v363 = vsub.s32 0, %v362
  %v364 = vrot.slane %v310, %v363
  %v365 = vlaneseq
  %v366 = vshrl.u32 %v365, 7
  %v367 = vsub.s32 0, %v366
  %v368 = vrot.slane %v312, %v367
  %v369 = vmul.f32 %v332, %v364
  %v370 = vmul.f32 %v335, %v368
  %v371 = vmul.f32 %v369, %v313
  %v372 = vmul.f32 %v370, %v314
  %v373 = vsel %vm346, %v371, 0.0
  %v374 = vrot.slane %v373, 4
  %v375 = vadd.f32 %v373, %v374
  %v376 = vrot.slane %v375, 2
  %v377 = vadd.f32 %v375, %v376
  %v378 = vrot.slane %v377, 1
  %v379 = vadd.f32 %v377, %v378
  %v380 = vsel %vm346, %v372, 0.0
  %v381 = vrot.slane %v380, 4
  %v382 = vadd.f32 %v380, %v381
  %v383 = vrot.slane %v382, 2
  %v384 = vadd.f32 %v382, %v383
  %v385 = vrot.slane %v384, 1
  %v386 = vadd.f32 %v384, %v385
  %vm387 = vcmp.ge.f32.partialorder %v298, 0.0
  %vm388 = vcmp.ge.f32.partialorder %v299, 0.0
  %v389 = vsel %vm387, 1, 0
  %v390 = vsel %vm388, 1, 0
  %v391 = vcvt.s32.f32 %v389
  %v392 = vcvt.s32.f32 %v390
  %v393 = vmul.f32 %v294, %v391
  %v394 = vmul.f32 %v295, %v392
  %v395 = vsub.f32 %v294, %v393
  %v396 = vsub.f32 %v295, %v394
  %v397 = vmul.f32 %v298, 20.0
  %v398 = vmul.f32 %v299, 20.0
  %v399 = vmul.f32 %v397, 1.442695
  %v400 = vpow.pop %v399
  %v401 = vmul.f32 %v398, 1.442695
  %v402 = vpow.pop %v401
  %v403 = vsub.f32 %v298, -0.9
  %v404 = vsub.f32 %v299, -0.9
  %v405 = vmul.f32 %v403, %v403
  %v406 = vmul.f32 %v404, %v404
  %v407 = vsub.f32 0.0, %v405
  %v408 = vsub.f32 0.0, %v406
  %v409 = vmul.f32 %v407, 50.0
  %v410 = vmul.f32 %v408, 50.0
  %v411 = vmul.f32 %v409, 1.442695
  %v412 = vpow.pop %v411
  %v413 = vmul.f32 %v410, 1.442695
  %v414 = vpow.pop %v413
  %v415 = vmul.f32 %v412, %v395
  %v416 = vmul.f32 %v414, %v396
  %v417 = vsel %vm329, %v415, 0.0
  %418 = vadd.xlane.f32.xlu0 %v417
  %v419 = vpop.xlane.xlu0 %418
  %v420 = vsel %vm329, %v416, 0.0
  %421 = vadd.xlane.f32.xlu0 %v420
  %v422 = vpop.xlane.xlu0 %421
  %v423 = vmul.f32 %v412, %v400
  %v424 = vmul.f32 %v414, %v402
  %v425 = vmul.f32 %v423, 8886111.0
  %v426 = vmul.f32 %v424, 8886111.0
  %v427 = vmul.f32 %v425, %v395
  %v428 = vmul.f32 %v426, %v396
  %v429 = vsel %vm329, %v427, 0.0
  %430 = vadd.xlane.f32.xlu0 %v429
  %v431 = vpop.xlane.xlu0 %430
  %v432 = vsel %vm329, %v428, 0.0
  %433 = vadd.xlane.f32.xlu0 %v432
  %v434 = vpop.xlane.xlu0 %433
  %v435 = vmul.f32 %v425, %v400
  %v436 = vmul.f32 %v426, %v402
  %v437 = vmul.f32 %v435, 162754.8
  %v438 = vmul.f32 %v436, 162754.8
  %v439 = vmul.f32 %v437, %v395
  %v440 = vmul.f32 %v438, %v396
  %v441 = vsel %vm329, %v439, 0.0
  %442 = vadd.xlane.f32.xlu0 %v441
  %v443 = vpop.xlane.xlu0 %442
  %v444 = vsel %vm329, %v440, 0.0
  %445 = vadd.xlane.f32.xlu0 %v444
  %v446 = vpop.xlane.xlu0 %445
  %v447 = vmul.f32 %v437, %v400
  %v448 = vmul.f32 %v438, %v402
  %v449 = vmul.f32 %v447, 2980.958
  %v450 = vmul.f32 %v448, 2980.958
  %v451 = vmul.f32 %v449, %v395
  %v452 = vmul.f32 %v450, %v396
  %v453 = vsel %vm329, %v451, 0.0
  %454 = vadd.xlane.f32.xlu0 %v453
  %v455 = vpop.xlane.xlu0 %454
  %v456 = vsel %vm329, %v452, 0.0
  %457 = vadd.xlane.f32.xlu0 %v456
  %v458 = vpop.xlane.xlu0 %457
  %v459 = vmul.f32 %v449, %v400
  %v460 = vmul.f32 %v450, %v402
  %v461 = vmul.f32 %v459, 54.59815
  %v462 = vmul.f32 %v460, 54.59815
  %v463 = vmul.f32 %v461, %v395
  %v464 = vmul.f32 %v462, %v396
  %v465 = vsel %vm329, %v463, 0.0
  %466 = vadd.xlane.f32.xlu0 %v465
  %v467 = vpop.xlane.xlu0 %466
  %v468 = vsel %vm329, %v464, 0.0
  %469 = vadd.xlane.f32.xlu0 %v468
  %v470 = vpop.xlane.xlu0 %469
  %v471 = vmul.f32 %v461, %v400
  %v472 = vmul.f32 %v462, %v402
  %v473 = vmul.f32 %v471, %v395
  %v474 = vmul.f32 %v472, %v396
  %v475 = vsel %vm329, %v473, 0.0
  %476 = vadd.xlane.f32.xlu0 %v475
  %v477 = vpop.xlane.xlu0 %476
  %v478 = vsel %vm329, %v474, 0.0
  %479 = vadd.xlane.f32.xlu0 %v478
  %v480 = vpop.xlane.xlu0 %479
  %v481 = vmul.f32 %v471, %v400
  %v482 = vmul.f32 %v472, %v402
  %v483 = vmul.f32 %v481, 0.01831564
  %v484 = vmul.f32 %v482, 0.01831564
  %v485 = vmul.f32 %v483, %v395
  %v486 = vmul.f32 %v484, %v396
  %v487 = vsel %vm329, %v485, 0.0
  %488 = vadd.xlane.f32.xlu0 %v487
  %v489 = vpop.xlane.xlu0 %488
  %v490 = vsel %vm329, %v486, 0.0
  %491 = vadd.xlane.f32.xlu0 %v490
  %v492 = vpop.xlane.xlu0 %491
  %v493 = vmul.f32 %v483, %v400
  %v494 = vmul.f32 %v484, %v402
  %v495 = vmul.f32 %v493, 0.00033546262
  %v496 = vmul.f32 %v494, 0.00033546262
  %v497 = vmul.f32 %v495, %v395
  %v498 = vmul.f32 %v496, %v396
  %v499 = vsel %vm329, %v497, 0.0
  %500 = vadd.xlane.f32.xlu0 %v499
  %v501 = vpop.xlane.xlu0 %500
  %v502 = vsel %vm329, %v498, 0.0
  %503 = vadd.xlane.f32.xlu0 %v502
  %v504 = vpop.xlane.xlu0 %503
  %v505 = vmul.f32 %v495, %v400
  %v506 = vmul.f32 %v496, %v402
  %v507 = vmul.f32 %v505, 6.1442124e-06
  %v508 = vmul.f32 %v506, 6.1442124e-06
  %v509 = vmul.f32 %v507, %v395
  %v510 = vmul.f32 %v508, %v396
  %v511 = vsel %vm329, %v509, 0.0
  %512 = vadd.xlane.f32.xlu0 %v511
  %v513 = vpop.xlane.xlu0 %512
  %v514 = vsel %vm329, %v510, 0.0
  %515 = vadd.xlane.f32.xlu0 %v514
  %v516 = vpop.xlane.xlu0 %515
  %v517 = vmul.f32 %v507, %v400
  %v518 = vmul.f32 %v508, %v402
  %v519 = vmul.f32 %v517, 1.12535176e-07
  %v520 = vmul.f32 %v518, 1.12535176e-07
  %v521 = vmul.f32 %v519, %v395
  %v522 = vmul.f32 %v520, %v396
  %v523 = vsel %vm329, %v521, 0.0
  %524 = vadd.xlane.f32.xlu0 %v523
  %v525 = vpop.xlane.xlu0 %524
  %v526 = vsel %vm329, %v522, 0.0
  %527 = vadd.xlane.f32.xlu0 %v526
  %v528 = vpop.xlane.xlu0 %527
  %v529 = vmul.f32 %v298, -20.0
  %v530 = vmul.f32 %v299, -20.0
  %v531 = vmul.f32 %v529, 1.442695
  %v532 = vpow.pop %v531
  %v533 = vmul.f32 %v530, 1.442695
  %v534 = vpow.pop %v533
  %v535 = vsub.f32 %v298, 0.9
  %v536 = vsub.f32 %v299, 0.9
  %v537 = vmul.f32 %v535, %v535
  %v538 = vmul.f32 %v536, %v536
  %v539 = vsub.f32 0.0, %v537
  %v540 = vsub.f32 0.0, %v538
  %v541 = vmul.f32 %v539, 50.0
  %v542 = vmul.f32 %v540, 50.0
  %v543 = vmul.f32 %v541, 1.442695
  %v544 = vpow.pop %v543
  %v545 = vmul.f32 %v542, 1.442695
  %v546 = vpow.pop %v545
  %v547 = vmul.f32 %v544, %v393
  %v548 = vmul.f32 %v546, %v394
  %v549 = vsel %vm329, %v547, 0.0
  %550 = vadd.xlane.f32.xlu0 %v549
  %v551 = vpop.xlane.xlu0 %550
  %v552 = vsel %vm329, %v548, 0.0
  %553 = vadd.xlane.f32.xlu0 %v552
  %v554 = vpop.xlane.xlu0 %553
  %v555 = vadd.f32 %v551, %v525
  %v556 = vadd.f32 %v554, %v528
  %v557 = vmax.f32 %v555, 1e-10
  %v558 = vmax.f32 %v556, 1e-10
  %v559 = vlog2.pop %v557
  %v560 = vmul.f32 %v559, 0.6931472
  %v561 = vlog2.pop %v558
  %v562 = vmul.f32 %v561, 0.6931472
  %v563 = vmul.f32 %v560, 1.442695
  %v564 = vmul.f32 %v562, 1.442695
  %v565 = vmul.f32 %v563, %v313
  %v566 = vmul.f32 %v564, %v314
  %v567 = vsel %vm346, %v565, 0.0
  %v568 = vrot.slane %v567, 4
  %v569 = vadd.f32 %v567, %v568
  %v570 = vrot.slane %v569, 2
  %v571 = vadd.f32 %v569, %v570
  %v572 = vrot.slane %v571, 1
  %v573 = vadd.f32 %v571, %v572
  %v574 = vsel %vm346, %v566, 0.0
  %v575 = vrot.slane %v574, 4
  %v576 = vadd.f32 %v574, %v575
  %v577 = vrot.slane %v576, 2
  %v578 = vadd.f32 %v576, %v577
  %v579 = vrot.slane %v578, 1
  %v580 = vadd.f32 %v578, %v579
  %v581 = vmul.f32 %v555, %v364
  %v582 = vmul.f32 %v556, %v368
  %v583 = vmul.f32 %v581, %v313
  %v584 = vmul.f32 %v582, %v314
  %v585 = vsel %vm346, %v583, 0.0
  %v586 = vrot.slane %v585, 4
  %v587 = vadd.f32 %v585, %v586
  %v588 = vrot.slane %v587, 2
  %v589 = vadd.f32 %v587, %v588
  %v590 = vrot.slane %v589, 1
  %v591 = vadd.f32 %v589, %v590
  %v592 = vsel %vm346, %v584, 0.0
  %v593 = vrot.slane %v592, 4
  %v594 = vadd.f32 %v592, %v593
  %v595 = vrot.slane %v594, 2
  %v596 = vadd.f32 %v594, %v595
  %v597 = vrot.slane %v596, 1
  %v598 = vadd.f32 %v596, %v597
  %v599 = vmul.f32 %v544, %v532
  %v600 = vmul.f32 %v546, %v534
  %v601 = vmul.f32 %v599, 8886111.0
  %v602 = vmul.f32 %v600, 8886111.0
  %v603 = vmul.f32 %v601, %v393
  %v604 = vmul.f32 %v602, %v394
  %v605 = vsel %vm329, %v603, 0.0
  %606 = vadd.xlane.f32.xlu0 %v605
  %v607 = vpop.xlane.xlu0 %606
  %v608 = vsel %vm329, %v604, 0.0
  %609 = vadd.xlane.f32.xlu0 %v608
  %v610 = vpop.xlane.xlu0 %609
  %v611 = vadd.f32 %v607, %v513
  %v612 = vadd.f32 %v610, %v516
  %v613 = vmax.f32 %v611, 1e-10
  %v614 = vmax.f32 %v612, 1e-10
  %v615 = vlog2.pop %v613
  %v616 = vmul.f32 %v615, 0.6931472
  %v617 = vlog2.pop %v614
  %v618 = vmul.f32 %v617, 0.6931472
  %v619 = vmul.f32 %v616, 1.442695
  %v620 = vmul.f32 %v618, 1.442695
  %v621 = vmul.f32 %v619, %v313
  %v622 = vmul.f32 %v620, %v314
  %v623 = vsel %vm346, %v621, 0.0
  %v624 = vrot.slane %v623, 4
  %v625 = vadd.f32 %v623, %v624
  %v626 = vrot.slane %v625, 2
  %v627 = vadd.f32 %v625, %v626
  %v628 = vrot.slane %v627, 1
  %v629 = vadd.f32 %v627, %v628
  %v630 = vsel %vm346, %v622, 0.0
  %v631 = vrot.slane %v630, 4
  %v632 = vadd.f32 %v630, %v631
  %v633 = vrot.slane %v632, 2
  %v634 = vadd.f32 %v632, %v633
  %v635 = vrot.slane %v634, 1
  %v636 = vadd.f32 %v634, %v635
  %v637 = vmul.f32 %v611, %v364
  %v638 = vmul.f32 %v612, %v368
  %v639 = vmul.f32 %v637, %v313
  %v640 = vmul.f32 %v638, %v314
  %v641 = vsel %vm346, %v639, 0.0
  %v642 = vrot.slane %v641, 4
  %v643 = vadd.f32 %v641, %v642
  %v644 = vrot.slane %v643, 2
  %v645 = vadd.f32 %v643, %v644
  %v646 = vrot.slane %v645, 1
  %v647 = vadd.f32 %v645, %v646
  %v648 = vsel %vm346, %v640, 0.0
  %v649 = vrot.slane %v648, 4
  %v650 = vadd.f32 %v648, %v649
  %v651 = vrot.slane %v650, 2
  %v652 = vadd.f32 %v650, %v651
  %v653 = vrot.slane %v652, 1
  %v654 = vadd.f32 %v652, %v653
  %v655 = vmul.f32 %v601, %v532
  %v656 = vmul.f32 %v602, %v534
  %v657 = vmul.f32 %v655, 162754.8
  %v658 = vmul.f32 %v656, 162754.8
  %v659 = vmul.f32 %v657, %v393
  %v660 = vmul.f32 %v658, %v394
  %v661 = vsel %vm329, %v659, 0.0
  %662 = vadd.xlane.f32.xlu0 %v661
  %v663 = vpop.xlane.xlu0 %662
  %v664 = vsel %vm329, %v660, 0.0
  %665 = vadd.xlane.f32.xlu0 %v664
  %v666 = vpop.xlane.xlu0 %665
  %v667 = vadd.f32 %v663, %v501
  %v668 = vadd.f32 %v666, %v504
  %v669 = vmax.f32 %v667, 1e-10
  %v670 = vmax.f32 %v668, 1e-10
  %v671 = vlog2.pop %v669
  %v672 = vmul.f32 %v671, 0.6931472
  %v673 = vlog2.pop %v670
  %v674 = vmul.f32 %v673, 0.6931472
  %v675 = vmul.f32 %v672, 1.442695
  %v676 = vmul.f32 %v674, 1.442695
  %v677 = vmul.f32 %v675, %v313
  %v678 = vmul.f32 %v676, %v314
  %v679 = vsel %vm346, %v677, 0.0
  %v680 = vrot.slane %v679, 4
  %v681 = vadd.f32 %v679, %v680
  %v682 = vrot.slane %v681, 2
  %v683 = vadd.f32 %v681, %v682
  %v684 = vrot.slane %v683, 1
  %v685 = vadd.f32 %v683, %v684
  %v686 = vsel %vm346, %v678, 0.0
  %v687 = vrot.slane %v686, 4
  %v688 = vadd.f32 %v686, %v687
  %v689 = vrot.slane %v688, 2
  %v690 = vadd.f32 %v688, %v689
  %v691 = vrot.slane %v690, 1
  %v692 = vadd.f32 %v690, %v691
  %v693 = vmul.f32 %v667, %v364
  %v694 = vmul.f32 %v668, %v368
  %v695 = vmul.f32 %v693, %v313
  %v696 = vmul.f32 %v694, %v314
  %v697 = vsel %vm346, %v695, 0.0
  %v698 = vrot.slane %v697, 4
  %v699 = vadd.f32 %v697, %v698
  %v700 = vrot.slane %v699, 2
  %v701 = vadd.f32 %v699, %v700
  %v702 = vrot.slane %v701, 1
  %v703 = vadd.f32 %v701, %v702
  %v704 = vsel %vm346, %v696, 0.0
  %v705 = vrot.slane %v704, 4
  %v706 = vadd.f32 %v704, %v705
  %v707 = vrot.slane %v706, 2
  %v708 = vadd.f32 %v706, %v707
  %v709 = vrot.slane %v708, 1
  %v710 = vadd.f32 %v708, %v709
  %v711 = vmul.f32 %v657, %v532
  %v712 = vmul.f32 %v658, %v534
  %v713 = vmul.f32 %v711, 2980.958
  %v714 = vmul.f32 %v712, 2980.958
  %v715 = vmul.f32 %v713, %v393
  %v716 = vmul.f32 %v714, %v394
  %v717 = vsel %vm329, %v715, 0.0
  %718 = vadd.xlane.f32.xlu0 %v717
  %v719 = vpop.xlane.xlu0 %718
  %v720 = vsel %vm329, %v716, 0.0
  %721 = vadd.xlane.f32.xlu0 %v720
  %v722 = vpop.xlane.xlu0 %721
  %v723 = vadd.f32 %v719, %v489
  %v724 = vadd.f32 %v722, %v492
  %v725 = vmax.f32 %v723, 1e-10
  %v726 = vmax.f32 %v724, 1e-10
  %v727 = vlog2.pop %v725
  %v728 = vmul.f32 %v727, 0.6931472
  %v729 = vlog2.pop %v726
  %v730 = vmul.f32 %v729, 0.6931472
  %v731 = vmul.f32 %v728, 1.442695
  %v732 = vmul.f32 %v730, 1.442695
  %v733 = vmul.f32 %v731, %v313
  %v734 = vmul.f32 %v732, %v314
  %v735 = vsel %vm346, %v733, 0.0
  %v736 = vrot.slane %v735, 4
  %v737 = vadd.f32 %v735, %v736
  %v738 = vrot.slane %v737, 2
  %v739 = vadd.f32 %v737, %v738
  %v740 = vrot.slane %v739, 1
  %v741 = vadd.f32 %v739, %v740
  %v742 = vsel %vm346, %v734, 0.0
  %v743 = vrot.slane %v742, 4
  %v744 = vadd.f32 %v742, %v743
  %v745 = vrot.slane %v744, 2
  %v746 = vadd.f32 %v744, %v745
  %v747 = vrot.slane %v746, 1
  %v748 = vadd.f32 %v746, %v747
  %v749 = vmul.f32 %v723, %v364
  %v750 = vmul.f32 %v724, %v368
  %v751 = vmul.f32 %v749, %v313
  %v752 = vmul.f32 %v750, %v314
  %v753 = vsel %vm346, %v751, 0.0
  %v754 = vrot.slane %v753, 4
  %v755 = vadd.f32 %v753, %v754
  %v756 = vrot.slane %v755, 2
  %v757 = vadd.f32 %v755, %v756
  %v758 = vrot.slane %v757, 1
  %v759 = vadd.f32 %v757, %v758
  %v760 = vsel %vm346, %v752, 0.0
  %v761 = vrot.slane %v760, 4
  %v762 = vadd.f32 %v760, %v761
  %v763 = vrot.slane %v762, 2
  %v764 = vadd.f32 %v762, %v763
  %v765 = vrot.slane %v764, 1
  %v766 = vadd.f32 %v764, %v765
  %v767 = vmul.f32 %v713, %v532
  %v768 = vmul.f32 %v714, %v534
  %v769 = vmul.f32 %v767, 54.59815
  %v770 = vmul.f32 %v768, 54.59815
  %v771 = vmul.f32 %v769, %v393
  %v772 = vmul.f32 %v770, %v394
  %v773 = vsel %vm329, %v771, 0.0
  %774 = vadd.xlane.f32.xlu0 %v773
  %v775 = vpop.xlane.xlu0 %774
  %v776 = vsel %vm329, %v772, 0.0
  %777 = vadd.xlane.f32.xlu0 %v776
  %v778 = vpop.xlane.xlu0 %777
  %v779 = vadd.f32 %v775, %v477
  %v780 = vadd.f32 %v778, %v480
  %v781 = vmax.f32 %v779, 1e-10
  %v782 = vmax.f32 %v780, 1e-10
  %v783 = vlog2.pop %v781
  %v784 = vmul.f32 %v783, 0.6931472
  %v785 = vlog2.pop %v782
  %v786 = vmul.f32 %v785, 0.6931472
  %v787 = vmul.f32 %v784, 1.442695
  %v788 = vmul.f32 %v786, 1.442695
  %v789 = vmul.f32 %v787, %v313
  %v790 = vmul.f32 %v788, %v314
  %v791 = vsel %vm346, %v789, 0.0
  %v792 = vrot.slane %v791, 4
  %v793 = vadd.f32 %v791, %v792
  %v794 = vrot.slane %v793, 2
  %v795 = vadd.f32 %v793, %v794
  %v796 = vrot.slane %v795, 1
  %v797 = vadd.f32 %v795, %v796
  %v798 = vsel %vm346, %v790, 0.0
  %v799 = vrot.slane %v798, 4
  %v800 = vadd.f32 %v798, %v799
  %v801 = vrot.slane %v800, 2
  %v802 = vadd.f32 %v800, %v801
  %v803 = vrot.slane %v802, 1
  %v804 = vadd.f32 %v802, %v803
  %v805 = vmul.f32 %v779, %v364
  %v806 = vmul.f32 %v780, %v368
  %v807 = vmul.f32 %v805, %v313
  %v808 = vmul.f32 %v806, %v314
  %v809 = vsel %vm346, %v807, 0.0
  %v810 = vrot.slane %v809, 4
  %v811 = vadd.f32 %v809, %v810
  %v812 = vrot.slane %v811, 2
  %v813 = vadd.f32 %v811, %v812
  %v814 = vrot.slane %v813, 1
  %v815 = vadd.f32 %v813, %v814
  %v816 = vsel %vm346, %v808, 0.0
  %v817 = vrot.slane %v816, 4
  %v818 = vadd.f32 %v816, %v817
  %v819 = vrot.slane %v818, 2
  %v820 = vadd.f32 %v818, %v819
  %v821 = vrot.slane %v820, 1
  %v822 = vadd.f32 %v820, %v821
  %v823 = vmul.f32 %v769, %v532
  %v824 = vmul.f32 %v770, %v534
  %v825 = vmul.f32 %v823, %v393
  %v826 = vmul.f32 %v824, %v394
  %v827 = vsel %vm329, %v825, 0.0
  %828 = vadd.xlane.f32.xlu0 %v827
  %v829 = vpop.xlane.xlu0 %828
  %v830 = vsel %vm329, %v826, 0.0
  %831 = vadd.xlane.f32.xlu0 %v830
  %v832 = vpop.xlane.xlu0 %831
  %v833 = vadd.f32 %v829, %v467
  %v834 = vadd.f32 %v832, %v470
  %v835 = vmax.f32 %v833, 1e-10
  %v836 = vmax.f32 %v834, 1e-10
  %v837 = vlog2.pop %v835
  %v838 = vmul.f32 %v837, 0.6931472
  %v839 = vlog2.pop %v836
  %v840 = vmul.f32 %v839, 0.6931472
  %v841 = vmul.f32 %v838, 1.442695
  %v842 = vmul.f32 %v840, 1.442695
  %v843 = vmul.f32 %v841, %v313
  %v844 = vmul.f32 %v842, %v314
  %v845 = vsel %vm346, %v843, 0.0
  %v846 = vrot.slane %v845, 4
  %v847 = vadd.f32 %v845, %v846
  %v848 = vrot.slane %v847, 2
  %v849 = vadd.f32 %v847, %v848
  %v850 = vrot.slane %v849, 1
  %v851 = vadd.f32 %v849, %v850
  %v852 = vsel %vm346, %v844, 0.0
  %v853 = vrot.slane %v852, 4
  %v854 = vadd.f32 %v852, %v853
  %v855 = vrot.slane %v854, 2
  %v856 = vadd.f32 %v854, %v855
  %v857 = vrot.slane %v856, 1
  %v858 = vadd.f32 %v856, %v857
  %v859 = vmul.f32 %v833, %v364
  %v860 = vmul.f32 %v834, %v368
  %v861 = vmul.f32 %v859, %v313
  %v862 = vmul.f32 %v860, %v314
  %v863 = vsel %vm346, %v861, 0.0
  %v864 = vrot.slane %v863, 4
  %v865 = vadd.f32 %v863, %v864
  %v866 = vrot.slane %v865, 2
  %v867 = vadd.f32 %v865, %v866
  %v868 = vrot.slane %v867, 1
  %v869 = vadd.f32 %v867, %v868
  %v870 = vsel %vm346, %v862, 0.0
  %v871 = vrot.slane %v870, 4
  %v872 = vadd.f32 %v870, %v871
  %v873 = vrot.slane %v872, 2
  %v874 = vadd.f32 %v872, %v873
  %v875 = vrot.slane %v874, 1
  %v876 = vadd.f32 %v874, %v875
  %v877 = vmul.f32 %v823, %v532
  %v878 = vmul.f32 %v824, %v534
  %v879 = vmul.f32 %v877, 0.01831564
  %v880 = vmul.f32 %v878, 0.01831564
  %v881 = vmul.f32 %v879, %v393
  %v882 = vmul.f32 %v880, %v394
  %v883 = vsel %vm329, %v881, 0.0
  %884 = vadd.xlane.f32.xlu0 %v883
  %v885 = vpop.xlane.xlu0 %884
  %v886 = vsel %vm329, %v882, 0.0
  %887 = vadd.xlane.f32.xlu0 %v886
  %v888 = vpop.xlane.xlu0 %887
  %v889 = vadd.f32 %v885, %v455
  %v890 = vadd.f32 %v888, %v458
  %v891 = vmax.f32 %v889, 1e-10
  %v892 = vmax.f32 %v890, 1e-10
  %v893 = vlog2.pop %v891
  %v894 = vmul.f32 %v893, 0.6931472
  %v895 = vlog2.pop %v892
  %v896 = vmul.f32 %v895, 0.6931472
  %v897 = vmul.f32 %v894, 1.442695
  %v898 = vmul.f32 %v896, 1.442695
  %v899 = vmul.f32 %v897, %v313
  %v900 = vmul.f32 %v898, %v314
  %v901 = vsel %vm346, %v899, 0.0
  %v902 = vrot.slane %v901, 4
  %v903 = vadd.f32 %v901, %v902
  %v904 = vrot.slane %v903, 2
  %v905 = vadd.f32 %v903, %v904
  %v906 = vrot.slane %v905, 1
  %v907 = vadd.f32 %v905, %v906
  %v908 = vsel %vm346, %v900, 0.0
  %v909 = vrot.slane %v908, 4
  %v910 = vadd.f32 %v908, %v909
  %v911 = vrot.slane %v910, 2
  %v912 = vadd.f32 %v910, %v911
  %v913 = vrot.slane %v912, 1
  %v914 = vadd.f32 %v912, %v913
  %v915 = vmul.f32 %v889, %v364
  %v916 = vmul.f32 %v890, %v368
  %v917 = vmul.f32 %v915, %v313
  %v918 = vmul.f32 %v916, %v314
  %v919 = vsel %vm346, %v917, 0.0
  %v920 = vrot.slane %v919, 4
  %v921 = vadd.f32 %v919, %v920
  %v922 = vrot.slane %v921, 2
  %v923 = vadd.f32 %v921, %v922
  %v924 = vrot.slane %v923, 1
  %v925 = vadd.f32 %v923, %v924
  %v926 = vsel %vm346, %v918, 0.0
  %v927 = vrot.slane %v926, 4
  %v928 = vadd.f32 %v926, %v927
  %v929 = vrot.slane %v928, 2
  %v930 = vadd.f32 %v928, %v929
  %v931 = vrot.slane %v930, 1
  %v932 = vadd.f32 %v930, %v931
  %v933 = vmul.f32 %v879, %v532
  %v934 = vmul.f32 %v880, %v534
  %v935 = vmul.f32 %v933, 0.00033546262
  %v936 = vmul.f32 %v934, 0.00033546262
  %v937 = vmul.f32 %v935, %v393
  %v938 = vmul.f32 %v936, %v394
  %v939 = vsel %vm329, %v937, 0.0
  %940 = vadd.xlane.f32.xlu0 %v939
  %v941 = vpop.xlane.xlu0 %940
  %v942 = vsel %vm329, %v938, 0.0
  %943 = vadd.xlane.f32.xlu0 %v942
  %v944 = vpop.xlane.xlu0 %943
  %v945 = vadd.f32 %v941, %v443
  %v946 = vadd.f32 %v944, %v446
  %v947 = vmax.f32 %v945, 1e-10
  %v948 = vmax.f32 %v946, 1e-10
  %v949 = vlog2.pop %v947
  %v950 = vmul.f32 %v949, 0.6931472
  %v951 = vlog2.pop %v948
  %v952 = vmul.f32 %v951, 0.6931472
  %v953 = vmul.f32 %v950, 1.442695
  %v954 = vmul.f32 %v952, 1.442695
  %v955 = vmul.f32 %v953, %v313
  %v956 = vmul.f32 %v954, %v314
  %v957 = vsel %vm346, %v955, 0.0
  %v958 = vrot.slane %v957, 4
  %v959 = vadd.f32 %v957, %v958
  %v960 = vrot.slane %v959, 2
  %v961 = vadd.f32 %v959, %v960
  %v962 = vrot.slane %v961, 1
  %v963 = vadd.f32 %v961, %v962
  %v964 = vsel %vm346, %v956, 0.0
  %v965 = vrot.slane %v964, 4
  %v966 = vadd.f32 %v964, %v965
  %v967 = vrot.slane %v966, 2
  %v968 = vadd.f32 %v966, %v967
  %v969 = vrot.slane %v968, 1
  %v970 = vadd.f32 %v968, %v969
  %v971 = vmul.f32 %v945, %v364
  %v972 = vmul.f32 %v946, %v368
  %v973 = vmul.f32 %v971, %v313
  %v974 = vmul.f32 %v972, %v314
  %v975 = vsel %vm346, %v973, 0.0
  %v976 = vrot.slane %v975, 4
  %v977 = vadd.f32 %v975, %v976
  %v978 = vrot.slane %v977, 2
  %v979 = vadd.f32 %v977, %v978
  %v980 = vrot.slane %v979, 1
  %v981 = vadd.f32 %v979, %v980
  %v982 = vsel %vm346, %v974, 0.0
  %v983 = vrot.slane %v982, 4
  %v984 = vadd.f32 %v982, %v983
  %v985 = vrot.slane %v984, 2
  %v986 = vadd.f32 %v984, %v985
  %v987 = vrot.slane %v986, 1
  %v988 = vadd.f32 %v986, %v987
  %v989 = vmul.f32 %v935, %v532
  %v990 = vmul.f32 %v936, %v534
  %v991 = vmul.f32 %v989, 6.1442124e-06
  %v992 = vmul.f32 %v990, 6.1442124e-06
  %v993 = vmul.f32 %v991, %v393
  %v994 = vmul.f32 %v992, %v394
  %v995 = vsel %vm329, %v993, 0.0
  %996 = vadd.xlane.f32.xlu0 %v995
  %v997 = vpop.xlane.xlu0 %996
  %v998 = vsel %vm329, %v994, 0.0
  %999 = vadd.xlane.f32.xlu0 %v998
  %v1000 = vpop.xlane.xlu0 %999
  %v1001 = vadd.f32 %v997, %v431
  %v1002 = vadd.f32 %v1000, %v434
  %v1003 = vmax.f32 %v1001, 1e-10
  %v1004 = vmax.f32 %v1002, 1e-10
  %v1005 = vlog2.pop %v1003
  %v1006 = vmul.f32 %v1005, 0.6931472
  %v1007 = vlog2.pop %v1004
  %v1008 = vmul.f32 %v1007, 0.6931472
  %v1009 = vmul.f32 %v1006, 1.442695
  %v1010 = vmul.f32 %v1008, 1.442695
  %v1011 = vmul.f32 %v1009, %v313
  %v1012 = vmul.f32 %v1010, %v314
  %v1013 = vsel %vm346, %v1011, 0.0
  %v1014 = vrot.slane %v1013, 4
  %v1015 = vadd.f32 %v1013, %v1014
  %v1016 = vrot.slane %v1015, 2
  %v1017 = vadd.f32 %v1015, %v1016
  %v1018 = vrot.slane %v1017, 1
  %v1019 = vadd.f32 %v1017, %v1018
  %v1020 = vsel %vm346, %v1012, 0.0
  %v1021 = vrot.slane %v1020, 4
  %v1022 = vadd.f32 %v1020, %v1021
  %v1023 = vrot.slane %v1022, 2
  %v1024 = vadd.f32 %v1022, %v1023
  %v1025 = vrot.slane %v1024, 1
  %v1026 = vadd.f32 %v1024, %v1025
  %v1027 = vmul.f32 %v1001, %v364
  %v1028 = vmul.f32 %v1002, %v368
  %v1029 = vmul.f32 %v1027, %v313
  %v1030 = vmul.f32 %v1028, %v314
  %v1031 = vsel %vm346, %v1029, 0.0
  %v1032 = vrot.slane %v1031, 4
  %v1033 = vadd.f32 %v1031, %v1032
  %v1034 = vrot.slane %v1033, 2
  %v1035 = vadd.f32 %v1033, %v1034
  %v1036 = vrot.slane %v1035, 1
  %v1037 = vadd.f32 %v1035, %v1036
  %v1038 = vsel %vm346, %v1030, 0.0
  %v1039 = vrot.slane %v1038, 4
  %v1040 = vadd.f32 %v1038, %v1039
  %v1041 = vrot.slane %v1040, 2
  %v1042 = vadd.f32 %v1040, %v1041
  %v1043 = vrot.slane %v1042, 1
  %v1044 = vadd.f32 %v1042, %v1043
  %v1045 = vmul.f32 %v991, %v532
  %v1046 = vmul.f32 %v992, %v534
  %v1047 = vmul.f32 %v1045, 1.12535176e-07
  %v1048 = vmul.f32 %v1046, 1.12535176e-07
  %v1049 = vmul.f32 %v1047, %v393
  %v1050 = vmul.f32 %v1048, %v394
  %v1051 = vsel %vm329, %v1049, 0.0
  %1052 = vadd.xlane.f32.xlu0 %v1051
  %v1053 = vpop.xlane.xlu0 %1052
  %v1054 = vsel %vm329, %v1050, 0.0
  %1055 = vadd.xlane.f32.xlu0 %v1054
  %v1056 = vpop.xlane.xlu0 %1055
  %v1057 = vadd.f32 %v1053, %v419
  %v1058 = vadd.f32 %v1056, %v422
  %v1059 = vmax.f32 %v1057, 1e-10
  %v1060 = vmax.f32 %v1058, 1e-10
  %v1061 = vlog2.pop %v1059
  %v1062 = vmul.f32 %v1061, 0.6931472
  %v1063 = vlog2.pop %v1060
  %v1064 = vmul.f32 %v1063, 0.6931472
  %v1065 = vmul.f32 %v1062, 1.442695
  %v1066 = vmul.f32 %v1064, 1.442695
  %v1067 = vmul.f32 %v1065, %v313
  %v1068 = vmul.f32 %v1066, %v314
  %v1069 = vsel %vm346, %v1067, 0.0
  %v1070 = vrot.slane %v1069, 4
  %v1071 = vadd.f32 %v1069, %v1070
  %v1072 = vrot.slane %v1071, 2
  %v1073 = vadd.f32 %v1071, %v1072
  %v1074 = vrot.slane %v1073, 1
  %v1075 = vadd.f32 %v1073, %v1074
  %v1076 = vsel %vm346, %v1068, 0.0
  %v1077 = vrot.slane %v1076, 4
  %v1078 = vadd.f32 %v1076, %v1077
  %v1079 = vrot.slane %v1078, 2
  %v1080 = vadd.f32 %v1078, %v1079
  %v1081 = vrot.slane %v1080, 1
  %v1082 = vadd.f32 %v1080, %v1081
  %v1083 = vmul.f32 %v1057, %v364
  %v1084 = vmul.f32 %v1058, %v368
  %v1085 = vmul.f32 %v1083, %v313
  %v1086 = vmul.f32 %v1084, %v314
  %v1087 = vsel %vm346, %v1085, 0.0
  %v1088 = vrot.slane %v1087, 4
  %v1089 = vadd.f32 %v1087, %v1088
  %v1090 = vrot.slane %v1089, 2
  %v1091 = vadd.f32 %v1089, %v1090
  %v1092 = vrot.slane %v1091, 1
  %v1093 = vadd.f32 %v1091, %v1092
  %v1094 = vsel %vm346, %v1086, 0.0
  %v1095 = vrot.slane %v1094, 4
  %v1096 = vadd.f32 %v1094, %v1095
  %v1097 = vrot.slane %v1096, 2
  %v1098 = vadd.f32 %v1096, %v1097
  %v1099 = vrot.slane %v1098, 1
  %v1100 = vadd.f32 %v1098, %v1099
  %vm1103 = vcmask 1041409
  %v1104 = vsel %vm1103, %v360, %v353
  %v1108 = vsel %vm1103, %v580, %v573
  %1109 = vrot.lane.b32.xlu0 %v1108, 1
  %v1110 = vpop.permute.xlu0 %1109
  %v1114 = vsel %vm1103, %v636, %v629
  %1115 = vrot.lane.b32.xlu0 %v1114, 2
  %v1116 = vpop.permute.xlu0 %1115
  %v1120 = vsel %vm1103, %v692, %v685
  %1121 = vrot.lane.b32.xlu0 %v1120, 3
  %v1122 = vpop.permute.xlu0 %1121
  %v1126 = vsel %vm1103, %v748, %v741
  %1127 = vrot.lane.b32.xlu0 %v1126, 4
  %v1128 = vpop.permute.xlu0 %1127
  %v1132 = vsel %vm1103, %v804, %v797
  %1133 = vrot.lane.b32.xlu0 %v1132, 5
  %v1134 = vpop.permute.xlu0 %1133
  %v1138 = vsel %vm1103, %v858, %v851
  %1139 = vrot.lane.b32.xlu0 %v1138, 6
  %v1140 = vpop.permute.xlu0 %1139
  %v1144 = vsel %vm1103, %v914, %v907
  %1145 = vrot.lane.b32.xlu0 %v1144, 7
  %v1146 = vpop.permute.xlu0 %1145
  %v1150 = vsel %vm1103, %v970, %v963
  %1151 = vrot.lane.b32.xlu0 %v1150, 8
  %v1152 = vpop.permute.xlu0 %1151
  %v1156 = vsel %vm1103, %v1026, %v1019
  %1157 = vrot.lane.b32.xlu0 %v1156, 9
  %v1158 = vpop.permute.xlu0 %1157
  %v1162 = vsel %vm1103, %v1082, %v1075
  %1163 = vrot.lane.b32.xlu0 %v1162, 10
  %v1164 = vpop.permute.xlu0 %1163
  %v1166 = vsel %vm346, %v1104, %v1110
  %vm1167 = vcmask 15360
  %v1168 = vsel %vm1167, %v1166, %v1116
  %vm1169 = vcmask 23552
  %v1170 = vsel %vm1169, %v1168, %v1122
  %vm1171 = vcmask 31744
  %v1172 = vsel %vm1171, %v1170, %v1128
  %vm1173 = vcmask 39936
  %v1174 = vsel %vm1173, %v1172, %v1134
  %vm1175 = vcmask 48128
  %v1176 = vsel %vm1175, %v1174, %v1140
  %vm1177 = vcmask 56320
  %v1178 = vsel %vm1177, %v1176, %v1146
  %vm1179 = vcmask 64512
  %v1180 = vsel %vm1179, %v1178, %v1152
  %vm1181 = vcmask 72704
  %v1182 = vsel %vm1181, %v1180, %v1158
  %vm1183 = vcmask 80896
  %v1184 = vsel %vm1183, %v1182, %v1164
  %vm1185 = vcmask 82944
  %1186 = vst.msk [vmem:[%s4] sm:$0x3] %vm1185, %v1184
  %v1189 = vsel %vm1103, %v386, %v379
  %v1193 = vsel %vm1103, %v598, %v591
  %1194 = vrot.lane.b32.xlu0 %v1193, 1
  %v1195 = vpop.permute.xlu0 %1194
  %v1199 = vsel %vm1103, %v654, %v647
  %1200 = vrot.lane.b32.xlu0 %v1199, 2
  %v1201 = vpop.permute.xlu0 %1200
  %v1205 = vsel %vm1103, %v710, %v703
  %1206 = vrot.lane.b32.xlu0 %v1205, 3
  %v1207 = vpop.permute.xlu0 %1206
  %v1211 = vsel %vm1103, %v766, %v759
  %1212 = vrot.lane.b32.xlu0 %v1211, 4
  %v1213 = vpop.permute.xlu0 %1212
  %v1217 = vsel %vm1103, %v822, %v815
  %1218 = vrot.lane.b32.xlu0 %v1217, 5
  %v1219 = vpop.permute.xlu0 %1218
  %v1223 = vsel %vm1103, %v876, %v869
  %1224 = vrot.lane.b32.xlu0 %v1223, 6
  %v1225 = vpop.permute.xlu0 %1224
  %v1229 = vsel %vm1103, %v932, %v925
  %1230 = vrot.lane.b32.xlu0 %v1229, 7
  %v1231 = vpop.permute.xlu0 %1230
  %v1235 = vsel %vm1103, %v988, %v981
  %1236 = vrot.lane.b32.xlu0 %v1235, 8
  %v1237 = vpop.permute.xlu0 %1236
  %v1241 = vsel %vm1103, %v1044, %v1037
  %1242 = vrot.lane.b32.xlu0 %v1241, 9
  %v1243 = vpop.permute.xlu0 %1242
  %v1247 = vsel %vm1103, %v1100, %v1093
  %1248 = vrot.lane.b32.xlu0 %v1247, 10
  %v1249 = vpop.permute.xlu0 %1248
  %v1251 = vsel %vm346, %v1189, %v1195
  %v1252 = vsel %vm1167, %v1251, %v1201
  %v1253 = vsel %vm1169, %v1252, %v1207
  %v1254 = vsel %vm1171, %v1253, %v1213
  %v1255 = vsel %vm1173, %v1254, %v1219
  %v1256 = vsel %vm1175, %v1255, %v1225
  %v1257 = vsel %vm1177, %v1256, %v1231
  %v1258 = vsel %vm1179, %v1257, %v1237
  %v1259 = vsel %vm1181, %v1258, %v1243
  %v1260 = vsel %vm1183, %v1259, %v1249
  %1261 = vst.msk [vmem:[%s5] sm:$0x3] %vm1185, %v1260
  // Predicated region
  $region18: #{fk_forward.5} parent=0 // pred_check
    _
  $region19: #{fk_forward.5} parent=0 // pred_check_branch
    %1263 = sbr.rel (0) target = $region21
  $region20: #{fk_forward.5} parent=0 // pred_region
    _
  $region21: #{fk_forward.5} parent=0 // pred_fallthru
    _
  // Predicated region
  $region22: #{fk_forward.5} parent=0 // pred_check
    _
  $region23: #{fk_forward.5} parent=0 // pred_check_branch
    %1265 = sbr.rel (0) target = $region25
  $region24: #{fk_forward.5} parent=0 // pred_region
    _
  $region25: #{fk_forward.5} parent=0 // pred_fallthru
    _
  // Predicated region
  $region26: #{fk_forward.5} parent=0 // pred_check
    _
  $region27: #{fk_forward.5} parent=0 // pred_check_branch
    %1267 = sbr.rel (0) target = $region29
  $region28: #{fk_forward.5} parent=0 // pred_region
    _
  $region29: #{fk_forward.5} parent=0 // pred_fallthru
    _
  // Predicated region
  $region30: #{fk_forward.5} parent=0 // pred_check
    _
  $region31: #{fk_forward.5} parent=0 // pred_check_branch
    %1269 = sbr.rel (0) target = $region33
  $region32: #{fk_forward.5} parent=0 // pred_region
    _
  $region33: #{fk_forward.5} parent=0 // pred_fallthru
    _

// kernel: fk_forward.4
$region0: #{fk_forward.4}
  #allocation0 [shape = 'u32[]', space=smem, size = 0x4, offset = 0x4, fixed_abs, tag = 'smem constant byte address 0x4 - core index']
  #allocation1 [shape = 'u32[144,128]{1,0:T(1,128)}', space=vmem, size = 0x12000, scoped, tag = 'internal scratch']
  %s0 = inlined_call_operand.vmem [shape: f32[2,16,32], index: 0, kind: input, shape index: {}]
  %s1 = inlined_call_operand.vmem [shape: f32[2,16,1], index: 1, kind: input, shape index: {}]
  %s2 = inlined_call_operand.vmem [shape: bf16[16,16], index: 2, kind: input, shape index: {}]
  %s3 = inlined_call_operand.vmem [shape: bf16[16,16], index: 3, kind: input, shape index: {}]
  %s4 = inlined_call_operand.vmem [shape: bf16[32,32], index: 4, kind: input, shape index: {}]
  %s5 = inlined_call_operand.vmem [shape: bf16[32,32], index: 5, kind: input, shape index: {}]
  %s6 = inlined_call_operand.vmem [shape: f32[2,1,32], index: 6, kind: input, shape index: {}, may-alias: {6,12}]
  %s7 = inlined_call_operand.vmem [shape: f32[2,1,32], index: 7, kind: input, shape index: {}, may-alias: {7,13}]
  %s8 = inlined_call_operand.vmem [shape: bf16[2,32,64], index: 8, kind: input, shape index: {}]
  %s9 = inlined_call_operand.vmem [shape: f32[2,1,64], index: 9, kind: input, shape index: {}]
  %s10 = inlined_call_operand.vmem [shape: bf16[2,64,32], index: 10, kind: input, shape index: {}]
  %s11 = inlined_call_operand.vmem [shape: f32[2,1,32], index: 11, kind: input, shape index: {}]
  %s12 = inlined_call_operand.vmem [shape: f32[2,1,32], index: 12, kind: input, shape index: {}, may-alias: {6,12}]
  %s13 = inlined_call_operand.vmem [shape: f32[2,1,32], index: 13, kind: input, shape index: {}, may-alias: {7,13}]
  %s14 = inlined_call_operand.vmem [shape: f32[2,16,32], index: 14, kind: output, shape index: {}]
  %s15 = sld [smem:[#allocation0]]
  $region89: #{fk_forward.4} parent=0
    _
  %s17 = ssub.s32 1, %s15
  %s18 = scalar_select 0, %s17, %s15
  loop: start=0, step=1, limit=4
  $region2: #{fk_forward.4} parent=0 // loop_pre_header
    _
  $region3: #{fk_forward.4} parent=0 // loop_header
    %s20 = sphi 0, %s24
    %p21 = scmp.ge.s32.totalorder %s20, 4
    %s30 = sphi 0, %s32
    %s33 = sphi 0, %s30
    %s34 = sphi 0, %s33
    %s50 = sphi 0, %s34
    %s56 = sphi 0, %s58
    %s59 = sphi 0, %s56
    %s60 = sphi 0, %s59
    %s76 = sphi 0, %s60
    %s80 = sphi 0, %s80
    %s82 = sphi 0, %s80
    %s83 = sphi 0, %s82
    %s97 = sphi 0, %s83
    %s101 = sphi 0, %s101
    %s103 = sphi 0, %s101
    %s104 = sphi 0, %s103
    %s118 = sphi 0, %s104
    %s122 = sphi 0, %s122
    %s124 = sphi 0, %s122
    %s125 = sphi 0, %s124
    %s139 = sphi 0, %s125
    %s143 = sphi 0, %s143
    %s145 = sphi 0, %s143
    %s146 = sphi 0, %s145
    %s160 = sphi 0, %s146
    %s164 = sphi 0, %s164
    %s166 = sphi 0, %s164
    %s167 = sphi 0, %s166
    %s181 = sphi 0, %s167
    %s185 = sphi 0, %s185
    %s187 = sphi 0, %s185
    %s188 = sphi 0, %s187
    %s202 = sphi 0, %s188
    %s206 = sphi 0, %s206
    %s208 = sphi 0, %s206
    %s209 = sphi 0, %s208
    %s223 = sphi 0, %s209
    %s227 = sphi 0, %s227
    %s229 = sphi 0, %s227
    %s230 = sphi 0, %s229
    %s244 = sphi 0, %s230
    %s248 = sphi 0, %s248
    %s250 = sphi 0, %s248
    %s251 = sphi 0, %s250
    %s265 = sphi 0, %s251
    %s269 = sphi 0, %s269
    %s271 = sphi 0, %s269
    %s272 = sphi 0, %s271
    %s286 = sphi 0, %s272
    %s290 = sphi 0, %s290
    %s292 = sphi 0, %s290
    %s293 = sphi 0, %s292
    %s307 = sphi 0, %s293
    %s311 = sphi 0, %s311
    %s313 = sphi 0, %s311
    %s314 = sphi 0, %s313
    %s328 = sphi 0, %s314
    %s334 = sphi 0, %s336
    %s337 = sphi 0, %s334
    %s338 = sphi 0, %s337
    %s354 = sphi 0, %s338
  $region4: #{fk_forward.4} parent=0 // loop_header_branch
    %23 = sbr.rel (%p21) target = $region8
  $region5: #{fk_forward.4} parent=0 // loop_body
    %s25 = ssub.s32 %s20, 1
    %s26 = ssub.s32 %s20, 2
    %s27 = sadd.s32 %s20, 1
    %s28 = ssub.s32 %s20, %s27
    %p29 = scmp.eq.s32.totalorder %s28, 0
    %s31 = sadd.s32 %s30, 1
    %s32 = scalar_select %p29, %s30, %s31
    %p35 = pneg %p29
    %p36 = scmp.eq.s32.totalorder %s20, 1
    %p37 = por %p35, %p36
    %p38 = scmp.ne.s32.totalorder %s30, %s33
    %p39 = scmp.eq.s32.totalorder %s20, 0
    %p40 = por %p38, %p39
    %p41 = scmp.ne.s32.totalorder %s30, %s33
    %p42 = scmp.eq.s32.totalorder %s25, 1
    %p43 = por %p41, %p42
    %p44 = scmp.ne.s32.totalorder %s33, %s34
    %p45 = scmp.eq.s32.totalorder %s25, 0
    %p46 = por %p44, %p45
    %p47 = scmp.ne.s32.totalorder %s33, %s34
    %p48 = scmp.eq.s32.totalorder %s26, 1
    %p49 = por %p47, %p48
    %p51 = scmp.ne.s32.totalorder %s34, %s50
    %p52 = scmp.eq.s32.totalorder %s26, 0
    %p53 = por %p51, %p52
    %s54 = ssub.s32 %s20, %s27
    %p55 = scmp.eq.s32.totalorder %s54, 0
    %s57 = sadd.s32 %s56, 1
    %s58 = scalar_select %p55, %s56, %s57
    %p61 = pneg %p55
    %p62 = scmp.eq.s32.totalorder %s20, 1
    %p63 = por %p61, %p62
    %p64 = scmp.ne.s32.totalorder %s56, %s59
    %p65 = scmp.eq.s32.totalorder %s20, 0
    %p66 = por %p64, %p65
    %p67 = scmp.ne.s32.totalorder %s56, %s59
    %p68 = scmp.eq.s32.totalorder %s25, 1
    %p69 = por %p67, %p68
    %p70 = scmp.ne.s32.totalorder %s59, %s60
    %p71 = scmp.eq.s32.totalorder %s25, 0
    %p72 = por %p70, %p71
    %p73 = scmp.ne.s32.totalorder %s59, %s60
    %p74 = scmp.eq.s32.totalorder %s26, 1
    %p75 = por %p73, %p74
    %p77 = scmp.ne.s32.totalorder %s60, %s76
    %p78 = scmp.eq.s32.totalorder %s26, 0
    %p79 = por %p77, %p78
    %s81 = sadd.s32 %s80, 1
    %p84 = scmp.eq.s32.totalorder %s20, 1
    %p85 = scmp.ne.s32.totalorder %s80, %s82
    %p86 = scmp.eq.s32.totalorder %s20, 0
    %p87 = por %p85, %p86
    %p88 = scmp.ne.s32.totalorder %s80, %s82
    %p89 = scmp.eq.s32.totalorder %s25, 1
    %p90 = por %p88, %p89
    %p91 = scmp.ne.s32.totalorder %s82, %s83
    %p92 = scmp.eq.s32.totalorder %s25, 0
    %p93 = por %p91, %p92
    %p94 = scmp.ne.s32.totalorder %s82, %s83
    %p95 = scmp.eq.s32.totalorder %s26, 1
    %p96 = por %p94, %p95
    %p98 = scmp.ne.s32.totalorder %s83, %s97
    %p99 = scmp.eq.s32.totalorder %s26, 0
    %p100 = por %p98, %p99
    %s102 = sadd.s32 %s101, 1
    %p105 = scmp.eq.s32.totalorder %s20, 1
    %p106 = scmp.ne.s32.totalorder %s101, %s103
    %p107 = scmp.eq.s32.totalorder %s20, 0
    %p108 = por %p106, %p107
    %p109 = scmp.ne.s32.totalorder %s101, %s103
    %p110 = scmp.eq.s32.totalorder %s25, 1
    %p111 = por %p109, %p110
    %p112 = scmp.ne.s32.totalorder %s103, %s104
    %p113 = scmp.eq.s32.totalorder %s25, 0
    %p114 = por %p112, %p113
    %p115 = scmp.ne.s32.totalorder %s103, %s104
    %p116 = scmp.eq.s32.totalorder %s26, 1
    %p117 = por %p115, %p116
    %p119 = scmp.ne.s32.totalorder %s104, %s118
    %p120 = scmp.eq.s32.totalorder %s26, 0
    %p121 = por %p119, %p120
    %s123 = sadd.s32 %s122, 1
    %p126 = scmp.eq.s32.totalorder %s20, 1
    %p127 = scmp.ne.s32.totalorder %s122, %s124
    %p128 = scmp.eq.s32.totalorder %s20, 0
    %p129 = por %p127, %p128
    %p130 = scmp.ne.s32.totalorder %s122, %s124
    %p131 = scmp.eq.s32.totalorder %s25, 1
    %p132 = por %p130, %p131
    %p133 = scmp.ne.s32.totalorder %s124, %s125
    %p134 = scmp.eq.s32.totalorder %s25, 0
    %p135 = por %p133, %p134
    %p136 = scmp.ne.s32.totalorder %s124, %s125
    %p137 = scmp.eq.s32.totalorder %s26, 1
    %p138 = por %p136, %p137
    %p140 = scmp.ne.s32.totalorder %s125, %s139
    %p141 = scmp.eq.s32.totalorder %s26, 0
    %p142 = por %p140, %p141
    %s144 = sadd.s32 %s143, 1
    %p147 = scmp.eq.s32.totalorder %s20, 1
    %p148 = scmp.ne.s32.totalorder %s143, %s145
    %p149 = scmp.eq.s32.totalorder %s20, 0
    %p150 = por %p148, %p149
    %p151 = scmp.ne.s32.totalorder %s143, %s145
    %p152 = scmp.eq.s32.totalorder %s25, 1
    %p153 = por %p151, %p152
    %p154 = scmp.ne.s32.totalorder %s145, %s146
    %p155 = scmp.eq.s32.totalorder %s25, 0
    %p156 = por %p154, %p155
    %p157 = scmp.ne.s32.totalorder %s145, %s146
    %p158 = scmp.eq.s32.totalorder %s26, 1
    %p159 = por %p157, %p158
    %p161 = scmp.ne.s32.totalorder %s146, %s160
    %p162 = scmp.eq.s32.totalorder %s26, 0
    %p163 = por %p161, %p162
    %s165 = sadd.s32 %s164, 1
    %p168 = scmp.eq.s32.totalorder %s20, 1
    %p169 = scmp.ne.s32.totalorder %s164, %s166
    %p170 = scmp.eq.s32.totalorder %s20, 0
    %p171 = por %p169, %p170
    %p172 = scmp.ne.s32.totalorder %s164, %s166
    %p173 = scmp.eq.s32.totalorder %s25, 1
    %p174 = por %p172, %p173
    %p175 = scmp.ne.s32.totalorder %s166, %s167
    %p176 = scmp.eq.s32.totalorder %s25, 0
    %p177 = por %p175, %p176
    %p178 = scmp.ne.s32.totalorder %s166, %s167
    %p179 = scmp.eq.s32.totalorder %s26, 1
    %p180 = por %p178, %p179
    %p182 = scmp.ne.s32.totalorder %s167, %s181
    %p183 = scmp.eq.s32.totalorder %s26, 0
    %p184 = por %p182, %p183
    %s186 = sadd.s32 %s185, 1
    %p189 = scmp.eq.s32.totalorder %s20, 1
    %p190 = scmp.ne.s32.totalorder %s185, %s187
    %p191 = scmp.eq.s32.totalorder %s20, 0
    %p192 = por %p190, %p191
    %p193 = scmp.ne.s32.totalorder %s185, %s187
    %p194 = scmp.eq.s32.totalorder %s25, 1
    %p195 = por %p193, %p194
    %p196 = scmp.ne.s32.totalorder %s187, %s188
    %p197 = scmp.eq.s32.totalorder %s25, 0
    %p198 = por %p196, %p197
    %p199 = scmp.ne.s32.totalorder %s187, %s188
    %p200 = scmp.eq.s32.totalorder %s26, 1
    %p201 = por %p199, %p200
    %p203 = scmp.ne.s32.totalorder %s188, %s202
    %p204 = scmp.eq.s32.totalorder %s26, 0
    %p205 = por %p203, %p204
    %s207 = sadd.s32 %s206, 1
    %p210 = scmp.eq.s32.totalorder %s20, 1
    %p211 = scmp.ne.s32.totalorder %s206, %s208
    %p212 = scmp.eq.s32.totalorder %s20, 0
    %p213 = por %p211, %p212
    %p214 = scmp.ne.s32.totalorder %s206, %s208
    %p215 = scmp.eq.s32.totalorder %s25, 1
    %p216 = por %p214, %p215
    %p217 = scmp.ne.s32.totalorder %s208, %s209
    %p218 = scmp.eq.s32.totalorder %s25, 0
    %p219 = por %p217, %p218
    %p220 = scmp.ne.s32.totalorder %s208, %s209
    %p221 = scmp.eq.s32.totalorder %s26, 1
    %p222 = por %p220, %p221
    %p224 = scmp.ne.s32.totalorder %s209, %s223
    %p225 = scmp.eq.s32.totalorder %s26, 0
    %p226 = por %p224, %p225
    %s228 = sadd.s32 %s227, 1
    %p231 = scmp.eq.s32.totalorder %s20, 1
    %p232 = scmp.ne.s32.totalorder %s227, %s229
    %p233 = scmp.eq.s32.totalorder %s20, 0
    %p234 = por %p232, %p233
    %p235 = scmp.ne.s32.totalorder %s227, %s229
    %p236 = scmp.eq.s32.totalorder %s25, 1
    %p237 = por %p235, %p236
    %p238 = scmp.ne.s32.totalorder %s229, %s230
    %p239 = scmp.eq.s32.totalorder %s25, 0
    %p240 = por %p238, %p239
    %p241 = scmp.ne.s32.totalorder %s229, %s230
    %p242 = scmp.eq.s32.totalorder %s26, 1
    %p243 = por %p241, %p242
    %p245 = scmp.ne.s32.totalorder %s230, %s244
    %p246 = scmp.eq.s32.totalorder %s26, 0
    %p247 = por %p245, %p246
    %s249 = sadd.s32 %s248, 1
    %p252 = scmp.eq.s32.totalorder %s20, 1
    %p253 = scmp.ne.s32.totalorder %s248, %s250
    %p254 = scmp.eq.s32.totalorder %s20, 0
    %p255 = por %p253, %p254
    %p256 = scmp.ne.s32.totalorder %s248, %s250
    %p257 = scmp.eq.s32.totalorder %s25, 1
    %p258 = por %p256, %p257
    %p259 = scmp.ne.s32.totalorder %s250, %s251
    %p260 = scmp.eq.s32.totalorder %s25, 0
    %p261 = por %p259, %p260
    %p262 = scmp.ne.s32.totalorder %s250, %s251
    %p263 = scmp.eq.s32.totalorder %s26, 1
    %p264 = por %p262, %p263
    %p266 = scmp.ne.s32.totalorder %s251, %s265
    %p267 = scmp.eq.s32.totalorder %s26, 0
    %p268 = por %p266, %p267
    %s270 = sadd.s32 %s269, 1
    %p273 = scmp.eq.s32.totalorder %s20, 1
    %p274 = scmp.ne.s32.totalorder %s269, %s271
    %p275 = scmp.eq.s32.totalorder %s20, 0
    %p276 = por %p274, %p275
    %p277 = scmp.ne.s32.totalorder %s269, %s271
    %p278 = scmp.eq.s32.totalorder %s25, 1
    %p279 = por %p277, %p278
    %p280 = scmp.ne.s32.totalorder %s271, %s272
    %p281 = scmp.eq.s32.totalorder %s25, 0
    %p282 = por %p280, %p281
    %p283 = scmp.ne.s32.totalorder %s271, %s272
    %p284 = scmp.eq.s32.totalorder %s26, 1
    %p285 = por %p283, %p284
    %p287 = scmp.ne.s32.totalorder %s272, %s286
    %p288 = scmp.eq.s32.totalorder %s26, 0
    %p289 = por %p287, %p288
    %s291 = sadd.s32 %s290, 1
    %p294 = scmp.eq.s32.totalorder %s20, 1
    %p295 = scmp.ne.s32.totalorder %s290, %s292
    %p296 = scmp.eq.s32.totalorder %s20, 0
    %p297 = por %p295, %p296
    %p298 = scmp.ne.s32.totalorder %s290, %s292
    %p299 = scmp.eq.s32.totalorder %s25, 1
    %p300 = por %p298, %p299
    %p301 = scmp.ne.s32.totalorder %s292, %s293
    %p302 = scmp.eq.s32.totalorder %s25, 0
    %p303 = por %p301, %p302
    %p304 = scmp.ne.s32.totalorder %s292, %s293
    %p305 = scmp.eq.s32.totalorder %s26, 1
    %p306 = por %p304, %p305
    %p308 = scmp.ne.s32.totalorder %s293, %s307
    %p309 = scmp.eq.s32.totalorder %s26, 0
    %p310 = por %p308, %p309
    %s312 = sadd.s32 %s311, 1
    %p315 = scmp.eq.s32.totalorder %s20, 1
    %p316 = scmp.ne.s32.totalorder %s311, %s313
    %p317 = scmp.eq.s32.totalorder %s20, 0
    %p318 = por %p316, %p317
    %p319 = scmp.ne.s32.totalorder %s311, %s313
    %p320 = scmp.eq.s32.totalorder %s25, 1
    %p321 = por %p319, %p320
    %p322 = scmp.ne.s32.totalorder %s313, %s314
    %p323 = scmp.eq.s32.totalorder %s25, 0
    %p324 = por %p322, %p323
    %p325 = scmp.ne.s32.totalorder %s313, %s314
    %p326 = scmp.eq.s32.totalorder %s26, 1
    %p327 = por %p325, %p326
    %p329 = scmp.ne.s32.totalorder %s314, %s328
    %p330 = scmp.eq.s32.totalorder %s26, 0
    %p331 = por %p329, %p330
    %s332 = ssub.s32 %s20, %s27
    %p333 = scmp.eq.s32.totalorder %s332, 0
    %s335 = sadd.s32 %s334, 1
    %s336 = scalar_select %p333, %s334, %s335
    %p339 = pneg %p333
    %p340 = scmp.eq.s32.totalorder %s20, 1
    %p341 = por %p339, %p340
    %p342 = scmp.ne.s32.totalorder %s334, %s337
    %p343 = scmp.eq.s32.totalorder %s20, 0
    %p344 = por %p342, %p343
    %p345 = scmp.ne.s32.totalorder %s334, %s337
    %p346 = scmp.eq.s32.totalorder %s25, 1
    %p347 = por %p345, %p346
    %p348 = scmp.ne.s32.totalorder %s337, %s338
    %p349 = scmp.eq.s32.totalorder %s25, 0
    %p350 = por %p348, %p349
    %p351 = scmp.ne.s32.totalorder %s337, %s338
    %p352 = scmp.eq.s32.totalorder %s26, 1
    %p353 = por %p351, %p352
    %p355 = scmp.ne.s32.totalorder %s338, %s354
    %p356 = scmp.eq.s32.totalorder %s26, 0
    %p357 = por %p355, %p356
    %p358 = scmp.le.s32.totalorder 1, %s20
    %p359 = scmp.lt.s32.totalorder %s20, 3
    %p360 = pnand %p358, %p359
    %p361 = pneg %p360
    // Predicated region
    $region9: #{fk_forward.4} parent=5 // pred_check
      _
    $region10: #{fk_forward.4} parent=5 // pred_check_branch
      %363 = sbr.rel (%p360) target = $region12
    $region11: #{fk_forward.4} parent=5 // pred_region
      %s364 = ssub.s32 %s20, 1
      // Predicated region
      $region13: #{fk_forward.4} parent=11 // pred_check
        %p365 = pneg %p93
      $region14: #{fk_forward.4} parent=11 // pred_check_branch
        %367 = sbr.rel (%p365) target = $region16
      $region15: #{fk_forward.4} parent=11 // pred_region
        _
      $region16: #{fk_forward.4} parent=11 // pred_fallthru
        _
      // Predicated region
      $region17: #{fk_forward.4} parent=11 // pred_check
        %p368 = pneg %p114
      $region18: #{fk_forward.4} parent=11 // pred_check_branch
        %370 = sbr.rel (%p368) target = $region20
      $region19: #{fk_forward.4} parent=11 // pred_region
        _
      $region20: #{fk_forward.4} parent=11 // pred_fallthru
        _
      // Predicated region
      $region21: #{fk_forward.4} parent=11 // pred_check
        %p371 = pneg %p135
      $region22: #{fk_forward.4} parent=11 // pred_check_branch
        %373 = sbr.rel (%p371) target = $region24
      $region23: #{fk_forward.4} parent=11 // pred_region
        _
      $region24: #{fk_forward.4} parent=11 // pred_fallthru
        _
      // Predicated region
      $region25: #{fk_forward.4} parent=11 // pred_check
        %p374 = pneg %p156
      $region26: #{fk_forward.4} parent=11 // pred_check_branch
        %376 = sbr.rel (%p374) target = $region28
      $region27: #{fk_forward.4} parent=11 // pred_region
        _
      $region28: #{fk_forward.4} parent=11 // pred_fallthru
        _
      // Predicated region
      $region29: #{fk_forward.4} parent=11 // pred_check
        %p377 = pneg %p177
      $region30: #{fk_forward.4} parent=11 // pred_check_branch
        %379 = sbr.rel (%p377) target = $region32
      $region31: #{fk_forward.4} parent=11 // pred_region
        _
      $region32: #{fk_forward.4} parent=11 // pred_fallthru
        _
      // Predicated region
      $region33: #{fk_forward.4} parent=11 // pred_check
        %p380 = pneg %p198
      $region34: #{fk_forward.4} parent=11 // pred_check_branch
        %382 = sbr.rel (%p380) target = $region36
      $region35: #{fk_forward.4} parent=11 // pred_region
        _
      $region36: #{fk_forward.4} parent=11 // pred_fallthru
        _
      // Predicated region
      $region37: #{fk_forward.4} parent=11 // pred_check
        %p383 = pneg %p219
      $region38: #{fk_forward.4} parent=11 // pred_check_branch
        %385 = sbr.rel (%p383) target = $region40
      $region39: #{fk_forward.4} parent=11 // pred_region
        _
      $region40: #{fk_forward.4} parent=11 // pred_fallthru
        _
      // Predicated region
      $region41: #{fk_forward.4} parent=11 // pred_check
        %p386 = pneg %p240
      $region42: #{fk_forward.4} parent=11 // pred_check_branch
        %388 = sbr.rel (%p386) target = $region44
      $region43: #{fk_forward.4} parent=11 // pred_region
        _
      $region44: #{fk_forward.4} parent=11 // pred_fallthru
        _
      // Predicated region
      $region45: #{fk_forward.4} parent=11 // pred_check
        %p389 = pneg %p261
      $region46: #{fk_forward.4} parent=11 // pred_check_branch
        %391 = sbr.rel (%p389) target = $region48
      $region47: #{fk_forward.4} parent=11 // pred_region
        _
      $region48: #{fk_forward.4} parent=11 // pred_fallthru
        _
      // Predicated region
      $region49: #{fk_forward.4} parent=11 // pred_check
        %p392 = pneg %p282
      $region50: #{fk_forward.4} parent=11 // pred_check_branch
        %394 = sbr.rel (%p392) target = $region52
      $region51: #{fk_forward.4} parent=11 // pred_region
        _
      $region52: #{fk_forward.4} parent=11 // pred_fallthru
        _
      // Predicated region
      $region53: #{fk_forward.4} parent=11 // pred_check
        %p395 = pneg %p303
      $region54: #{fk_forward.4} parent=11 // pred_check_branch
        %397 = sbr.rel (%p395) target = $region56
      $region55: #{fk_forward.4} parent=11 // pred_region
        _
      $region56: #{fk_forward.4} parent=11 // pred_fallthru
        _
      // Predicated region
      $region57: #{fk_forward.4} parent=11 // pred_check
        %p398 = pneg %p324
      $region58: #{fk_forward.4} parent=11 // pred_check_branch
        %400 = sbr.rel (%p398) target = $region60
      $region59: #{fk_forward.4} parent=11 // pred_region
        _
      $region60: #{fk_forward.4} parent=11 // pred_fallthru
        _
    $region12: #{fk_forward.4} parent=5 // pred_fallthru
      _
    %p401 = scmp.lt.s32.totalorder %s20, 2
    // Predicated region
    $region61: #{fk_forward.4} parent=5 // pred_check
      %p402 = pneg %p401
    $region62: #{fk_forward.4} parent=5 // pred_check_branch
      %404 = sbr.rel (%p402) target = $region64
    $region63: #{fk_forward.4} parent=5 // pred_region
      // Predicated region
      $region65: #{fk_forward.4} parent=63 // pred_check
        %p405 = pneg %p40
      $region66: #{fk_forward.4} parent=63 // pred_check_branch
        %407 = sbr.rel (%p405) target = $region68
      $region67: #{fk_forward.4} parent=63 // pred_region
        %p408 = scmp.lt.s32.totalorder %s20, 1
        %s409 = scalar_select %p408, %s20, 1
        %s410 = smul.addr %s409, 2
        %s411 = smul.addr %s410, 8
        %s412 = scalar_lea.vmem %s0, %s411
      $region68: #{fk_forward.4} parent=63 // pred_fallthru
        _
      // Predicated region
      $region69: #{fk_forward.4} parent=63 // pred_check
        %p413 = pneg %p66
      $region70: #{fk_forward.4} parent=63 // pred_check_branch
        %415 = sbr.rel (%p413) target = $region72
      $region71: #{fk_forward.4} parent=63 // pred_region
        %p416 = scmp.lt.s32.totalorder %s20, 1
        %s417 = scalar_select %p416, %s20, 1
        %s418 = smul.addr %s417, 2
        %s419 = smul.addr %s418, 8
        %s420 = scalar_lea.vmem %s1, %s419
      $region72: #{fk_forward.4} parent=63 // pred_fallthru
        _
    $region64: #{fk_forward.4} parent=5 // pred_fallthru
      _
    %p421 = scmp.le.s32.totalorder 1, %s20
    %p422 = scmp.lt.s32.totalorder %s20, 3
    %p423 = pnand %p421, %p422
    %p424 = pneg %p423
    // Predicated region
    $region73: #{fk_forward.4} parent=5 // pred_check
      _
    $region74: #{fk_forward.4} parent=5 // pred_check_branch
      %426 = sbr.rel (%p423) target = $region76
    $region75: #{fk_forward.4} parent=5 // pred_region
      %s427 = ssub.s32 %s20, 1
      %p428 = scmp.lt.s32.totalorder %s25, 1
      %s429 = scalar_select %p428, %s25, 1
      %s430 = smul.addr %s429, 2
      %s431 = smul.addr %s430, 8
      %s432 = scalar_lea.vmem %s0, %s431
      %p433 = pneg %p46
      %p434 = pneg %p43
      %p435 = scmp.lt.s32.totalorder %s25, 1
      %s436 = scalar_select %p435, %s25, 1
      %s437 = smul.addr %s436, 2
      %s438 = smul.addr %s437, 8
      %s439 = scalar_lea.vmem %s1, %s438
      %p440 = pneg %p72
      %p441 = pneg %p69
      %p442 = pneg %p93
      %p443 = pneg %p90
      %p444 = pneg %p114
      %p445 = pneg %p111
      %p446 = pneg %p135
      %p447 = pneg %p132
      %p448 = pneg %p156
      %p449 = pneg %p153
      %p450 = pneg %p177
      %p451 = pneg %p174
      %p452 = pneg %p198
      %p453 = pneg %p195
      %p454 = pneg %p219
      %p455 = pneg %p216
      %p456 = pneg %p240
      %p457 = pneg %p237
      %p458 = pneg %p261
      %p459 = pneg %p258
      %p460 = pneg %p282
      %p461 = pneg %p279
      %p462 = pneg %p303
      %p463 = pneg %p300
      %p464 = pneg %p324
      %p465 = pneg %p321
      %p466 = pneg %p350
      %p467 = pneg %p347
      %p468 = scmp.lt.s32.totalorder %s25, 1
      %s469 = scalar_select %p468, %s25, 1
      %s470 = smul.addr %s469, 2
      %s471 = smul.addr %s470, 8
      %s472 = scalar_lea.vmem %s14, %s471
      %p473 = scmp.lt.s32.totalorder %s25, 1
      %s474 = scalar_select %p473, %s25, 1
      %s475 = smul.addr %s474, 2
      %s476 = smul.addr %s475, 8
      %s477 = scalar_lea.vmem %s0, %s476
      %p478 = scmp.lt.s32.totalorder %s25, 1
      %s479 = scalar_select %p478, %s25, 1
      %s480 = smul.addr %s479, 2
      %s481 = smul.addr %s480, 8
      %s482 = scalar_lea.vmem %s1, %s481
      %p483 = scmp.lt.s32.totalorder %s25, 1
      %s484 = scalar_select %p483, %s25, 1
      %s485 = smul.addr %s484, 2
      %s486 = smul.addr %s485, 8
      %s487 = scalar_lea.vmem %s14, %s486
      %v489 = vld [vmem:[%s477] sm:$0xff]
      %v490 = vld [vmem:[%s477 + $0x8] sm:$0xff]
      %v491 = vld [vmem:[%s482] sm:$0xff]
      %v492 = vld [vmem:[%s482 + $0x8] sm:$0xff]
      %v493 = vld [vmem:[%s2] sm:$0xf]
      %v494 = vld [vmem:[%s2 + $0x4] sm:$0xf]
      %v495 = vld [vmem:[%s3] sm:$0xf]
      %v496 = vld [vmem:[%s3 + $0x4] sm:$0xf]
      %v497 = vld [vmem:[%s4] sm:$0xf]
      %v498 = vld [vmem:[%s4 + $0x4] sm:$0xf]
      %v499 = vld [vmem:[%s4 + $0x8] sm:$0xf]
      %v500 = vld [vmem:[%s4 + $0xc] sm:$0xf]
      %v501 = vld [vmem:[%s5] sm:$0xf]
      %v502 = vld [vmem:[%s5 + $0x4] sm:$0xf]
      %v503 = vld [vmem:[%s5 + $0x8] sm:$0xf]
      %v504 = vld [vmem:[%s5 + $0xc] sm:$0xf]
      %v505 = vpack.c.bf16 %v490, %v489
      %v508 = vunpack.c.l.b16 %v493
      %v509 = vunpack.c.l.b16 %v494
      %v510 = vpack.c.b16 %v509, %v508
      %vm511 = vcmask 130048
      %v513 = vsel %vm511, %v510, 0
      %515 = vmatprep.subr.bf16.mxu0 0
      %516 = vmatpush1.bf16.msra.mxu0 %v505
      %517 = vmatprep.subr.bf16.mxu0 0
      %518 = vmatpush1.bf16.msra.mxu0 0
      %519 = vmatprep.subr.bf16.mxu0 0
      %520 = vmatpush1.bf16.msra.mxu0 0
      %521 = vmatprep.subr.bf16.mxu0 0
      %522 = vmatpush1.bf16.msra.mxu0 0
      %523 = vmatprep.subr.bf16.mxu0 0
      %524 = vmatpush1.bf16.msra.mxu0 0
      %525 = vmatprep.subr.bf16.mxu0 0
      %526 = vmatpush1.bf16.msra.mxu0 0
      %527 = vmatprep.subr.bf16.mxu0 0
      %528 = vmatpush1.bf16.msra.mxu0 0
      %529 = vmatprep.subr.bf16.mxu0 0
      %530 = vmatpush1.bf16.msra.mxu0 0
      %531 = vmatprep.subr.bf16.mxu0 0
      %532 = vmatpush1.bf16.msra.mxu0 0
      %533 = vmatprep.subr.bf16.mxu0 0
      %534 = vmatpush1.bf16.msra.mxu0 0
      %535 = vmatprep.subr.bf16.mxu0 0
      %536 = vmatpush1.bf16.msra.mxu0 0
      %537 = vmatprep.subr.bf16.mxu0 0
      %538 = vmatpush1.bf16.msra.mxu0 0
      %539 = vmatprep.subr.bf16.mxu0 0
      %540 = vmatpush1.bf16.msra.mxu0 0
      %541 = vmatprep.subr.bf16.mxu0 0
      %542 = vmatpush1.bf16.msra.mxu0 0
      %543 = vmatprep.subr.bf16.mxu0 0
      %544 = vmatpush1.bf16.msra.mxu0 0
      %545 = vmatprep.subr.bf16.mxu0 0
      %546 = vmatpush1.bf16.msra.mxu0 0
      %547 = vmatprep.mubr.bf16.mxu0 0
      %548 = vmatmul.mubr.bf16.gmra.mrb[0].mxu0 %v513
      %v549 = vpop.f32.mrb[0].mxu0
      %v550 = vadd.f32 0.0, %v549
      %v551 = vpop.f32.mrb[0].mxu0
      %v552 = vpop.f32.mrb[0].mxu0
      %v553 = vadd.f32 0.0, %v552
      %v554 = vpop.f32.mrb[0].mxu0
      %555 = vdwg.mxu0
      %v558 = vunpack.c.l.b16 %v495
      %v559 = vunpack.c.l.b16 %v496
      %v560 = vpack.c.b16 %v559, %v558
      %v562 = vsel %vm511, %v560, 0
      %564 = vmatprep.subr.bf16.mxu0 0
      %565 = vmatpush1.bf16.msra.mxu0 %v505
      %566 = vmatprep.subr.bf16.mxu0 0
      %567 = vmatpush1.bf16.msra.mxu0 0
      %568 = vmatprep.subr.bf16.mxu0 0
      %569 = vmatpush1.bf16.msra.mxu0 0
      %570 = vmatprep.subr.bf16.mxu0 0
      %571 = vmatpush1.bf16.msra.mxu0 0
      %572 = vmatprep.subr.bf16.mxu0 0
      %573 = vmatpush1.bf16.msra.mxu0 0
      %574 = vmatprep.subr.bf16.mxu0 0
      %575 = vmatpush1.bf16.msra.mxu0 0
      %576 = vmatprep.subr.bf16.mxu0 0
      %577 = vmatpush1.bf16.msra.mxu0 0
      %578 = vmatprep.subr.bf16.mxu0 0
      %579 = vmatpush1.bf16.msra.mxu0 0
      %580 = vmatprep.subr.bf16.mxu0 0
      %581 = vmatpush1.bf16.msra.mxu0 0
      %582 = vmatprep.subr.bf16.mxu0 0
      %583 = vmatpush1.bf16.msra.mxu0 0
      %584 = vmatprep.subr.bf16.mxu0 0
      %585 = vmatpush1.bf16.msra.mxu0 0
      %586 = vmatprep.subr.bf16.mxu0 0
      %587 = vmatpush1.bf16.msra.mxu0 0
      %588 = vmatprep.subr.bf16.mxu0 0
      %589 = vmatpush1.bf16.msra.mxu0 0
      %590 = vmatprep.subr.bf16.mxu0 0
      %591 = vmatpush1.bf16.msra.mxu0 0
      %592 = vmatprep.subr.bf16.mxu0 0
      %593 = vmatpush1.bf16.msra.mxu0 0
      %594 = vmatprep.subr.bf16.mxu0 0
      %595 = vmatpush1.bf16.msra.mxu0 0
      %596 = vmatprep.mubr.bf16.mxu0 0
      %597 = vmatmul.mubr.bf16.gmra.mrb[0].mxu0 %v562
      %v598 = vpop.f32.mrb[0].mxu0
      %v599 = vadd.f32 0.0, %v598
      %v600 = vpop.f32.mrb[0].mxu0
      %v601 = vpop.f32.mrb[0].mxu0
      %v602 = vadd.f32 0.0, %v601
      %v603 = vpop.f32.mrb[0].mxu0
      %604 = vdwg.mxu0
      %v605 = vpack.c.bf16 %v553, %v550
      %v610 = vunpack.c.l.b16 %v497
      %v611 = vunpack.c.l.b16 %v498
      %v612 = vunpack.c.l.b16 %v499
      %v613 = vunpack.c.l.b16 %v500
      %v614 = vpack.c.b16 %v611, %v610
      %v615 = vpack.c.b16 %v613, %v612
      %vm618 = vcmask 261120
      %v620 = vsel %vm618, %v605, 0
      %622 = vmatprep.subr.bf16.mxu0 0
      %623 = vmatpush1.bf16.msra.mxu0 %v614
      %624 = vmatprep.subr.bf16.mxu0 0
      %625 = vmatpush1.bf16.msra.mxu0 %v615
      %626 = vmatprep.subr.bf16.mxu0 0
      %627 = vmatpush1.bf16.msra.mxu0 0
      %628 = vmatprep.subr.bf16.mxu0 0
      %629 = vmatpush1.bf16.msra.mxu0 0
      %630 = vmatprep.subr.bf16.mxu0 0
      %631 = vmatpush1.bf16.msra.mxu0 0
      %632 = vmatprep.subr.bf16.mxu0 0
      %633 = vmatpush1.bf16.msra.mxu0 0
      %634 = vmatprep.subr.bf16.mxu0 0
      %635 = vmatpush1.bf16.msra.mxu0 0
      %636 = vmatprep.subr.bf16.mxu0 0
      %637 = vmatpush1.bf16.msra.mxu0 0
      %638 = vmatprep.subr.bf16.mxu0 0
      %639 = vmatpush1.bf16.msra.mxu0 0
      %640 = vmatprep.subr.bf16.mxu0 0
      %641 = vmatpush1.bf16.msra.mxu0 0
      %642 = vmatprep.subr.bf16.mxu0 0
      %643 = vmatpush1.bf16.msra.mxu0 0
      %644 = vmatprep.subr.bf16.mxu0 0
      %645 = vmatpush1.bf16.msra.mxu0 0
      %646 = vmatprep.subr.bf16.mxu0 0
      %647 = vmatpush1.bf16.msra.mxu0 0
      %648 = vmatprep.subr.bf16.mxu0 0
      %649 = vmatpush1.bf16.msra.mxu0 0
      %650 = vmatprep.subr.bf16.mxu0 0
      %651 = vmatpush1.bf16.msra.mxu0 0
      %652 = vmatprep.subr.bf16.mxu0 0
      %653 = vmatpush1.bf16.msra.mxu0 0
      %654 = vmatprep.mubr.bf16.mxu0 0
      %655 = vmatmul.mubr.bf16.gmra.mrb[0].mxu0 %v620
      %v656 = vpop.f32.mrb[0].mxu0
      %v657 = vadd.f32 0.0, %v656
      %v658 = vpop.f32.mrb[0].mxu0
      %v659 = vpop.f32.mrb[0].mxu0
      %v660 = vadd.f32 0.0, %v659
      %v661 = vpop.f32.mrb[0].mxu0
      %662 = vdwg.mxu0
      %v663 = vpack.c.bf16 %v602, %v599
      %v668 = vunpack.c.l.b16 %v501
      %v669 = vunpack.c.l.b16 %v502
      %v670 = vunpack.c.l.b16 %v503
      %v671 = vunpack.c.l.b16 %v504
      %v672 = vpack.c.b16 %v669, %v668
      %v673 = vpack.c.b16 %v671, %v670
      %v677 = vsel %vm618, %v663, 0
      %679 = vmatprep.subr.bf16.mxu0 0
      %680 = vmatpush1.bf16.msra.mxu0 %v672
      %681 = vmatprep.subr.bf16.mxu0 0
      %682 = vmatpush1.bf16.msra.mxu0 %v673
      %683 = vmatprep.subr.bf16.mxu0 0
      %684 = vmatpush1.bf16.msra.mxu0 0
      %685 = vmatprep.subr.bf16.mxu0 0
      %686 = vmatpush1.bf16.msra.mxu0 0
      %687 = vmatprep.subr.bf16.mxu0 0
      %688 = vmatpush1.bf16.msra.mxu0 0
      %689 = vmatprep.subr.bf16.mxu0 0
      %690 = vmatpush1.bf16.msra.mxu0 0
      %691 = vmatprep.subr.bf16.mxu0 0
      %692 = vmatpush1.bf16.msra.mxu0 0
      %693 = vmatprep.subr.bf16.mxu0 0
      %694 = vmatpush1.bf16.msra.mxu0 0
      %695 = vmatprep.subr.bf16.mxu0 0
      %696 = vmatpush1.bf16.msra.mxu0 0
      %697 = vmatprep.subr.bf16.mxu0 0
      %698 = vmatpush1.bf16.msra.mxu0 0
      %699 = vmatprep.subr.bf16.mxu0 0
      %700 = vmatpush1.bf16.msra.mxu0 0
      %701 = vmatprep.subr.bf16.mxu0 0
      %702 = vmatpush1.bf16.msra.mxu0 0
      %703 = vmatprep.subr.bf16.mxu0 0
      %704 = vmatpush1.bf16.msra.mxu0 0
      %705 = vmatprep.subr.bf16.mxu0 0
      %706 = vmatpush1.bf16.msra.mxu0 0
      %707 = vmatprep.subr.bf16.mxu0 0
      %708 = vmatpush1.bf16.msra.mxu0 0
      %709 = vmatprep.subr.bf16.mxu0 0
      %710 = vmatpush1.bf16.msra.mxu0 0
      %711 = vmatprep.mubr.bf16.mxu0 0
      %712 = vmatmul.mubr.bf16.gmra.mrb[0].mxu0 %v677
      %v713 = vpop.f32.mrb[0].mxu0
      %v714 = vadd.f32 0.0, %v713
      %v715 = vpop.f32.mrb[0].mxu0
      %v716 = vpop.f32.mrb[0].mxu0
      %v717 = vadd.f32 0.0, %v716
      %v718 = vpop.f32.mrb[0].mxu0
      %719 = vdwg.mxu0
      %v720 = vsub.f32 %v657, %v714
      %v721 = vsub.f32 %v660, %v717
      %723 = vset.pattern.permute.xlu0 0
      %724 = vperm.xlu0 %723, %v491
      %v725 = vpop.permute.xlu0 %724
      %728 = vset.pattern.permute.xlu0 0
      %729 = vperm.xlu0 %728, %v492
      %v730 = vpop.permute.xlu0 %729
      %v732 = vmul.f32 %v720, %v725
      %v733 = vmul.f32 %v721, %v730
      %v734 = vadd.f32 %v732, %v489
      %v735 = vadd.f32 %v733, %v490
      %v736 = vsel %vm618, %v734, 0.0
      %737 = vadd.xlane.f32.xlu0 %v736
      %v738 = vpop.xlane.xlu0 %737
      %v739 = vsel %vm618, %v735, 0.0
      %740 = vadd.xlane.f32.xlu0 %v739
      %v741 = vpop.xlane.xlu0 %740
      %v742 = vrcp.pop 32.0
      %v743 = vmul.f32 %v738, %v742
      %v744 = vmul.f32 %v741, %v742
      %v745 = vsub.f32 %v734, %v743
      %v746 = vsub.f32 %v735, %v744
      %v747 = vmul.f32 %v745, %v745
      %v748 = vmul.f32 %v746, %v746
      %v749 = vsel %vm618, %v747, 0.0
      %750 = vadd.xlane.f32.xlu0 %v749
      %v751 = vpop.xlane.xlu0 %750
      %v752 = vsel %vm618, %v748, 0.0
      %753 = vadd.xlane.f32.xlu0 %v752
      %v754 = vpop.xlane.xlu0 %753
      %v755 = vmul.f32 %v751, %v742
      %v756 = vmul.f32 %v754, %v742
      %v757 = vadd.f32 %v755, 1e-05
      %v758 = vadd.f32 %v756, 1e-05
      %v759 = vrsqrt.pop %v757
      %v760 = vrsqrt.pop %v758
      %v761 = vmul.f32 %v745, %v759
      %v762 = vmul.f32 %v746, %v760
      %v763 = vld [vmem:[%s6] sm:$0x1]
      %v765 = vlaneseq
      %v766 = vshrl.u32 %v765, 7
      %v767 = vsub.s32 0, %v766
      %v768 = vrot.slane %v763, %v767
      %v770 = vmul.f32 %v761, %v768
      %v771 = vmul.f32 %v762, %v768
      %v772 = vld [vmem:[%s7] sm:$0x1]
      %v774 = vlaneseq
      %v775 = vshrl.u32 %v774, 7
      %v776 = vsub.s32 0, %v775
      %v777 = vrot.slane %v772, %v776
      %v779 = vadd.f32 %v770, %v777
      %v780 = vadd.f32 %v771, %v777
      %v781 = vpack.c.bf16 %v780, %v779
      %v782 = vld [vmem:[%s8] sm:$0xf]
      %v783 = vld [vmem:[%s8 + $0x4] sm:$0xf]
      %v784 = vld [vmem:[%s8 + $0x8] sm:$0xf]
      %v785 = vld [vmem:[%s8 + $0xc] sm:$0xf]
      %v786 = vld [vmem:[%s9] sm:$0x1]
      %v788 = vlaneseq
      %v789 = vshrl.u32 %v788, 7
      %v790 = vsub.s32 0, %v789
      %v791 = vrot.slane %v786, %v790
      %v797 = vunpack.c.l.b16 %v782
      %v798 = vunpack.c.l.b16 %v783
      %v799 = vunpack.c.l.b16 %v784
      %v800 = vunpack.c.l.b16 %v785
      %v801 = vpack.c.b16 %v798, %v797
      %v802 = vpack.c.b16 %v800, %v799
      %v806 = vsel %vm618, %v781, 0
      %808 = vmatprep.subr.bf16.mxu0 0
      %809 = vmatpush1.bf16.msra.mxu0 %v801
      %810 = vmatprep.subr.bf16.mxu0 0
      %811 = vmatpush1.bf16.msra.mxu0 %v802
      %812 = vmatprep.subr.bf16.mxu0 0
      %813 = vmatpush1.bf16.msra.mxu0 0
      %814 = vmatprep.subr.bf16.mxu0 0
      %815 = vmatpush1.bf16.msra.mxu0 0
      %816 = vmatprep.subr.bf16.mxu0 0
      %817 = vmatpush1.bf16.msra.mxu0 0
      %818 = vmatprep.subr.bf16.mxu0 0
      %819 = vmatpush1.bf16.msra.mxu0 0
      %820 = vmatprep.subr.bf16.mxu0 0
      %821 = vmatpush1.bf16.msra.mxu0 0
      %822 = vmatprep.subr.bf16.mxu0 0
      %823 = vmatpush1.bf16.msra.mxu0 0
      %824 = vmatprep.subr.bf16.mxu0 0
      %825 = vmatpush1.bf16.msra.mxu0 0
      %826 = vmatprep.subr.bf16.mxu0 0
      %827 = vmatpush1.bf16.msra.mxu0 0
      %828 = vmatprep.subr.bf16.mxu0 0
      %829 = vmatpush1.bf16.msra.mxu0 0
      %830 = vmatprep.subr.bf16.mxu0 0
      %831 = vmatpush1.bf16.msra.mxu0 0
      %832 = vmatprep.subr.bf16.mxu0 0
      %833 = vmatpush1.bf16.msra.mxu0 0
      %834 = vmatprep.subr.bf16.mxu0 0
      %835 = vmatpush1.bf16.msra.mxu0 0
      %836 = vmatprep.subr.bf16.mxu0 0
      %837 = vmatpush1.bf16.msra.mxu0 0
      %838 = vmatprep.subr.bf16.mxu0 0
      %839 = vmatpush1.bf16.msra.mxu0 0
      %840 = vmatprep.mubr.bf16.mxu0 0
      %841 = vmatmul.mubr.bf16.gmra.mrb[0].mxu0 %v806
      %v842 = vpop.f32.mrb[0].mxu0
      %v843 = vadd.f32 %v791, %v842
      %v844 = vpop.f32.mrb[0].mxu0
      %v845 = vpop.f32.mrb[0].mxu0
      %v846 = vadd.f32 %v791, %v845
      %v847 = vpop.f32.mrb[0].mxu0
      %848 = vdwg.mxu0
      %v849 = vmul.f32 %v843, 0.5
      %v850 = vmul.f32 %v846, 0.5
      %v851 = vmul.f32 %v843, 0.70710677
      %v852 = vmul.f32 %v846, 0.70710677
      %vm853 = vcmp.ge.f32.partialorder %v851, 0.0
      %vm854 = vcmp.ge.f32.partialorder %v852, 0.0
      %v855 = vsel %vm853, 1.0, -1.0
      %v856 = vsel %vm854, 1.0, -1.0
      %v857 = vand.u32 2147483647, %v851
      %v858 = vand.u32 2147483647, %v852
      %v859 = vmul.f32 %v857, 0.3275911
      %v860 = vmul.f32 %v858, 0.3275911
      %v861 = vadd.f32 %v859, 1.0
      %v862 = vadd.f32 %v860, 1.0
      %v863 = vrcp.pop %v861
      %v864 = vmul.f32 1.0, %v863
      %v865 = vrcp.pop %v862
      %v866 = vmul.f32 1.0, %v865
      %v867 = vmul.f32 %v864, 1.0614054
      %v868 = vmul.f32 %v866, 1.0614054
      %v869 = vadd.f32 %v867, -1.4531521
      %v870 = vadd.f32 %v868, -1.4531521
      %v871 = vmul.f32 %v869, %v864
      %v872 = vmul.f32 %v870, %v866
      %v873 = vadd.f32 %v871, 1.4214138
      %v874 = vadd.f32 %v872, 1.4214138
      %v875 = vmul.f32 %v873, %v864
      %v876 = vmul.f32 %v874, %v866
      %v877 = vadd.f32 %v875, -0.28449672
      %v878 = vadd.f32 %v876, -0.28449672
      %v879 = vmul.f32 %v877, %v864
      %v880 = vmul.f32 %v878, %v866
      %v881 = vadd.f32 %v879, 0.2548296
      %v882 = vadd.f32 %v880, 0.2548296
      %v883 = vmul.f32 %v881, %v864
      %v884 = vmul.f32 %v882, %v866
      %v885 = vsub.f32 0.0, %v857
      %v886 = vsub.f32 0.0, %v858
      %v887 = vmul.f32 %v885, %v857
      %v888 = vmul.f32 %v886, %v858
      %v889 = vmul.f32 %v887, 1.442695
      %v890 = vpow.pop %v889
      %v891 = vmul.f32 %v888, 1.442695
      %v892 = vpow.pop %v891
      %v893 = vmul.f32 %v883, %v890
      %v894 = vmul.f32 %v884, %v892
      %v895 = vsub.f32 1.0, %v893
      %v896 = vsub.f32 1.0, %v894
      %v897 = vmul.f32 %v855, %v895
      %v898 = vmul.f32 %v856, %v896
      %v899 = vadd.f32 %v897, 1.0
      %v900 = vadd.f32 %v898, 1.0
      %v901 = vmul.f32 %v849, %v899
      %v902 = vmul.f32 %v850, %v900
      %v903 = vpack.c.bf16 %v902, %v901
      %v904 = vld [vmem:[%s10] sm:$0xf]
      %v905 = vld [vmem:[%s10 + $0x4] sm:$0xf]
      %v906 = vld [vmem:[%s10 + $0x8] sm:$0xf]
      %v907 = vld [vmem:[%s10 + $0xc] sm:$0xf]
      %v908 = vld [vmem:[%s10 + $0x10] sm:$0xf]
      %v909 = vld [vmem:[%s10 + $0x14] sm:$0xf]
      %v910 = vld [vmem:[%s10 + $0x18] sm:$0xf]
      %v911 = vld [vmem:[%s10 + $0x1c] sm:$0xf]
      %v912 = vld [vmem:[%s11] sm:$0x1]
      %v914 = vlaneseq
      %v915 = vshrl.u32 %v914, 7
      %v916 = vsub.s32 0, %v915
      %v917 = vrot.slane %v912, %v916
      %v927 = vunpack.c.l.b16 %v904
      %v928 = vunpack.c.l.b16 %v905
      %v929 = vunpack.c.l.b16 %v906
      %v930 = vunpack.c.l.b16 %v907
      %v931 = vunpack.c.l.b16 %v908
      %v932 = vunpack.c.l.b16 %v909
      %v933 = vunpack.c.l.b16 %v910
      %v934 = vunpack.c.l.b16 %v911
      %v935 = vpack.c.b16 %v928, %v927
      %v936 = vpack.c.b16 %v930, %v929
      %v937 = vpack.c.b16 %v932, %v931
      %v938 = vpack.c.b16 %v934, %v933
      %vm943 = vcmask 523264
      %v945 = vsel %vm943, %v903, 0
      %947 = vmatprep.subr.bf16.mxu0 0
      %948 = vmatpush1.bf16.msra.mxu0 %v935
      %949 = vmatprep.subr.bf16.mxu0 0
      %950 = vmatpush1.bf16.msra.mxu0 %v936
      %951 = vmatprep.subr.bf16.mxu0 0
      %952 = vmatpush1.bf16.msra.mxu0 %v937
      %953 = vmatprep.subr.bf16.mxu0 0
      %954 = vmatpush1.bf16.msra.mxu0 %v938
      %955 = vmatprep.subr.bf16.mxu0 0
      %956 = vmatpush1.bf16.msra.mxu0 0
      %957 = vmatprep.subr.bf16.mxu0 0
      %958 = vmatpush1.bf16.msra.mxu0 0
      %959 = vmatprep.subr.bf16.mxu0 0
      %960 = vmatpush1.bf16.msra.mxu0 0
      %961 = vmatprep.subr.bf16.mxu0 0
      %962 = vmatpush1.bf16.msra.mxu0 0
      %963 = vmatprep.subr.bf16.mxu0 0
      %964 = vmatpush1.bf16.msra.mxu0 0
      %965 = vmatprep.subr.bf16.mxu0 0
      %966 = vmatpush1.bf16.msra.mxu0 0
      %967 = vmatprep.subr.bf16.mxu0 0
      %968 = vmatpush1.bf16.msra.mxu0 0
      %969 = vmatprep.subr.bf16.mxu0 0
      %970 = vmatpush1.bf16.msra.mxu0 0
      %971 = vmatprep.subr.bf16.mxu0 0
      %972 = vmatpush1.bf16.msra.mxu0 0
      %973 = vmatprep.subr.bf16.mxu0 0
      %974 = vmatpush1.bf16.msra.mxu0 0
      %975 = vmatprep.subr.bf16.mxu0 0
      %976 = vmatpush1.bf16.msra.mxu0 0
      %977 = vmatprep.subr.bf16.mxu0 0
      %978 = vmatpush1.bf16.msra.mxu0 0
      %979 = vmatprep.mubr.bf16.mxu0 0
      %980 = vmatmul.mubr.bf16.gmra.mrb[0].mxu0 %v945
      %v981 = vpop.f32.mrb[0].mxu0
      %v982 = vadd.f32 %v917, %v981
      %v983 = vpop.f32.mrb[0].mxu0
      %v984 = vpop.f32.mrb[0].mxu0
      %v985 = vadd.f32 %v917, %v984
      %v986 = vpop.f32.mrb[0].mxu0
      %987 = vdwg.mxu0
      %v988 = vadd.f32 %v982, %v779
      %v989 = vadd.f32 %v985, %v780
      %v990 = vsel %vm618, %v988, 0.0
      %991 = vadd.xlane.f32.xlu0 %v990
      %v992 = vpop.xlane.xlu0 %991
      %v993 = vsel %vm618, %v989, 0.0
      %994 = vadd.xlane.f32.xlu0 %v993
      %v995 = vpop.xlane.xlu0 %994
      %v996 = vmul.f32 %v992, %v742
      %v997 = vmul.f32 %v995, %v742
      %v998 = vsub.f32 %v988, %v996
      %v999 = vsub.f32 %v989, %v997
      %v1000 = vmul.f32 %v998, %v998
      %v1001 = vmul.f32 %v999, %v999
      %v1002 = vsel %vm618, %v1000, 0.0
      %1003 = vadd.xlane.f32.xlu0 %v1002
      %v1004 = vpop.xlane.xlu0 %1003
      %v1005 = vsel %vm618, %v1001, 0.0
      %1006 = vadd.xlane.f32.xlu0 %v1005
      %v1007 = vpop.xlane.xlu0 %1006
      %v1008 = vmul.f32 %v1004, %v742
      %v1009 = vmul.f32 %v1007, %v742
      %v1010 = vadd.f32 %v1008, 1e-05
      %v1011 = vadd.f32 %v1009, 1e-05
      %v1012 = vrsqrt.pop %v1010
      %v1013 = vrsqrt.pop %v1011
      %v1014 = vmul.f32 %v998, %v1012
      %v1015 = vmul.f32 %v999, %v1013
      %v1016 = vld [vmem:[%s12] sm:$0x1]
      %v1018 = vlaneseq
      %v1019 = vshrl.u32 %v1018, 7
      %v1020 = vsub.s32 0, %v1019
      %v1021 = vrot.slane %v1016, %v1020
      %v1023 = vmul.f32 %v1014, %v1021
      %v1024 = vmul.f32 %v1015, %v1021
      %v1025 = vld [vmem:[%s13] sm:$0x1]
      %v1027 = vlaneseq
      %v1028 = vshrl.u32 %v1027, 7
      %v1029 = vsub.s32 0, %v1028
      %v1030 = vrot.slane %v1025, %v1029
      %v1032 = vadd.f32 %v1023, %v1030
      %v1033 = vadd.f32 %v1024, %v1030
      %v1034 = vpack.c.bf16 %v1033, %v1032
      %1035 = vmatprep.subr.bf16.mxu0 0
      %1036 = vmatpush1.bf16.msra.mxu0 %v1034
      %1037 = vmatprep.subr.bf16.mxu0 0
      %1038 = vmatpush1.bf16.msra.mxu0 0
      %1039 = vmatprep.subr.bf16.mxu0 0
      %1040 = vmatpush1.bf16.msra.mxu0 0
      %1041 = vmatprep.subr.bf16.mxu0 0
      %1042 = vmatpush1.bf16.msra.mxu0 0
      %1043 = vmatprep.subr.bf16.mxu0 0
      %1044 = vmatpush1.bf16.msra.mxu0 0
      %1045 = vmatprep.subr.bf16.mxu0 0
      %1046 = vmatpush1.bf16.msra.mxu0 0
      %1047 = vmatprep.subr.bf16.mxu0 0
      %1048 = vmatpush1.bf16.msra.mxu0 0
      %1049 = vmatprep.subr.bf16.mxu0 0
      %1050 = vmatpush1.bf16.msra.mxu0 0
      %1051 = vmatprep.subr.bf16.mxu0 0
      %1052 = vmatpush1.bf16.msra.mxu0 0
      %1053 = vmatprep.subr.bf16.mxu0 0
      %1054 = vmatpush1.bf16.msra.mxu0 0
      %1055 = vmatprep.subr.bf16.mxu0 0
      %1056 = vmatpush1.bf16.msra.mxu0 0
      %1057 = vmatprep.subr.bf16.mxu0 0
      %1058 = vmatpush1.bf16.msra.mxu0 0
      %1059 = vmatprep.subr.bf16.mxu0 0
      %1060 = vmatpush1.bf16.msra.mxu0 0
      %1061 = vmatprep.subr.bf16.mxu0 0
      %1062 = vmatpush1.bf16.msra.mxu0 0
      %1063 = vmatprep.subr.bf16.mxu0 0
      %1064 = vmatpush1.bf16.msra.mxu0 0
      %1065 = vmatprep.subr.bf16.mxu0 0
      %1066 = vmatpush1.bf16.msra.mxu0 0
      %1067 = vmatprep.mubr.bf16.mxu0 0
      %1068 = vmatmul.mubr.bf16.gmra.mrb[0].mxu0 %v513
      %v1069 = vpop.f32.mrb[0].mxu0
      %v1070 = vadd.f32 0.0, %v1069
      %v1071 = vpop.f32.mrb[0].mxu0
      %v1072 = vpop.f32.mrb[0].mxu0
      %v1073 = vadd.f32 0.0, %v1072
      %v1074 = vpop.f32.mrb[0].mxu0
      %1075 = vdwg.mxu0
      %1076 = vmatprep.subr.bf16.mxu0 0
      %1077 = vmatpush1.bf16.msra.mxu0 %v1034
      %1078 = vmatprep.subr.bf16.mxu0 0
      %1079 = vmatpush1.bf16.msra.mxu0 0
      %1080 = vmatprep.subr.bf16.mxu0 0
      %1081 = vmatpush1.bf16.msra.mxu0 0
      %1082 = vmatprep.subr.bf16.mxu0 0
      %1083 = vmatpush1.bf16.msra.mxu0 0
      %1084 = vmatprep.subr.bf16.mxu0 0
      %1085 = vmatpush1.bf16.msra.mxu0 0
      %1086 = vmatprep.subr.bf16.mxu0 0
      %1087 = vmatpush1.bf16.msra.mxu0 0
      %1088 = vmatprep.subr.bf16.mxu0 0
      %1089 = vmatpush1.bf16.msra.mxu0 0
      %1090 = vmatprep.subr.bf16.mxu0 0
      %1091 = vmatpush1.bf16.msra.mxu0 0
      %1092 = vmatprep.subr.bf16.mxu0 0
      %1093 = vmatpush1.bf16.msra.mxu0 0
      %1094 = vmatprep.subr.bf16.mxu0 0
      %1095 = vmatpush1.bf16.msra.mxu0 0
      %1096 = vmatprep.subr.bf16.mxu0 0
      %1097 = vmatpush1.bf16.msra.mxu0 0
      %1098 = vmatprep.subr.bf16.mxu0 0
      %1099 = vmatpush1.bf16.msra.mxu0 0
      %1100 = vmatprep.subr.bf16.mxu0 0
      %1101 = vmatpush1.bf16.msra.mxu0 0
      %1102 = vmatprep.subr.bf16.mxu0 0
      %1103 = vmatpush1.bf16.msra.mxu0 0
      %1104 = vmatprep.subr.bf16.mxu0 0
      %1105 = vmatpush1.bf16.msra.mxu0 0
      %1106 = vmatprep.subr.bf16.mxu0 0
      %1107 = vmatpush1.bf16.msra.mxu0 0
      %1108 = vmatprep.mubr.bf16.mxu0 0
      %1109 = vmatmul.mubr.bf16.gmra.mrb[0].mxu0 %v562
      %v1110 = vpop.f32.mrb[0].mxu0
      %v1111 = vadd.f32 0.0, %v1110
      %v1112 = vpop.f32.mrb[0].mxu0
      %v1113 = vpop.f32.mrb[0].mxu0
      %v1114 = vadd.f32 0.0, %v1113
      %v1115 = vpop.f32.mrb[0].mxu0
      %1116 = vdwg.mxu0
      %v1117 = vpack.c.bf16 %v1073, %v1070
      %v1119 = vsel %vm618, %v1117, 0
      %1121 = vmatprep.subr.bf16.mxu0 0
      %1122 = vmatpush1.bf16.msra.mxu0 %v614
      %1123 = vmatprep.subr.bf16.mxu0 0
      %1124 = vmatpush1.bf16.msra.mxu0 %v615
      %1125 = vmatprep.subr.bf16.mxu0 0
      %1126 = vmatpush1.bf16.msra.mxu0 0
      %1127 = vmatprep.subr.bf16.mxu0 0
      %1128 = vmatpush1.bf16.msra.mxu0 0
      %1129 = vmatprep.subr.bf16.mxu0 0
      %1130 = vmatpush1.bf16.msra.mxu0 0
      %1131 = vmatprep.subr.bf16.mxu0 0
      %1132 = vmatpush1.bf16.msra.mxu0 0
      %1133 = vmatprep.subr.bf16.mxu0 0
      %1134 = vmatpush1.bf16.msra.mxu0 0
      %1135 = vmatprep.subr.bf16.mxu0 0
      %1136 = vmatpush1.bf16.msra.mxu0 0
      %1137 = vmatprep.subr.bf16.mxu0 0
      %1138 = vmatpush1.bf16.msra.mxu0 0
      %1139 = vmatprep.subr.bf16.mxu0 0
      %1140 = vmatpush1.bf16.msra.mxu0 0
      %1141 = vmatprep.subr.bf16.mxu0 0
      %1142 = vmatpush1.bf16.msra.mxu0 0
      %1143 = vmatprep.subr.bf16.mxu0 0
      %1144 = vmatpush1.bf16.msra.mxu0 0
      %1145 = vmatprep.subr.bf16.mxu0 0
      %1146 = vmatpush1.bf16.msra.mxu0 0
      %1147 = vmatprep.subr.bf16.mxu0 0
      %1148 = vmatpush1.bf16.msra.mxu0 0
      %1149 = vmatprep.subr.bf16.mxu0 0
      %1150 = vmatpush1.bf16.msra.mxu0 0
      %1151 = vmatprep.subr.bf16.mxu0 0
      %1152 = vmatpush1.bf16.msra.mxu0 0
      %1153 = vmatprep.mubr.bf16.mxu0 0
      %1154 = vmatmul.mubr.bf16.gmra.mrb[0].mxu0 %v1119
      %v1155 = vpop.f32.mrb[0].mxu0
      %v1156 = vadd.f32 0.0, %v1155
      %v1157 = vpop.f32.mrb[0].mxu0
      %v1158 = vpop.f32.mrb[0].mxu0
      %v1159 = vadd.f32 0.0, %v1158
      %v1160 = vpop.f32.mrb[0].mxu0
      %1161 = vdwg.mxu0
      %v1162 = vpack.c.bf16 %v1114, %v1111
      %v1164 = vsel %vm618, %v1162, 0
      %1166 = vmatprep.subr.bf16.mxu0 0
      %1167 = vmatpush1.bf16.msra.mxu0 %v672
      %1168 = vmatprep.subr.bf16.mxu0 0
      %1169 = vmatpush1.bf16.msra.mxu0 %v673
      %1170 = vmatprep.subr.bf16.mxu0 0
      %1171 = vmatpush1.bf16.msra.mxu0 0
      %1172 = vmatprep.subr.bf16.mxu0 0
      %1173 = vmatpush1.bf16.msra.mxu0 0
      %1174 = vmatprep.subr.bf16.mxu0 0
      %1175 = vmatpush1.bf16.msra.mxu0 0
      %1176 = vmatprep.subr.bf16.mxu0 0
      %1177 = vmatpush1.bf16.msra.mxu0 0
      %1178 = vmatprep.subr.bf16.mxu0 0
      %1179 = vmatpush1.bf16.msra.mxu0 0
      %1180 = vmatprep.subr.bf16.mxu0 0
      %1181 = vmatpush1.bf16.msra.mxu0 0
      %1182 = vmatprep.subr.bf16.mxu0 0
      %1183 = vmatpush1.bf16.msra.mxu0 0
      %1184 = vmatprep.subr.bf16.mxu0 0
      %1185 = vmatpush1.bf16.msra.mxu0 0
      %1186 = vmatprep.subr.bf16.mxu0 0
      %1187 = vmatpush1.bf16.msra.mxu0 0
      %1188 = vmatprep.subr.bf16.mxu0 0
      %1189 = vmatpush1.bf16.msra.mxu0 0
      %1190 = vmatprep.subr.bf16.mxu0 0
      %1191 = vmatpush1.bf16.msra.mxu0 0
      %1192 = vmatprep.subr.bf16.mxu0 0
      %1193 = vmatpush1.bf16.msra.mxu0 0
      %1194 = vmatprep.subr.bf16.mxu0 0
      %1195 = vmatpush1.bf16.msra.mxu0 0
      %1196 = vmatprep.subr.bf16.mxu0 0
      %1197 = vmatpush1.bf16.msra.mxu0 0
      %1198 = vmatprep.mubr.bf16.mxu0 0
      %1199 = vmatmul.mubr.bf16.gmra.mrb[0].mxu0 %v1164
      %v1200 = vpop.f32.mrb[0].mxu0
      %v1201 = vadd.f32 0.0, %v1200
      %v1202 = vpop.f32.mrb[0].mxu0
      %v1203 = vpop.f32.mrb[0].mxu0
      %v1204 = vadd.f32 0.0, %v1203
      %v1205 = vpop.f32.mrb[0].mxu0
      %1206 = vdwg.mxu0
      %v1207 = vsub.f32 %v1156, %v1201
      %v1208 = vsub.f32 %v1159, %v1204
      %v1209 = vmul.f32 %v1207, %v725
      %v1210 = vmul.f32 %v1208, %v730
      %v1211 = vadd.f32 %v1209, %v1032
      %v1212 = vadd.f32 %v1210, %v1033
      %v1213 = vsel %vm618, %v1211, 0.0
      %1214 = vadd.xlane.f32.xlu0 %v1213
      %v1215 = vpop.xlane.xlu0 %1214
      %v1216 = vsel %vm618, %v1212, 0.0
      %1217 = vadd.xlane.f32.xlu0 %v1216
      %v1218 = vpop.xlane.xlu0 %1217
      %v1219 = vmul.f32 %v1215, %v742
      %v1220 = vmul.f32 %v1218, %v742
      %v1221 = vsub.f32 %v1211, %v1219
      %v1222 = vsub.f32 %v1212, %v1220
      %v1223 = vmul.f32 %v1221, %v1221
      %v1224 = vmul.f32 %v1222, %v1222
      %v1225 = vsel %vm618, %v1223, 0.0
      %1226 = vadd.xlane.f32.xlu0 %v1225
      %v1227 = vpop.xlane.xlu0 %1226
      %v1228 = vsel %vm618, %v1224, 0.0
      %1229 = vadd.xlane.f32.xlu0 %v1228
      %v1230 = vpop.xlane.xlu0 %1229
      %v1231 = vmul.f32 %v1227, %v742
      %v1232 = vmul.f32 %v1230, %v742
      %v1233 = vadd.f32 %v1231, 1e-05
      %v1234 = vadd.f32 %v1232, 1e-05
      %v1235 = vrsqrt.pop %v1233
      %v1236 = vrsqrt.pop %v1234
      %v1237 = vmul.f32 %v1221, %v1235
      %v1238 = vmul.f32 %v1222, %v1236
      %s1239 = scalar_lea.vmem %s6, 1
      %v1240 = vld [vmem:[%s1239] sm:$0x1]
      %v1242 = vlaneseq
      %v1243 = vshrl.u32 %v1242, 7
      %v1244 = vsub.s32 0, %v1243
      %v1245 = vrot.slane %v1240, %v1244
      %v1247 = vmul.f32 %v1237, %v1245
      %v1248 = vmul.f32 %v1238, %v1245
      %s1249 = scalar_lea.vmem %s7, 1
      %v1250 = vld [vmem:[%s1249] sm:$0x1]
      %v1252 = vlaneseq
      %v1253 = vshrl.u32 %v1252, 7
      %v1254 = vsub.s32 0, %v1253
      %v1255 = vrot.slane %v1250, %v1254
      %v1257 = vadd.f32 %v1247, %v1255
      %v1258 = vadd.f32 %v1248, %v1255
      %v1259 = vpack.c.bf16 %v1258, %v1257
      %s1260 = scalar_lea.vmem %s8, 16
      %v1261 = vld [vmem:[%s1260] sm:$0xf]
      %v1262 = vld [vmem:[%s1260 + $0x4] sm:$0xf]
      %v1263 = vld [vmem:[%s1260 + $0x8] sm:$0xf]
      %v1264 = vld [vmem:[%s1260 + $0xc] sm:$0xf]
      %s1265 = scalar_lea.vmem %s9, 1
      %v1266 = vld [vmem:[%s1265] sm:$0x1]
      %v1268 = vlaneseq
      %v1269 = vshrl.u32 %v1268, 7
      %v1270 = vsub.s32 0, %v1269
      %v1271 = vrot.slane %v1266, %v1270
      %v1277 = vunpack.c.l.b16 %v1261
      %v1278 = vunpack.c.l.b16 %v1262
      %v1279 = vunpack.c.l.b16 %v1263
      %v1280 = vunpack.c.l.b16 %v1264
      %v1281 = vpack.c.b16 %v1278, %v1277
      %v1282 = vpack.c.b16 %v1280, %v1279
      %v1286 = vsel %vm618, %v1259, 0
      %1288 = vmatprep.subr.bf16.mxu0 0
      %1289 = vmatpush1.bf16.msra.mxu0 %v1281
      %1290 = vmatprep.subr.bf16.mxu0 0
      %1291 = vmatpush1.bf16.msra.mxu0 %v1282
      %1292 = vmatprep.subr.bf16.mxu0 0
      %1293 = vmatpush1.bf16.msra.mxu0 0
      %1294 = vmatprep.subr.bf16.mxu0 0
      %1295 = vmatpush1.bf16.msra.mxu0 0
      %1296 = vmatprep.subr.bf16.mxu0 0
      %1297 = vmatpush1.bf16.msra.mxu0 0
      %1298 = vmatprep.subr.bf16.mxu0 0
      %1299 = vmatpush1.bf16.msra.mxu0 0
      %1300 = vmatprep.subr.bf16.mxu0 0
      %1301 = vmatpush1.bf16.msra.mxu0 0
      %1302 = vmatprep.subr.bf16.mxu0 0
      %1303 = vmatpush1.bf16.msra.mxu0 0
      %1304 = vmatprep.subr.bf16.mxu0 0
      %1305 = vmatpush1.bf16.msra.mxu0 0
      %1306 = vmatprep.subr.bf16.mxu0 0
      %1307 = vmatpush1.bf16.msra.mxu0 0
      %1308 = vmatprep.subr.bf16.mxu0 0
      %1309 = vmatpush1.bf16.msra.mxu0 0
      %1310 = vmatprep.subr.bf16.mxu0 0
      %1311 = vmatpush1.bf16.msra.mxu0 0
      %1312 = vmatprep.subr.bf16.mxu0 0
      %1313 = vmatpush1.bf16.msra.mxu0 0
      %1314 = vmatprep.subr.bf16.mxu0 0
      %1315 = vmatpush1.bf16.msra.mxu0 0
      %1316 = vmatprep.subr.bf16.mxu0 0
      %1317 = vmatpush1.bf16.msra.mxu0 0
      %1318 = vmatprep.subr.bf16.mxu0 0
      %1319 = vmatpush1.bf16.msra.mxu0 0
      %1320 = vmatprep.mubr.bf16.mxu0 0
      %1321 = vmatmul.mubr.bf16.gmra.mrb[0].mxu0 %v1286
      %v1322 = vpop.f32.mrb[0].mxu0
      %v1323 = vadd.f32 %v1271, %v1322
      %v1324 = vpop.f32.mrb[0].mxu0
      %v1325 = vpop.f32.mrb[0].mxu0
      %v1326 = vadd.f32 %v1271, %v1325
      %v1327 = vpop.f32.mrb[0].mxu0
      %1328 = vdwg.mxu0
      %v1329 = vmul.f32 %v1323, 0.5
      %v1330 = vmul.f32 %v1326, 0.5
      %v1331 = vmul.f32 %v1323, 0.70710677
      %v1332 = vmul.f32 %v1326, 0.70710677
      %vm1333 = vcmp.ge.f32.partialorder %v1331, 0.0
      %vm1334 = vcmp.ge.f32.partialorder %v1332, 0.0
      %v1335 = vsel %vm1333, 1.0, -1.0
      %v1336 = vsel %vm1334, 1.0, -1.0
      %v1337 = vand.u32 2147483647, %v1331
      %v1338 = vand.u32 2147483647, %v1332
      %v1339 = vmul.f32 %v1337, 0.3275911
      %v1340 = vmul.f32 %v1338, 0.3275911
      %v1341 = vadd.f32 %v1339, 1.0
      %v1342 = vadd.f32 %v1340, 1.0
      %v1343 = vrcp.pop %v1341
      %v1344 = vmul.f32 1.0, %v1343
      %v1345 = vrcp.pop %v1342
      %v1346 = vmul.f32 1.0, %v1345
      %v1347 = vmul.f32 %v1344, 1.0614054
      %v1348 = vmul.f32 %v1346, 1.0614054
      %v1349 = vadd.f32 %v1347, -1.4531521
      %v1350 = vadd.f32 %v1348, -1.4531521
      %v1351 = vmul.f32 %v1349, %v1344
      %v1352 = vmul.f32 %v1350, %v1346
      %v1353 = vadd.f32 %v1351, 1.4214138
      %v1354 = vadd.f32 %v1352, 1.4214138
      %v1355 = vmul.f32 %v1353, %v1344
      %v1356 = vmul.f32 %v1354, %v1346
      %v1357 = vadd.f32 %v1355, -0.28449672
      %v1358 = vadd.f32 %v1356, -0.28449672
      %v1359 = vmul.f32 %v1357, %v1344
      %v1360 = vmul.f32 %v1358, %v1346
      %v1361 = vadd.f32 %v1359, 0.2548296
      %v1362 = vadd.f32 %v1360, 0.2548296
      %v1363 = vmul.f32 %v1361, %v1344
      %v1364 = vmul.f32 %v1362, %v1346
      %v1365 = vsub.f32 0.0, %v1337
      %v1366 = vsub.f32 0.0, %v1338
      %v1367 = vmul.f32 %v1365, %v1337
      %v1368 = vmul.f32 %v1366, %v1338
      %v1369 = vmul.f32 %v1367, 1.442695
      %v1370 = vpow.pop %v1369
      %v1371 = vmul.f32 %v1368, 1.442695
      %v1372 = vpow.pop %v1371
      %v1373 = vmul.f32 %v1363, %v1370
      %v1374 = vmul.f32 %v1364, %v1372
      %v1375 = vsub.f32 1.0, %v1373
      %v1376 = vsub.f32 1.0, %v1374
      %v1377 = vmul.f32 %v1335, %v1375
      %v1378 = vmul.f32 %v1336, %v1376
      %v1379 = vadd.f32 %v1377, 1.0
      %v1380 = vadd.f32 %v1378, 1.0
      %v1381 = vmul.f32 %v1329, %v1379
      %v1382 = vmul.f32 %v1330, %v1380
      %v1383 = vpack.c.bf16 %v1382, %v1381
      %s1384 = scalar_lea.vmem %s10, 32
      %v1385 = vld [vmem:[%s1384] sm:$0xf]
      %v1386 = vld [vmem:[%s1384 + $0x4] sm:$0xf]
      %v1387 = vld [vmem:[%s1384 + $0x8] sm:$0xf]
      %v1388 = vld [vmem:[%s1384 + $0xc] sm:$0xf]
      %v1389 = vld [vmem:[%s1384 + $0x10] sm:$0xf]
      %v1390 = vld [vmem:[%s1384 + $0x14] sm:$0xf]
      %v1391 = vld [vmem:[%s1384 + $0x18] sm:$0xf]
      %v1392 = vld [vmem:[%s1384 + $0x1c] sm:$0xf]
      %s1393 = scalar_lea.vmem %s11, 1
      %v1394 = vld [vmem:[%s1393] sm:$0x1]
      %v1396 = vlaneseq
      %v1397 = vshrl.u32 %v1396, 7
      %v1398 = vsub.s32 0, %v1397
      %v1399 = vrot.slane %v1394, %v1398
      %v1409 = vunpack.c.l.b16 %v1385
      %v1410 = vunpack.c.l.b16 %v1386
      %v1411 = vunpack.c.l.b16 %v1387
      %v1412 = vunpack.c.l.b16 %v1388
      %v1413 = vunpack.c.l.b16 %v1389
      %v1414 = vunpack.c.l.b16 %v1390
      %v1415 = vunpack.c.l.b16 %v1391
      %v1416 = vunpack.c.l.b16 %v1392
      %v1417 = vpack.c.b16 %v1410, %v1409
      %v1418 = vpack.c.b16 %v1412, %v1411
      %v1419 = vpack.c.b16 %v1414, %v1413
      %v1420 = vpack.c.b16 %v1416, %v1415
      %v1426 = vsel %vm943, %v1383, 0
      %1428 = vmatprep.subr.bf16.mxu0 0
      %1429 = vmatpush1.bf16.msra.mxu0 %v1417
      %1430 = vmatprep.subr.bf16.mxu0 0
      %1431 = vmatpush1.bf16.msra.mxu0 %v1418
      %1432 = vmatprep.subr.bf16.mxu0 0
      %1433 = vmatpush1.bf16.msra.mxu0 %v1419
      %1434 = vmatprep.subr.bf16.mxu0 0
      %1435 = vmatpush1.bf16.msra.mxu0 %v1420
      %1436 = vmatprep.subr.bf16.mxu0 0
      %1437 = vmatpush1.bf16.msra.mxu0 0
      %1438 = vmatprep.subr.bf16.mxu0 0
      %1439 = vmatpush1.bf16.msra.mxu0 0
      %1440 = vmatprep.subr.bf16.mxu0 0
      %1441 = vmatpush1.bf16.msra.mxu0 0
      %1442 = vmatprep.subr.bf16.mxu0 0
      %1443 = vmatpush1.bf16.msra.mxu0 0
      %1444 = vmatprep.subr.bf16.mxu0 0
      %1445 = vmatpush1.bf16.msra.mxu0 0
      %1446 = vmatprep.subr.bf16.mxu0 0
      %1447 = vmatpush1.bf16.msra.mxu0 0
      %1448 = vmatprep.subr.bf16.mxu0 0
      %1449 = vmatpush1.bf16.msra.mxu0 0
      %1450 = vmatprep.subr.bf16.mxu0 0
      %1451 = vmatpush1.bf16.msra.mxu0 0
      %1452 = vmatprep.subr.bf16.mxu0 0
      %1453 = vmatpush1.bf16.msra.mxu0 0
      %1454 = vmatprep.subr.bf16.mxu0 0
      %1455 = vmatpush1.bf16.msra.mxu0 0
      %1456 = vmatprep.subr.bf16.mxu0 0
      %1457 = vmatpush1.bf16.msra.mxu0 0
      %1458 = vmatprep.subr.bf16.mxu0 0
      %1459 = vmatpush1.bf16.msra.mxu0 0
      %1460 = vmatprep.mubr.bf16.mxu0 0
      %1461 = vmatmul.mubr.bf16.gmra.mrb[0].mxu0 %v1426
      %v1462 = vpop.f32.mrb[0].mxu0
      %v1463 = vadd.f32 %v1399, %v1462
      %v1464 = vpop.f32.mrb[0].mxu0
      %v1465 = vpop.f32.mrb[0].mxu0
      %v1466 = vadd.f32 %v1399, %v1465
      %v1467 = vpop.f32.mrb[0].mxu0
      %1468 = vdwg.mxu0
      %v1469 = vadd.f32 %v1463, %v1257
      %v1470 = vadd.f32 %v1466, %v1258
      %v1471 = vsel %vm618, %v1469, 0.0
      %1472 = vadd.xlane.f32.xlu0 %v1471
      %v1473 = vpop.xlane.xlu0 %1472
      %v1474 = vsel %vm618, %v1470, 0.0
      %1475 = vadd.xlane.f32.xlu0 %v1474
      %v1476 = vpop.xlane.xlu0 %1475
      %v1477 = vmul.f32 %v1473, %v742
      %v1478 = vmul.f32 %v1476, %v742
      %v1479 = vsub.f32 %v1469, %v1477
      %v1480 = vsub.f32 %v1470, %v1478
      %v1481 = vmul.f32 %v1479, %v1479
      %v1482 = vmul.f32 %v1480, %v1480
      %v1483 = vsel %vm618, %v1481, 0.0
      %1484 = vadd.xlane.f32.xlu0 %v1483
      %v1485 = vpop.xlane.xlu0 %1484
      %v1486 = vsel %vm618, %v1482, 0.0
      %1487 = vadd.xlane.f32.xlu0 %v1486
      %v1488 = vpop.xlane.xlu0 %1487
      %v1489 = vmul.f32 %v1485, %v742
      %v1490 = vmul.f32 %v1488, %v742
      %v1491 = vadd.f32 %v1489, 1e-05
      %v1492 = vadd.f32 %v1490, 1e-05
      %v1493 = vrsqrt.pop %v1491
      %v1494 = vrsqrt.pop %v1492
      %v1495 = vmul.f32 %v1479, %v1493
      %v1496 = vmul.f32 %v1480, %v1494
      %s1497 = scalar_lea.vmem %s12, 1
      %v1498 = vld [vmem:[%s1497] sm:$0x1]
      %v1500 = vlaneseq
      %v1501 = vshrl.u32 %v1500, 7
      %v1502 = vsub.s32 0, %v1501
      %v1503 = vrot.slane %v1498, %v1502
      %v1505 = vmul.f32 %v1495, %v1503
      %v1506 = vmul.f32 %v1496, %v1503
      %s1507 = scalar_lea.vmem %s13, 1
      %v1508 = vld [vmem:[%s1507] sm:$0x1]
      %v1510 = vlaneseq
      %v1511 = vshrl.u32 %v1510, 7
      %v1512 = vsub.s32 0, %v1511
      %v1513 = vrot.slane %v1508, %v1512
      %v1515 = vadd.f32 %v1505, %v1513
      %v1516 = vadd.f32 %v1506, %v1513
      %1517 = vst.msk [vmem:[%s487] sm:$0xff] %vm618, %v1515
      %1518 = vst.msk [vmem:[%s487 + $0x8] sm:$0xff] %vm618, %v1516
      %p1519 = scmp.lt.s32.totalorder %s25, 1
      %s1520 = scalar_select %p1519, %s25, 1
      %s1521 = smul.addr %s1520, 2
      %s1522 = smul.addr %s1521, 8
      %s1523 = scalar_lea.vmem %s14, %s1522
      // Predicated region
      $region77: #{fk_forward.4} parent=75 // pred_check
        %p1524 = pneg %p347
      $region78: #{fk_forward.4} parent=75 // pred_check_branch
        %1526 = sbr.rel (%p1524) target = $region80
      $region79: #{fk_forward.4} parent=75 // pred_region
        _
      $region80: #{fk_forward.4} parent=75 // pred_fallthru
        _
    $region76: #{fk_forward.4} parent=5 // pred_fallthru
      _
    %p1527 = scmp.le.s32.totalorder 2, %s20
    // Predicated region
    $region81: #{fk_forward.4} parent=5 // pred_check
      %p1528 = pneg %p1527
    $region82: #{fk_forward.4} parent=5 // pred_check_branch
      %1530 = sbr.rel (%p1528) target = $region84
    $region83: #{fk_forward.4} parent=5 // pred_region
      %s1531 = ssub.s32 %s20, 2
      // Predicated region
      $region85: #{fk_forward.4} parent=83 // pred_check
        %p1532 = pneg %p353
      $region86: #{fk_forward.4} parent=83 // pred_check_branch
        %1534 = sbr.rel (%p1532) target = $region88
      $region87: #{fk_forward.4} parent=83 // pred_region
        %p1535 = scmp.lt.s32.totalorder %s26, 1
        %s1536 = scalar_select %p1535, %s26, 1
        %s1537 = smul.addr %s1536, 2
        %s1538 = smul.addr %s1537, 8
        %s1539 = scalar_lea.vmem %s14, %s1538
      $region88: #{fk_forward.4} parent=83 // pred_fallthru
        _
    $region84: #{fk_forward.4} parent=5 // pred_fallthru
      _
  $region6: #{fk_forward.4} parent=0 // loop_footer
    %s24 = sadd.s32 1, %s20
  $region7: #{fk_forward.4} parent=0 // loop_footer_branch
    %19 = sbr.rel target = $region3
  $region8: #{fk_forward.4} parent=0 // loop_exit
    _

</llo_original>
